<compile_context>
chip_gen: v7x
topology: tpu7x:2x2x1
jax: 0.10.0
libtpu: 0.0.40
codegen_flags: <defaults>
</compile_context>

<pallas_src>
import functools

import jax
import jax.numpy as jnp
from jax.experimental import pallas as pl
from jax.experimental.pallas import tpu as pltpu


def _ffn_kernel(x_ref, w1_ref, b1_ref, w2_ref, b2_ref, o_ref):
    """One row-tile: y = ReLU(x @ W1 + b1) @ W2 + b2, all resident in VMEM."""
    x = x_ref[...]                                   # (tm, C), model dtype
    w1 = w1_ref[...]                                 # (C, 4C)
    w2 = w2_ref[...]                                 # (4C, C)

    # First linear + bias + ReLU (accumulate in f32 on the MXU).
    h = jnp.dot(x, w1, preferred_element_type=jnp.float32)      # (tm, 4C) f32
    h = h + b1_ref[...].astype(jnp.float32)                     # bias (1, 4C)
    h = jnp.maximum(h, 0.0)                                      # ReLU in f32

    # Second linear + bias.  Cast hidden back to the weight dtype so bf16
    # models feed the MXU bf16 operands; f32 models stay f32 (no-op cast).
    y = jnp.dot(h.astype(w2.dtype), w2, preferred_element_type=jnp.float32)
    y = y + b2_ref[...].astype(jnp.float32)                      # bias (1, C)

    # TODO(synk): dropout omitted (eval-mode identity).
    o_ref[...] = y.astype(o_ref.dtype)


def feed_forward(x, w1, b1, w2, b2, *, tm=256):
    """x: (B, T, C); w1: (C, 4C); b1: (4C,); w2: (4C, C); b2: (C,)."""
    B, T, C = x.shape
    H = w1.shape[1]
    assert w1.shape == (C, H) and w2.shape == (H, C)
    assert b1.shape == (H,) and b2.shape == (C,)

    # Flatten tokens; tile only over rows so weights stay VMEM-resident.
    M = B * T
    xf = x.reshape(M, C)

    tm = min(tm, M)
    tm = max(8, ((tm + 7) // 8) * 8)                 # sublane (8) alignment
    Mp = ((M + tm - 1) // tm) * tm                   # pad rows to tile multiple
    if Mp != M:
        xf = jnp.pad(xf, ((0, Mp - M), (0, 0)))

    b1_2d = b1.reshape(1, H)
    b2_2d = b2.reshape(1, C)

    itemsize = jnp.dtype(x.dtype).itemsize
    cost = pl.CostEstimate(
        flops=2 * Mp * C * H + 2 * Mp * H * C,
        transcendentals=0,
        bytes_accessed=(Mp * C + C * H + H + H * C + C + Mp * C) * itemsize,
    )

    out = pl.pallas_call(
        _ffn_kernel,
        out_shape=jax.ShapeDtypeStruct((Mp, C), x.dtype),
        grid=(Mp // tm,),
        in_specs=[
            pl.BlockSpec((tm, C), lambda i: (i, 0)),   # x row tile
            pl.BlockSpec((C, H), lambda i: (0, 0)),    # W1 (resident)
            pl.BlockSpec((1, H), lambda i: (0, 0)),    # b1 (resident)
            pl.BlockSpec((H, C), lambda i: (0, 0)),    # W2 (resident)
            pl.BlockSpec((1, C), lambda i: (0, 0)),    # b2 (resident)
        ],
        out_specs=pl.BlockSpec((tm, C), lambda i: (i, 0)),
        compiler_params=pltpu.CompilerParams(
            dimension_semantics=("parallel",),
            vmem_limit_bytes=96 * 1024 * 1024,
        ),
        cost_estimate=cost,
    )(xf, w1, b1_2d, w2, b2_2d)

    return out[:M].reshape(B, T, C)


def _reference(x, w1, b1, w2, b2):
    """Pure-JAX reference matching the PyTorch forward (eval mode)."""
    h = jnp.maximum(x @ w1 + b1, 0.0)
    return h @ w2 + b2


if __name__ == "__main__":
    # Small shapes consistent with the module: n_embd = 384, hidden = 4 * n_embd.
    B, T = 2, 8
    n_embd = 384
    hidden = 4 * n_embd  # 1536

    key = jax.random.PRNGKey(0)
    kx, k1, kb1, k2, kb2 = jax.random.split(key, 5)

    x = jax.random.normal(kx, (B, T, n_embd), dtype=jnp.float32)
    w1 = jax.random.normal(k1, (n_embd, hidden), jnp.float32) * 0.05
    b1 = jax.random.normal(kb1, (hidden,), jnp.float32) * 0.05
    w2 = jax.random.normal(k2, (hidden, n_embd), jnp.float32) * 0.05
    b2 = jax.random.normal(kb2, (n_embd,), jnp.float32) * 0.05

    out = feed_forward(x, w1, b1, w2, b2)
    out = jax.block_until_ready(out)

    ref = _reference(x, w1, b1, w2, b2)
    assert out.shape == (B, T, n_embd)
    assert jnp.allclose(out, ref, atol=1e-4, rtol=1e-4), "mismatch vs reference"

    print("KERNEL_OK")
</pallas_src>

<mosaic_0001>
module attributes {stable_mosaic.version = 11 : i64} {
  func.func @_ffn_kernel(%arg0: i32, %arg1: memref<16x384xf32, #tpu.memory_space<vmem>>, %arg2: memref<384x1536xf32, #tpu.memory_space<vmem>>, %arg3: memref<1x1536xf32, #tpu.memory_space<vmem>>, %arg4: memref<1536x384xf32, #tpu.memory_space<vmem>>, %arg5: memref<1x384xf32, #tpu.memory_space<vmem>>, %arg6: memref<16x384xf32, #tpu.memory_space<vmem>>) attributes {dimension_semantics = [#tpu.dimension_semantics<parallel>], iteration_bounds = array<i64: 1>, scalar_prefetch = 0 : i64, scratch_operands = 0 : i64, tpu.core_type = #tpu.core_type<tc>, window_params = [{transform_indices = @transform_0, window_bounds = array<i64: 16, 384>}, {pipeline_mode = #tpu.pipeline_mode<synchronous>, transform_indices = @transform_1, window_bounds = array<i64: 384, 1536>}, {pipeline_mode = #tpu.pipeline_mode<synchronous>, transform_indices = @transform_2, window_bounds = array<i64: 1, 1536>}, {pipeline_mode = #tpu.pipeline_mode<synchronous>, transform_indices = @transform_3, window_bounds = array<i64: 1536, 384>}, {pipeline_mode = #tpu.pipeline_mode<synchronous>, transform_indices = @transform_4, window_bounds = array<i64: 1, 384>}, {transform_indices = @transform_5, window_bounds = array<i64: 16, 384>}]} {
    %c0 = arith.constant 0 : index
    %c0_0 = arith.constant 0 : index
    %0 = vector.load %arg1[%c0, %c0_0] : memref<16x384xf32, #tpu.memory_space<vmem>>, vector<16x384xf32>
    %c0_1 = arith.constant 0 : index
    %c0_2 = arith.constant 0 : index
    %1 = vector.load %arg2[%c0_1, %c0_2] : memref<384x1536xf32, #tpu.memory_space<vmem>>, vector<384x1536xf32>
    %c0_3 = arith.constant 0 : index
    %c0_4 = arith.constant 0 : index
    %2 = vector.load %arg4[%c0_3, %c0_4] : memref<1536x384xf32, #tpu.memory_space<vmem>>, vector<1536x384xf32>
    %cst = arith.constant dense<0.000000e+00> : vector<16x1536xf32>
    %3 = tpu.matmul %0, %1, %cst {dimension_numbers = #tpu.dot_dimension_numbers<[1], [0], [0], [1], [0, 0, 1, 1], [], []>} : vector<16x384xf32>, vector<384x1536xf32>, vector<16x1536xf32> -> vector<16x1536xf32>
    %c0_5 = arith.constant 0 : index
    %c0_6 = arith.constant 0 : index
    %4 = vector.load %arg3[%c0_5, %c0_6] : memref<1x1536xf32, #tpu.memory_space<vmem>>, vector<1x1536xf32>
    %5 = vector.broadcast %4 : vector<1x1536xf32> to vector<16x1536xf32>
    %6 = arith.addf %3, %5 : vector<16x1536xf32>
    %cst_7 = arith.constant 0.000000e+00 : f32
    %7 = vector.broadcast %cst_7 : f32 to vector<16x1536xf32>
    %8 = arith.maximumf %6, %7 : vector<16x1536xf32>
    %cst_8 = arith.constant dense<0.000000e+00> : vector<16x384xf32>
    %9 = tpu.matmul %8, %2, %cst_8 {dimension_numbers = #tpu.dot_dimension_numbers<[1], [0], [0], [1], [0, 0, 1, 1], [], []>} : vector<16x1536xf32>, vector<1536x384xf32>, vector<16x384xf32> -> vector<16x384xf32>
    %c0_9 = arith.constant 0 : index
    %c0_10 = arith.constant 0 : index
    %10 = vector.load %arg5[%c0_9, %c0_10] : memref<1x384xf32, #tpu.memory_space<vmem>>, vector<1x384xf32>
    %11 = vector.broadcast %10 : vector<1x384xf32> to vector<16x384xf32>
    %12 = arith.addf %9, %11 : vector<16x384xf32>
    %c0_11 = arith.constant 0 : index
    %c0_12 = arith.constant 0 : index
    %13 = vector.load %arg6[%c0_11, %c0_12] : memref<16x384xf32, #tpu.memory_space<vmem>>, vector<16x384xf32>
    tpu.vector_store %arg6[%c0_11, %c0_12], %12 {strides = array<i32>} : memref<16x384xf32, #tpu.memory_space<vmem>>, vector<16x384xf32>,
    return
  }
  func.func @transform_0(%arg0: i32) -> (i32, i32) {
    %c0_i32 = arith.constant 0 : i32
    %c0_i32_0 = arith.constant 0 : i32
    return %arg0, %c0_i32 : i32, i32
  }
  func.func @transform_1(%arg0: i32) -> (i32, i32) {
    %c0_i32 = arith.constant 0 : i32
    %c0_i32_0 = arith.constant 0 : i32
    %c0_i32_1 = arith.constant 0 : i32
    return %c0_i32, %c0_i32_0 : i32, i32
  }
  func.func @transform_2(%arg0: i32) -> (i32, i32) {
    %c0_i32 = arith.constant 0 : i32
    %c0_i32_0 = arith.constant 0 : i32
    %c0_i32_1 = arith.constant 0 : i32
    return %c0_i32, %c0_i32_0 : i32, i32
  }
  func.func @transform_3(%arg0: i32) -> (i32, i32) {
    %c0_i32 = arith.constant 0 : i32
    %c0_i32_0 = arith.constant 0 : i32
    %c0_i32_1 = arith.constant 0 : i32
    return %c0_i32, %c0_i32_0 : i32, i32
  }
  func.func @transform_4(%arg0: i32) -> (i32, i32) {
    %c0_i32 = arith.constant 0 : i32
    %c0_i32_0 = arith.constant 0 : i32
    %c0_i32_1 = arith.constant 0 : i32
    return %c0_i32, %c0_i32_0 : i32, i32
  }
  func.func @transform_5(%arg0: i32) -> (i32, i32) {
    %c0_i32 = arith.constant 0 : i32
    %c0_i32_0 = arith.constant 0 : i32
    return %arg0, %c0_i32 : i32, i32
  }
}

</mosaic_0001>

<llo_original>
// kernel: tpu_custom_call.1
$region0: #{tpu_custom_call.1}
  #allocation0 [shape = 'u32[]', space=smem, size = 0x4, offset = 0x4, fixed_abs, tag = 'smem constant byte address 0x4 - core index']
  #allocation1 [shape = 'u32[144,128]{1,0:T(1,128)}', space=vmem, size = 0x12000, scoped, tag = 'internal scratch']
  %s0 = inlined_call_operand.hbm [shape: f32[16,384], index: 0, kind: input, shape index: {}]
  %s1 = inlined_call_operand.hbm [shape: f32[384,1536], index: 1, kind: input, shape index: {}]
  %s2 = inlined_call_operand.hbm [shape: f32[1,1536], index: 2, kind: input, shape index: {}]
  %s3 = inlined_call_operand.hbm [shape: f32[1536,384], index: 3, kind: input, shape index: {}]
  %s4 = inlined_call_operand.hbm [shape: f32[1,384], index: 4, kind: input, shape index: {}]
  %s5 = inlined_call_operand.hbm [shape: f32[16,384], index: 5, kind: output, shape index: {}]
  %s6 = sld [smem:[#allocation0]]
  $region50: #{tpu_custom_call.1} parent=0
    _
  %s8 = ssub.s32 1, %s6
  %s9 = scalar_select 0, %s8, %s6
  $region1: #{tpu_custom_call.1} parent=0
    #allocation2 [shape = 'u8[24576]{0}', space=vmem, size = 0x6000, scoped, tag = 'input window, operand 0, single buffered']
    #allocation3 [shape = 's32[1]{0}', space=sflag, size = 0x4, scoped, tag = 'scoped memory for tpu_custom_call.1']
    #allocation4 [shape = 's32[1]{0}', space=sflag, size = 0x4, scoped, tag = 'scoped memory for tpu_custom_call.1']
    #allocation5 [shape = 'u8[2359296]{0}', space=vmem, size = 0x240000, scoped, tag = 'input window, operand 1, single buffered']
    #allocation6 [shape = 's32[1]{0}', space=sflag, size = 0x4, scoped, tag = 'scoped memory for tpu_custom_call.1']
    #allocation7 [shape = 'u8[6144]{0}', space=vmem, size = 0x1800, scoped, tag = 'input window, operand 2, single buffered']
    #allocation8 [shape = 'u8[2359296]{0}', space=vmem, size = 0x240000, scoped, tag = 'input window, operand 3, single buffered']
    #allocation9 [shape = 's32[1]{0}', space=sflag, size = 0x4, scoped, tag = 'scoped memory for tpu_custom_call.1']
    #allocation10 [shape = 'u8[1536]{0}', space=vmem, size = 0x800, scoped, tag = 'input window, operand 4, single buffered']
    #allocation11 [shape = 'u8[24576]{0}', space=vmem, size = 0x6000, scoped, tag = 'output window, operand 0, single buffered']
    %10 = vsyncpa [#allocation3], 0
    %11 = vsyncpa [#allocation6], 0
    %12 = vsyncpa [#allocation9], 0
    %13 = vsyncpa [#allocation4], 0
    // Predicated region
    $region2: #{tpu_custom_call.1} parent=1 // pred_check
      _
    $region3: #{tpu_custom_call.1} parent=1 // pred_check_branch
      %15 = sbr.rel (0) target = $region5
    $region4: #{tpu_custom_call.1} parent=1 // pred_region
      %s17 = ssub.s32 768, 768
      %18 = vsyncadd [#allocation3], %s17
      %s19 = sshll.u32 [#allocation2], 4
      %s20 = int_to_ptr.vmem [resolvable:$true] %s19
      %25 = dma.hbm_to_vmem [thread:$0]  %s0, 768, %s20, [#allocation3], 384, 384, 24
    $region5: #{tpu_custom_call.1} parent=1 // pred_fallthru
      _
    // Predicated region
    $region6: #{tpu_custom_call.1} parent=1 // pred_check
      _
    $region7: #{tpu_custom_call.1} parent=1 // pred_check_branch
      %27 = sbr.rel (0) target = $region9
    $region8: #{tpu_custom_call.1} parent=1 // pred_region
      %s29 = ssub.s32 73728, 73728
      %30 = vsyncadd [#allocation6], %s29
      %s31 = sshll.u32 [#allocation5], 4
      %s32 = int_to_ptr.vmem [resolvable:$true] %s31
      %37 = dma.hbm_to_vmem [thread:$0]  %s1, 73728, %s32, [#allocation6], 1536, 1536, 96
    $region9: #{tpu_custom_call.1} parent=1 // pred_fallthru
      _
    // Predicated region
    $region10: #{tpu_custom_call.1} parent=1 // pred_check
      _
    $region11: #{tpu_custom_call.1} parent=1 // pred_check_branch
      %39 = sbr.rel (0) target = $region13
    $region12: #{tpu_custom_call.1} parent=1 // pred_region
      %s41 = ssub.s32 192, 192
      %42 = vsyncadd [#allocation6], %s41
      %s44 = sshll.u32 [#allocation7], 4
      %s45 = int_to_ptr.vmem [resolvable:$true] %s44
      %47 = dma.hbm_to_vmem [thread:$0]  %s2, 192, %s45, [#allocation6]
    $region13: #{tpu_custom_call.1} parent=1 // pred_fallthru
      _
    // Predicated region
    $region14: #{tpu_custom_call.1} parent=1 // pred_check
      _
    $region15: #{tpu_custom_call.1} parent=1 // pred_check_branch
      %49 = sbr.rel (0) target = $region17
    $region16: #{tpu_custom_call.1} parent=1 // pred_region
      %s51 = ssub.s32 73728, 73728
      %52 = vsyncadd [#allocation9], %s51
      %s53 = sshll.u32 [#allocation8], 4
      %s54 = int_to_ptr.vmem [resolvable:$true] %s53
      %59 = dma.hbm_to_vmem [thread:$0]  %s3, 73728, %s54, [#allocation9], 384, 384, 24
    $region17: #{tpu_custom_call.1} parent=1 // pred_fallthru
      _
    // Predicated region
    $region18: #{tpu_custom_call.1} parent=1 // pred_check
      _
    $region19: #{tpu_custom_call.1} parent=1 // pred_check_branch
      %61 = sbr.rel (0) target = $region21
    $region20: #{tpu_custom_call.1} parent=1 // pred_region
      %s63 = ssub.s32 48, 48
      %64 = vsyncadd [#allocation9], %s63
      %s66 = sshll.u32 [#allocation10], 4
      %s67 = int_to_ptr.vmem [resolvable:$true] %s66
      %69 = dma.hbm_to_vmem [thread:$0]  %s4, 48, %s67, [#allocation9]
    $region21: #{tpu_custom_call.1} parent=1 // pred_fallthru
      _
    // Predicated region
    $region22: #{tpu_custom_call.1} parent=1 // pred_check
      _
    $region23: #{tpu_custom_call.1} parent=1 // pred_check_branch
      %71 = sbr.rel (0) target = $region25
    $region24: #{tpu_custom_call.1} parent=1 // pred_region
      %72 = dma.done [#allocation3], 768
    $region25: #{tpu_custom_call.1} parent=1 // pred_fallthru
      _
    // Predicated region
    $region26: #{tpu_custom_call.1} parent=1 // pred_check
      _
    $region27: #{tpu_custom_call.1} parent=1 // pred_check_branch
      %74 = sbr.rel (0) target = $region29
    $region28: #{tpu_custom_call.1} parent=1 // pred_region
      %75 = dma.done [#allocation6], 73728
    $region29: #{tpu_custom_call.1} parent=1 // pred_fallthru
      _
    // Predicated region
    $region30: #{tpu_custom_call.1} parent=1 // pred_check
      _
    $region31: #{tpu_custom_call.1} parent=1 // pred_check_branch
      %77 = sbr.rel (0) target = $region33
    $region32: #{tpu_custom_call.1} parent=1 // pred_region
      %78 = dma.done [#allocation6], 192
    $region33: #{tpu_custom_call.1} parent=1 // pred_fallthru
      _
    // Predicated region
    $region34: #{tpu_custom_call.1} parent=1 // pred_check
      _
    $region35: #{tpu_custom_call.1} parent=1 // pred_check_branch
      %80 = sbr.rel (0) target = $region37
    $region36: #{tpu_custom_call.1} parent=1 // pred_region
      %81 = dma.done [#allocation9], 73728
    $region37: #{tpu_custom_call.1} parent=1 // pred_fallthru
      _
    // Predicated region
    $region38: #{tpu_custom_call.1} parent=1 // pred_check
      _
    $region39: #{tpu_custom_call.1} parent=1 // pred_check_branch
      %83 = sbr.rel (0) target = $region41
    $region40: #{tpu_custom_call.1} parent=1 // pred_region
      %84 = dma.done [#allocation9], 48
    $region41: #{tpu_custom_call.1} parent=1 // pred_fallthru
      _
    %v85 = vld [vmem:[#allocation2] sm:$0xff]
    %v86 = vld [vmem:[#allocation2 + $0x8] sm:$0xff]
    %v87 = vld [vmem:[#allocation2 + $0x10] sm:$0xff]
    %v88 = vld [vmem:[#allocation2 + $0x18] sm:$0xff]
    %v89 = vld [vmem:[#allocation2 + $0x20] sm:$0xff]
    %v90 = vld [vmem:[#allocation2 + $0x28] sm:$0xff]
    %v91 = vld [vmem:[#allocation5] sm:$0xff]
    %v92 = vld [vmem:[#allocation5 + $0x8] sm:$0xff]
    %v93 = vld [vmem:[#allocation5 + $0x10] sm:$0xff]
    %v94 = vld [vmem:[#allocation5 + $0x18] sm:$0xff]
    %v95 = vld [vmem:[#allocation5 + $0x20] sm:$0xff]
    %v96 = vld [vmem:[#allocation5 + $0x28] sm:$0xff]
    %v97 = vld [vmem:[#allocation5 + $0x30] sm:$0xff]
    %v98 = vld [vmem:[#allocation5 + $0x38] sm:$0xff]
    %v99 = vld [vmem:[#allocation5 + $0x40] sm:$0xff]
    %v100 = vld [vmem:[#allocation5 + $0x48] sm:$0xff]
    %v101 = vld [vmem:[#allocation5 + $0x50] sm:$0xff]
    %v102 = vld [vmem:[#allocation5 + $0x58] sm:$0xff]
    %v103 = vld [vmem:[#allocation5 + $0x60] sm:$0xff]
    %v104 = vld [vmem:[#allocation5 + $0x68] sm:$0xff]
    %v105 = vld [vmem:[#allocation5 + $0x70] sm:$0xff]
    %v106 = vld [vmem:[#allocation5 + $0x78] sm:$0xff]
    %v107 = vld [vmem:[#allocation5 + $0x80] sm:$0xff]
    %v108 = vld [vmem:[#allocation5 + $0x88] sm:$0xff]
    %v109 = vld [vmem:[#allocation5 + $0x90] sm:$0xff]
    %v110 = vld [vmem:[#allocation5 + $0x98] sm:$0xff]
    %v111 = vld [vmem:[#allocation5 + $0xa0] sm:$0xff]
    %v112 = vld [vmem:[#allocation5 + $0xa8] sm:$0xff]
    %v113 = vld [vmem:[#allocation5 + $0xb0] sm:$0xff]
    %v114 = vld [vmem:[#allocation5 + $0xb8] sm:$0xff]
    %v115 = vld [vmem:[#allocation5 + $0xc0] sm:$0xff]
    %v116 = vld [vmem:[#allocation5 + $0xc8] sm:$0xff]
    %v117 = vld [vmem:[#allocation5 + $0xd0] sm:$0xff]
    %v118 = vld [vmem:[#allocation5 + $0xd8] sm:$0xff]
    %v119 = vld [vmem:[#allocation5 + $0xe0] sm:$0xff]
    %v120 = vld [vmem:[#allocation5 + $0xe8] sm:$0xff]
    %v121 = vld [vmem:[#allocation5 + $0xf0] sm:$0xff]
    %v122 = vld [vmem:[#allocation5 + $0xf8] sm:$0xff]
    %v123 = vld [vmem:[#allocation5 + $0x100] sm:$0xff]
    %v124 = vld [vmem:[#allocation5 + $0x108] sm:$0xff]
    %v125 = vld [vmem:[#allocation5 + $0x110] sm:$0xff]
    %v126 = vld [vmem:[#allocation5 + $0x118] sm:$0xff]
    %v127 = vld [vmem:[#allocation5 + $0x120] sm:$0xff]
    %v128 = vld [vmem:[#allocation5 + $0x128] sm:$0xff]
    %v129 = vld [vmem:[#allocation5 + $0x130] sm:$0xff]
    %v130 = vld [vmem:[#allocation5 + $0x138] sm:$0xff]
    %v131 = vld [vmem:[#allocation5 + $0x140] sm:$0xff]
    %v132 = vld [vmem:[#allocation5 + $0x148] sm:$0xff]
    %v133 = vld [vmem:[#allocation5 + $0x150] sm:$0xff]
    %v134 = vld [vmem:[#allocation5 + $0x158] sm:$0xff]
    %v135 = vld [vmem:[#allocation5 + $0x160] sm:$0xff]
    %v136 = vld [vmem:[#allocation5 + $0x168] sm:$0xff]
    %v137 = vld [vmem:[#allocation5 + $0x170] sm:$0xff]
    %v138 = vld [vmem:[#allocation5 + $0x178] sm:$0xff]
    %v139 = vld [vmem:[#allocation5 + $0x180] sm:$0xff]
    %v140 = vld [vmem:[#allocation5 + $0x188] sm:$0xff]
    %v141 = vld [vmem:[#allocation5 + $0x190] sm:$0xff]
    %v142 = vld [vmem:[#allocation5 + $0x198] sm:$0xff]
    %v143 = vld [vmem:[#allocation5 + $0x1a0] sm:$0xff]
    %v144 = vld [vmem:[#allocation5 + $0x1a8] sm:$0xff]
    %v145 = vld [vmem:[#allocation5 + $0x1b0] sm:$0xff]
    %v146 = vld [vmem:[#allocation5 + $0x1b8] sm:$0xff]
    %v147 = vld [vmem:[#allocation5 + $0x1c0] sm:$0xff]
    %v148 = vld [vmem:[#allocation5 + $0x1c8] sm:$0xff]
    %v149 = vld [vmem:[#allocation5 + $0x1d0] sm:$0xff]
    %v150 = vld [vmem:[#allocation5 + $0x1d8] sm:$0xff]
    %v151 = vld [vmem:[#allocation5 + $0x1e0] sm:$0xff]
    %v152 = vld [vmem:[#allocation5 + $0x1e8] sm:$0xff]
    %v153 = vld [vmem:[#allocation5 + $0x1f0] sm:$0xff]
    %v154 = vld [vmem:[#allocation5 + $0x1f8] sm:$0xff]
    %v155 = vld [vmem:[#allocation5 + $0x200] sm:$0xff]
    %v156 = vld [vmem:[#allocation5 + $0x208] sm:$0xff]
    %v157 = vld [vmem:[#allocation5 + $0x210] sm:$0xff]
    %v158 = vld [vmem:[#allocation5 + $0x218] sm:$0xff]
    %v159 = vld [vmem:[#allocation5 + $0x220] sm:$0xff]
    %v160 = vld [vmem:[#allocation5 + $0x228] sm:$0xff]
    %v161 = vld [vmem:[#allocation5 + $0x230] sm:$0xff]
    %v162 = vld [vmem:[#allocation5 + $0x238] sm:$0xff]
    %v163 = vld [vmem:[#allocation5 + $0x240] sm:$0xff]
    %v164 = vld [vmem:[#allocation5 + $0x248] sm:$0xff]
    %v165 = vld [vmem:[#allocation5 + $0x250] sm:$0xff]
    %v166 = vld [vmem:[#allocation5 + $0x258] sm:$0xff]
    %v167 = vld [vmem:[#allocation5 + $0x260] sm:$0xff]
    %v168 = vld [vmem:[#allocation5 + $0x268] sm:$0xff]
    %v169 = vld [vmem:[#allocation5 + $0x270] sm:$0xff]
    %v170 = vld [vmem:[#allocation5 + $0x278] sm:$0xff]
    %v171 = vld [vmem:[#allocation5 + $0x280] sm:$0xff]
    %v172 = vld [vmem:[#allocation5 + $0x288] sm:$0xff]
    %v173 = vld [vmem:[#allocation5 + $0x290] sm:$0xff]
    %v174 = vld [vmem:[#allocation5 + $0x298] sm:$0xff]
    %v175 = vld [vmem:[#allocation5 + $0x2a0] sm:$0xff]
    %v176 = vld [vmem:[#allocation5 + $0x2a8] sm:$0xff]
    %v177 = vld [vmem:[#allocation5 + $0x2b0] sm:$0xff]
    %v178 = vld [vmem:[#allocation5 + $0x2b8] sm:$0xff]
    %v179 = vld [vmem:[#allocation5 + $0x2c0] sm:$0xff]
    %v180 = vld [vmem:[#allocation5 + $0x2c8] sm:$0xff]
    %v181 = vld [vmem:[#allocation5 + $0x2d0] sm:$0xff]
    %v182 = vld [vmem:[#allocation5 + $0x2d8] sm:$0xff]
    %v183 = vld [vmem:[#allocation5 + $0x2e0] sm:$0xff]
    %v184 = vld [vmem:[#allocation5 + $0x2e8] sm:$0xff]
    %v185 = vld [vmem:[#allocation5 + $0x2f0] sm:$0xff]
    %v186 = vld [vmem:[#allocation5 + $0x2f8] sm:$0xff]
    %v187 = vld [vmem:[#allocation5 + $0x300] sm:$0xff]
    %v188 = vld [vmem:[#allocation5 + $0x308] sm:$0xff]
    %v189 = vld [vmem:[#allocation5 + $0x310] sm:$0xff]
    %v190 = vld [vmem:[#allocation5 + $0x318] sm:$0xff]
    %v191 = vld [vmem:[#allocation5 + $0x320] sm:$0xff]
    %v192 = vld [vmem:[#allocation5 + $0x328] sm:$0xff]
    %v193 = vld [vmem:[#allocation5 + $0x330] sm:$0xff]
    %v194 = vld [vmem:[#allocation5 + $0x338] sm:$0xff]
    %v195 = vld [vmem:[#allocation5 + $0x340] sm:$0xff]
    %v196 = vld [vmem:[#allocation5 + $0x348] sm:$0xff]
    %v197 = vld [vmem:[#allocation5 + $0x350] sm:$0xff]
    %v198 = vld [vmem:[#allocation5 + $0x358] sm:$0xff]
    %v199 = vld [vmem:[#allocation5 + $0x360] sm:$0xff]
    %v200 = vld [vmem:[#allocation5 + $0x368] sm:$0xff]
    %v201 = vld [vmem:[#allocation5 + $0x370] sm:$0xff]
    %v202 = vld [vmem:[#allocation5 + $0x378] sm:$0xff]
    %v203 = vld [vmem:[#allocation5 + $0x380] sm:$0xff]
    %v204 = vld [vmem:[#allocation5 + $0x388] sm:$0xff]
    %v205 = vld [vmem:[#allocation5 + $0x390] sm:$0xff]
    %v206 = vld [vmem:[#allocation5 + $0x398] sm:$0xff]
    %v207 = vld [vmem:[#allocation5 + $0x3a0] sm:$0xff]
    %v208 = vld [vmem:[#allocation5 + $0x3a8] sm:$0xff]
    %v209 = vld [vmem:[#allocation5 + $0x3b0] sm:$0xff]
    %v210 = vld [vmem:[#allocation5 + $0x3b8] sm:$0xff]
    %v211 = vld [vmem:[#allocation5 + $0x3c0] sm:$0xff]
    %v212 = vld [vmem:[#allocation5 + $0x3c8] sm:$0xff]
    %v213 = vld [vmem:[#allocation5 + $0x3d0] sm:$0xff]
    %v214 = vld [vmem:[#allocation5 + $0x3d8] sm:$0xff]
    %v215 = vld [vmem:[#allocation5 + $0x3e0] sm:$0xff]
    %v216 = vld [vmem:[#allocation5 + $0x3e8] sm:$0xff]
    %v217 = vld [vmem:[#allocation5 + $0x3f0] sm:$0xff]
    %v218 = vld [vmem:[#allocation5 + $0x3f8] sm:$0xff]
    %v219 = vld [vmem:[#allocation5 + $0x400] sm:$0xff]
    %v220 = vld [vmem:[#allocation5 + $0x408] sm:$0xff]
    %v221 = vld [vmem:[#allocation5 + $0x410] sm:$0xff]
    %v222 = vld [vmem:[#allocation5 + $0x418] sm:$0xff]
    %v223 = vld [vmem:[#allocation5 + $0x420] sm:$0xff]
    %v224 = vld [vmem:[#allocation5 + $0x428] sm:$0xff]
    %v225 = vld [vmem:[#allocation5 + $0x430] sm:$0xff]
    %v226 = vld [vmem:[#allocation5 + $0x438] sm:$0xff]
    %v227 = vld [vmem:[#allocation5 + $0x440] sm:$0xff]
    %v228 = vld [vmem:[#allocation5 + $0x448] sm:$0xff]
    %v229 = vld [vmem:[#allocation5 + $0x450] sm:$0xff]
    %v230 = vld [vmem:[#allocation5 + $0x458] sm:$0xff]
    %v231 = vld [vmem:[#allocation5 + $0x460] sm:$0xff]
    %v232 = vld [vmem:[#allocation5 + $0x468] sm:$0xff]
    %v233 = vld [vmem:[#allocation5 + $0x470] sm:$0xff]
    %v234 = vld [vmem:[#allocation5 + $0x478] sm:$0xff]
    %v235 = vld [vmem:[#allocation5 + $0x480] sm:$0xff]
    %v236 = vld [vmem:[#allocation5 + $0x488] sm:$0xff]
    %v237 = vld [vmem:[#allocation5 + $0x490] sm:$0xff]
    %v238 = vld [vmem:[#allocation5 + $0x498] sm:$0xff]
    %v239 = vld [vmem:[#allocation5 + $0x4a0] sm:$0xff]
    %v240 = vld [vmem:[#allocation5 + $0x4a8] sm:$0xff]
    %v241 = vld [vmem:[#allocation5 + $0x4b0] sm:$0xff]
    %v242 = vld [vmem:[#allocation5 + $0x4b8] sm:$0xff]
    %v243 = vld [vmem:[#allocation5 + $0x4c0] sm:$0xff]
    %v244 = vld [vmem:[#allocation5 + $0x4c8] sm:$0xff]
    %v245 = vld [vmem:[#allocation5 + $0x4d0] sm:$0xff]
    %v246 = vld [vmem:[#allocation5 + $0x4d8] sm:$0xff]
    %v247 = vld [vmem:[#allocation5 + $0x4e0] sm:$0xff]
    %v248 = vld [vmem:[#allocation5 + $0x4e8] sm:$0xff]
    %v249 = vld [vmem:[#allocation5 + $0x4f0] sm:$0xff]
    %v250 = vld [vmem:[#allocation5 + $0x4f8] sm:$0xff]
    %v251 = vld [vmem:[#allocation5 + $0x500] sm:$0xff]
    %v252 = vld [vmem:[#allocation5 + $0x508] sm:$0xff]
    %v253 = vld [vmem:[#allocation5 + $0x510] sm:$0xff]
    %v254 = vld [vmem:[#allocation5 + $0x518] sm:$0xff]
    %v255 = vld [vmem:[#allocation5 + $0x520] sm:$0xff]
    %v256 = vld [vmem:[#allocation5 + $0x528] sm:$0xff]
    %v257 = vld [vmem:[#allocation5 + $0x530] sm:$0xff]
    %v258 = vld [vmem:[#allocation5 + $0x538] sm:$0xff]
    %v259 = vld [vmem:[#allocation5 + $0x540] sm:$0xff]
    %v260 = vld [vmem:[#allocation5 + $0x548] sm:$0xff]
    %v261 = vld [vmem:[#allocation5 + $0x550] sm:$0xff]
    %v262 = vld [vmem:[#allocation5 + $0x558] sm:$0xff]
    %v263 = vld [vmem:[#allocation5 + $0x560] sm:$0xff]
    %v264 = vld [vmem:[#allocation5 + $0x568] sm:$0xff]
    %v265 = vld [vmem:[#allocation5 + $0x570] sm:$0xff]
    %v266 = vld [vmem:[#allocation5 + $0x578] sm:$0xff]
    %v267 = vld [vmem:[#allocation5 + $0x580] sm:$0xff]
    %v268 = vld [vmem:[#allocation5 + $0x588] sm:$0xff]
    %v269 = vld [vmem:[#allocation5 + $0x590] sm:$0xff]
    %v270 = vld [vmem:[#allocation5 + $0x598] sm:$0xff]
    %v271 = vld [vmem:[#allocation5 + $0x5a0] sm:$0xff]
    %v272 = vld [vmem:[#allocation5 + $0x5a8] sm:$0xff]
    %v273 = vld [vmem:[#allocation5 + $0x5b0] sm:$0xff]
    %v274 = vld [vmem:[#allocation5 + $0x5b8] sm:$0xff]
    %v275 = vld [vmem:[#allocation5 + $0x5c0] sm:$0xff]
    %v276 = vld [vmem:[#allocation5 + $0x5c8] sm:$0xff]
    %v277 = vld [vmem:[#allocation5 + $0x5d0] sm:$0xff]
    %v278 = vld [vmem:[#allocation5 + $0x5d8] sm:$0xff]
    %v279 = vld [vmem:[#allocation5 + $0x5e0] sm:$0xff]
    %v280 = vld [vmem:[#allocation5 + $0x5e8] sm:$0xff]
    %v281 = vld [vmem:[#allocation5 + $0x5f0] sm:$0xff]
    %v282 = vld [vmem:[#allocation5 + $0x5f8] sm:$0xff]
    %v283 = vld [vmem:[#allocation5 + $0x600] sm:$0xff]
    %v284 = vld [vmem:[#allocation5 + $0x608] sm:$0xff]
    %v285 = vld [vmem:[#allocation5 + $0x610] sm:$0xff]
    %v286 = vld [vmem:[#allocation5 + $0x618] sm:$0xff]
    %v287 = vld [vmem:[#allocation5 + $0x620] sm:$0xff]
    %v288 = vld [vmem:[#allocation5 + $0x628] sm:$0xff]
    %v289 = vld [vmem:[#allocation5 + $0x630] sm:$0xff]
    %v290 = vld [vmem:[#allocation5 + $0x638] sm:$0xff]
    %v291 = vld [vmem:[#allocation5 + $0x640] sm:$0xff]
    %v292 = vld [vmem:[#allocation5 + $0x648] sm:$0xff]
    %v293 = vld [vmem:[#allocation5 + $0x650] sm:$0xff]
    %v294 = vld [vmem:[#allocation5 + $0x658] sm:$0xff]
    %v295 = vld [vmem:[#allocation5 + $0x660] sm:$0xff]
    %v296 = vld [vmem:[#allocation5 + $0x668] sm:$0xff]
    %v297 = vld [vmem:[#allocation5 + $0x670] sm:$0xff]
    %v298 = vld [vmem:[#allocation5 + $0x678] sm:$0xff]
    %v299 = vld [vmem:[#allocation5 + $0x680] sm:$0xff]
    %v300 = vld [vmem:[#allocation5 + $0x688] sm:$0xff]
    %v301 = vld [vmem:[#allocation5 + $0x690] sm:$0xff]
    %v302 = vld [vmem:[#allocation5 + $0x698] sm:$0xff]
    %v303 = vld [vmem:[#allocation5 + $0x6a0] sm:$0xff]
    %v304 = vld [vmem:[#allocation5 + $0x6a8] sm:$0xff]
    %v305 = vld [vmem:[#allocation5 + $0x6b0] sm:$0xff]
    %v306 = vld [vmem:[#allocation5 + $0x6b8] sm:$0xff]
    %v307 = vld [vmem:[#allocation5 + $0x6c0] sm:$0xff]
    %v308 = vld [vmem:[#allocation5 + $0x6c8] sm:$0xff]
    %v309 = vld [vmem:[#allocation5 + $0x6d0] sm:$0xff]
    %v310 = vld [vmem:[#allocation5 + $0x6d8] sm:$0xff]
    %v311 = vld [vmem:[#allocation5 + $0x6e0] sm:$0xff]
    %v312 = vld [vmem:[#allocation5 + $0x6e8] sm:$0xff]
    %v313 = vld [vmem:[#allocation5 + $0x6f0] sm:$0xff]
    %v314 = vld [vmem:[#allocation5 + $0x6f8] sm:$0xff]
    %v315 = vld [vmem:[#allocation5 + $0x700] sm:$0xff]
    %v316 = vld [vmem:[#allocation5 + $0x708] sm:$0xff]
    %v317 = vld [vmem:[#allocation5 + $0x710] sm:$0xff]
    %v318 = vld [vmem:[#allocation5 + $0x718] sm:$0xff]
    %v319 = vld [vmem:[#allocation5 + $0x720] sm:$0xff]
    %v320 = vld [vmem:[#allocation5 + $0x728] sm:$0xff]
    %v321 = vld [vmem:[#allocation5 + $0x730] sm:$0xff]
    %v322 = vld [vmem:[#allocation5 + $0x738] sm:$0xff]
    %v323 = vld [vmem:[#allocation5 + $0x740] sm:$0xff]
    %v324 = vld [vmem:[#allocation5 + $0x748] sm:$0xff]
    %v325 = vld [vmem:[#allocation5 + $0x750] sm:$0xff]
    %v326 = vld [vmem:[#allocation5 + $0x758] sm:$0xff]
    %v327 = vld [vmem:[#allocation5 + $0x760] sm:$0xff]
    %v328 = vld [vmem:[#allocation5 + $0x768] sm:$0xff]
    %v329 = vld [vmem:[#allocation5 + $0x770] sm:$0xff]
    %v330 = vld [vmem:[#allocation5 + $0x778] sm:$0xff]
    %v331 = vld [vmem:[#allocation5 + $0x780] sm:$0xff]
    %v332 = vld [vmem:[#allocation5 + $0x788] sm:$0xff]
    %v333 = vld [vmem:[#allocation5 + $0x790] sm:$0xff]
    %v334 = vld [vmem:[#allocation5 + $0x798] sm:$0xff]
    %v335 = vld [vmem:[#allocation5 + $0x7a0] sm:$0xff]
    %v336 = vld [vmem:[#allocation5 + $0x7a8] sm:$0xff]
    %v337 = vld [vmem:[#allocation5 + $0x7b0] sm:$0xff]
    %v338 = vld [vmem:[#allocation5 + $0x7b8] sm:$0xff]
    %v339 = vld [vmem:[#allocation5 + $0x7c0] sm:$0xff]
    %v340 = vld [vmem:[#allocation5 + $0x7c8] sm:$0xff]
    %v341 = vld [vmem:[#allocation5 + $0x7d0] sm:$0xff]
    %v342 = vld [vmem:[#allocation5 + $0x7d8] sm:$0xff]
    %v343 = vld [vmem:[#allocation5 + $0x7e0] sm:$0xff]
    %v344 = vld [vmem:[#allocation5 + $0x7e8] sm:$0xff]
    %v345 = vld [vmem:[#allocation5 + $0x7f0] sm:$0xff]
    %v346 = vld [vmem:[#allocation5 + $0x7f8] sm:$0xff]
    %v347 = vld [vmem:[#allocation5 + $0x800] sm:$0xff]
    %v348 = vld [vmem:[#allocation5 + $0x808] sm:$0xff]
    %v349 = vld [vmem:[#allocation5 + $0x810] sm:$0xff]
    %v350 = vld [vmem:[#allocation5 + $0x818] sm:$0xff]
    %v351 = vld [vmem:[#allocation5 + $0x820] sm:$0xff]
    %v352 = vld [vmem:[#allocation5 + $0x828] sm:$0xff]
    %v353 = vld [vmem:[#allocation5 + $0x830] sm:$0xff]
    %v354 = vld [vmem:[#allocation5 + $0x838] sm:$0xff]
    %v355 = vld [vmem:[#allocation5 + $0x840] sm:$0xff]
    %v356 = vld [vmem:[#allocation5 + $0x848] sm:$0xff]
    %v357 = vld [vmem:[#allocation5 + $0x850] sm:$0xff]
    %v358 = vld [vmem:[#allocation5 + $0x858] sm:$0xff]
    %v359 = vld [vmem:[#allocation5 + $0x860] sm:$0xff]
    %v360 = vld [vmem:[#allocation5 + $0x868] sm:$0xff]
    %v361 = vld [vmem:[#allocation5 + $0x870] sm:$0xff]
    %v362 = vld [vmem:[#allocation5 + $0x878] sm:$0xff]
    %v363 = vld [vmem:[#allocation5 + $0x880] sm:$0xff]
    %v364 = vld [vmem:[#allocation5 + $0x888] sm:$0xff]
    %v365 = vld [vmem:[#allocation5 + $0x890] sm:$0xff]
    %v366 = vld [vmem:[#allocation5 + $0x898] sm:$0xff]
    %v367 = vld [vmem:[#allocation5 + $0x8a0] sm:$0xff]
    %v368 = vld [vmem:[#allocation5 + $0x8a8] sm:$0xff]
    %v369 = vld [vmem:[#allocation5 + $0x8b0] sm:$0xff]
    %v370 = vld [vmem:[#allocation5 + $0x8b8] sm:$0xff]
    %v371 = vld [vmem:[#allocation5 + $0x8c0] sm:$0xff]
    %v372 = vld [vmem:[#allocation5 + $0x8c8] sm:$0xff]
    %v373 = vld [vmem:[#allocation5 + $0x8d0] sm:$0xff]
    %v374 = vld [vmem:[#allocation5 + $0x8d8] sm:$0xff]
    %v375 = vld [vmem:[#allocation5 + $0x8e0] sm:$0xff]
    %v376 = vld [vmem:[#allocation5 + $0x8e8] sm:$0xff]
    %v377 = vld [vmem:[#allocation5 + $0x8f0] sm:$0xff]
    %v378 = vld [vmem:[#allocation5 + $0x8f8] sm:$0xff]
    %v379 = vld [vmem:[#allocation5 + $0x900] sm:$0xff]
    %v380 = vld [vmem:[#allocation5 + $0x908] sm:$0xff]
    %v381 = vld [vmem:[#allocation5 + $0x910] sm:$0xff]
    %v382 = vld [vmem:[#allocation5 + $0x918] sm:$0xff]
    %v383 = vld [vmem:[#allocation5 + $0x920] sm:$0xff]
    %v384 = vld [vmem:[#allocation5 + $0x928] sm:$0xff]
    %v385 = vld [vmem:[#allocation5 + $0x930] sm:$0xff]
    %v386 = vld [vmem:[#allocation5 + $0x938] sm:$0xff]
    %v387 = vld [vmem:[#allocation5 + $0x940] sm:$0xff]
    %v388 = vld [vmem:[#allocation5 + $0x948] sm:$0xff]
    %v389 = vld [vmem:[#allocation5 + $0x950] sm:$0xff]
    %v390 = vld [vmem:[#allocation5 + $0x958] sm:$0xff]
    %v391 = vld [vmem:[#allocation5 + $0x960] sm:$0xff]
    %v392 = vld [vmem:[#allocation5 + $0x968] sm:$0xff]
    %v393 = vld [vmem:[#allocation5 + $0x970] sm:$0xff]
    %v394 = vld [vmem:[#allocation5 + $0x978] sm:$0xff]
    %v395 = vld [vmem:[#allocation5 + $0x980] sm:$0xff]
    %v396 = vld [vmem:[#allocation5 + $0x988] sm:$0xff]
    %v397 = vld [vmem:[#allocation5 + $0x990] sm:$0xff]
    %v398 = vld [vmem:[#allocation5 + $0x998] sm:$0xff]
    %v399 = vld [vmem:[#allocation5 + $0x9a0] sm:$0xff]
    %v400 = vld [vmem:[#allocation5 + $0x9a8] sm:$0xff]
    %v401 = vld [vmem:[#allocation5 + $0x9b0] sm:$0xff]
    %v402 = vld [vmem:[#allocation5 + $0x9b8] sm:$0xff]
    %v403 = vld [vmem:[#allocation5 + $0x9c0] sm:$0xff]
    %v404 = vld [vmem:[#allocation5 + $0x9c8] sm:$0xff]
    %v405 = vld [vmem:[#allocation5 + $0x9d0] sm:$0xff]
    %v406 = vld [vmem:[#allocation5 + $0x9d8] sm:$0xff]
    %v407 = vld [vmem:[#allocation5 + $0x9e0] sm:$0xff]
    %v408 = vld [vmem:[#allocation5 + $0x9e8] sm:$0xff]
    %v409 = vld [vmem:[#allocation5 + $0x9f0] sm:$0xff]
    %v410 = vld [vmem:[#allocation5 + $0x9f8] sm:$0xff]
    %v411 = vld [vmem:[#allocation5 + $0xa00] sm:$0xff]
    %v412 = vld [vmem:[#allocation5 + $0xa08] sm:$0xff]
    %v413 = vld [vmem:[#allocation5 + $0xa10] sm:$0xff]
    %v414 = vld [vmem:[#allocation5 + $0xa18] sm:$0xff]
    %v415 = vld [vmem:[#allocation5 + $0xa20] sm:$0xff]
    %v416 = vld [vmem:[#allocation5 + $0xa28] sm:$0xff]
    %v417 = vld [vmem:[#allocation5 + $0xa30] sm:$0xff]
    %v418 = vld [vmem:[#allocation5 + $0xa38] sm:$0xff]
    %v419 = vld [vmem:[#allocation5 + $0xa40] sm:$0xff]
    %v420 = vld [vmem:[#allocation5 + $0xa48] sm:$0xff]
    %v421 = vld [vmem:[#allocation5 + $0xa50] sm:$0xff]
    %v422 = vld [vmem:[#allocation5 + $0xa58] sm:$0xff]
    %v423 = vld [vmem:[#allocation5 + $0xa60] sm:$0xff]
    %v424 = vld [vmem:[#allocation5 + $0xa68] sm:$0xff]
    %v425 = vld [vmem:[#allocation5 + $0xa70] sm:$0xff]
    %v426 = vld [vmem:[#allocation5 + $0xa78] sm:$0xff]
    %v427 = vld [vmem:[#allocation5 + $0xa80] sm:$0xff]
    %v428 = vld [vmem:[#allocation5 + $0xa88] sm:$0xff]
    %v429 = vld [vmem:[#allocation5 + $0xa90] sm:$0xff]
    %v430 = vld [vmem:[#allocation5 + $0xa98] sm:$0xff]
    %v431 = vld [vmem:[#allocation5 + $0xaa0] sm:$0xff]
    %v432 = vld [vmem:[#allocation5 + $0xaa8] sm:$0xff]
    %v433 = vld [vmem:[#allocation5 + $0xab0] sm:$0xff]
    %v434 = vld [vmem:[#allocation5 + $0xab8] sm:$0xff]
    %v435 = vld [vmem:[#allocation5 + $0xac0] sm:$0xff]
    %v436 = vld [vmem:[#allocation5 + $0xac8] sm:$0xff]
    %v437 = vld [vmem:[#allocation5 + $0xad0] sm:$0xff]
    %v438 = vld [vmem:[#allocation5 + $0xad8] sm:$0xff]
    %v439 = vld [vmem:[#allocation5 + $0xae0] sm:$0xff]
    %v440 = vld [vmem:[#allocation5 + $0xae8] sm:$0xff]
    %v441 = vld [vmem:[#allocation5 + $0xaf0] sm:$0xff]
    %v442 = vld [vmem:[#allocation5 + $0xaf8] sm:$0xff]
    %v443 = vld [vmem:[#allocation5 + $0xb00] sm:$0xff]
    %v444 = vld [vmem:[#allocation5 + $0xb08] sm:$0xff]
    %v445 = vld [vmem:[#allocation5 + $0xb10] sm:$0xff]
    %v446 = vld [vmem:[#allocation5 + $0xb18] sm:$0xff]
    %v447 = vld [vmem:[#allocation5 + $0xb20] sm:$0xff]
    %v448 = vld [vmem:[#allocation5 + $0xb28] sm:$0xff]
    %v449 = vld [vmem:[#allocation5 + $0xb30] sm:$0xff]
    %v450 = vld [vmem:[#allocation5 + $0xb38] sm:$0xff]
    %v451 = vld [vmem:[#allocation5 + $0xb40] sm:$0xff]
    %v452 = vld [vmem:[#allocation5 + $0xb48] sm:$0xff]
    %v453 = vld [vmem:[#allocation5 + $0xb50] sm:$0xff]
    %v454 = vld [vmem:[#allocation5 + $0xb58] sm:$0xff]
    %v455 = vld [vmem:[#allocation5 + $0xb60] sm:$0xff]
    %v456 = vld [vmem:[#allocation5 + $0xb68] sm:$0xff]
    %v457 = vld [vmem:[#allocation5 + $0xb70] sm:$0xff]
    %v458 = vld [vmem:[#allocation5 + $0xb78] sm:$0xff]
    %v459 = vld [vmem:[#allocation5 + $0xb80] sm:$0xff]
    %v460 = vld [vmem:[#allocation5 + $0xb88] sm:$0xff]
    %v461 = vld [vmem:[#allocation5 + $0xb90] sm:$0xff]
    %v462 = vld [vmem:[#allocation5 + $0xb98] sm:$0xff]
    %v463 = vld [vmem:[#allocation5 + $0xba0] sm:$0xff]
    %v464 = vld [vmem:[#allocation5 + $0xba8] sm:$0xff]
    %v465 = vld [vmem:[#allocation5 + $0xbb0] sm:$0xff]
    %v466 = vld [vmem:[#allocation5 + $0xbb8] sm:$0xff]
    %v467 = vld [vmem:[#allocation5 + $0xbc0] sm:$0xff]
    %v468 = vld [vmem:[#allocation5 + $0xbc8] sm:$0xff]
    %v469 = vld [vmem:[#allocation5 + $0xbd0] sm:$0xff]
    %v470 = vld [vmem:[#allocation5 + $0xbd8] sm:$0xff]
    %v471 = vld [vmem:[#allocation5 + $0xbe0] sm:$0xff]
    %v472 = vld [vmem:[#allocation5 + $0xbe8] sm:$0xff]
    %v473 = vld [vmem:[#allocation5 + $0xbf0] sm:$0xff]
    %v474 = vld [vmem:[#allocation5 + $0xbf8] sm:$0xff]
    %v475 = vld [vmem:[#allocation5 + $0xc00] sm:$0xff]
    %v476 = vld [vmem:[#allocation5 + $0xc08] sm:$0xff]
    %v477 = vld [vmem:[#allocation5 + $0xc10] sm:$0xff]
    %v478 = vld [vmem:[#allocation5 + $0xc18] sm:$0xff]
    %v479 = vld [vmem:[#allocation5 + $0xc20] sm:$0xff]
    %v480 = vld [vmem:[#allocation5 + $0xc28] sm:$0xff]
    %v481 = vld [vmem:[#allocation5 + $0xc30] sm:$0xff]
    %v482 = vld [vmem:[#allocation5 + $0xc38] sm:$0xff]
    %v483 = vld [vmem:[#allocation5 + $0xc40] sm:$0xff]
    %v484 = vld [vmem:[#allocation5 + $0xc48] sm:$0xff]
    %v485 = vld [vmem:[#allocation5 + $0xc50] sm:$0xff]
    %v486 = vld [vmem:[#allocation5 + $0xc58] sm:$0xff]
    %v487 = vld [vmem:[#allocation5 + $0xc60] sm:$0xff]
    %v488 = vld [vmem:[#allocation5 + $0xc68] sm:$0xff]
    %v489 = vld [vmem:[#allocation5 + $0xc70] sm:$0xff]
    %v490 = vld [vmem:[#allocation5 + $0xc78] sm:$0xff]
    %v491 = vld [vmem:[#allocation5 + $0xc80] sm:$0xff]
    %v492 = vld [vmem:[#allocation5 + $0xc88] sm:$0xff]
    %v493 = vld [vmem:[#allocation5 + $0xc90] sm:$0xff]
    %v494 = vld [vmem:[#allocation5 + $0xc98] sm:$0xff]
    %v495 = vld [vmem:[#allocation5 + $0xca0] sm:$0xff]
    %v496 = vld [vmem:[#allocation5 + $0xca8] sm:$0xff]
    %v497 = vld [vmem:[#allocation5 + $0xcb0] sm:$0xff]
    %v498 = vld [vmem:[#allocation5 + $0xcb8] sm:$0xff]
    %v499 = vld [vmem:[#allocation5 + $0xcc0] sm:$0xff]
    %v500 = vld [vmem:[#allocation5 + $0xcc8] sm:$0xff]
    %v501 = vld [vmem:[#allocation5 + $0xcd0] sm:$0xff]
    %v502 = vld [vmem:[#allocation5 + $0xcd8] sm:$0xff]
    %v503 = vld [vmem:[#allocation5 + $0xce0] sm:$0xff]
    %v504 = vld [vmem:[#allocation5 + $0xce8] sm:$0xff]
    %v505 = vld [vmem:[#allocation5 + $0xcf0] sm:$0xff]
    %v506 = vld [vmem:[#allocation5 + $0xcf8] sm:$0xff]
    %v507 = vld [vmem:[#allocation5 + $0xd00] sm:$0xff]
    %v508 = vld [vmem:[#allocation5 + $0xd08] sm:$0xff]
    %v509 = vld [vmem:[#allocation5 + $0xd10] sm:$0xff]
    %v510 = vld [vmem:[#allocation5 + $0xd18] sm:$0xff]
    %v511 = vld [vmem:[#allocation5 + $0xd20] sm:$0xff]
    %v512 = vld [vmem:[#allocation5 + $0xd28] sm:$0xff]
    %v513 = vld [vmem:[#allocation5 + $0xd30] sm:$0xff]
    %v514 = vld [vmem:[#allocation5 + $0xd38] sm:$0xff]
    %v515 = vld [vmem:[#allocation5 + $0xd40] sm:$0xff]
    %v516 = vld [vmem:[#allocation5 + $0xd48] sm:$0xff]
    %v517 = vld [vmem:[#allocation5 + $0xd50] sm:$0xff]
    %v518 = vld [vmem:[#allocation5 + $0xd58] sm:$0xff]
    %v519 = vld [vmem:[#allocation5 + $0xd60] sm:$0xff]
    %v520 = vld [vmem:[#allocation5 + $0xd68] sm:$0xff]
    %v521 = vld [vmem:[#allocation5 + $0xd70] sm:$0xff]
    %v522 = vld [vmem:[#allocation5 + $0xd78] sm:$0xff]
    %v523 = vld [vmem:[#allocation5 + $0xd80] sm:$0xff]
    %v524 = vld [vmem:[#allocation5 + $0xd88] sm:$0xff]
    %v525 = vld [vmem:[#allocation5 + $0xd90] sm:$0xff]
    %v526 = vld [vmem:[#allocation5 + $0xd98] sm:$0xff]
    %v527 = vld [vmem:[#allocation5 + $0xda0] sm:$0xff]
    %v528 = vld [vmem:[#allocation5 + $0xda8] sm:$0xff]
    %v529 = vld [vmem:[#allocation5 + $0xdb0] sm:$0xff]
    %v530 = vld [vmem:[#allocation5 + $0xdb8] sm:$0xff]
    %v531 = vld [vmem:[#allocation5 + $0xdc0] sm:$0xff]
    %v532 = vld [vmem:[#allocation5 + $0xdc8] sm:$0xff]
    %v533 = vld [vmem:[#allocation5 + $0xdd0] sm:$0xff]
    %v534 = vld [vmem:[#allocation5 + $0xdd8] sm:$0xff]
    %v535 = vld [vmem:[#allocation5 + $0xde0] sm:$0xff]
    %v536 = vld [vmem:[#allocation5 + $0xde8] sm:$0xff]
    %v537 = vld [vmem:[#allocation5 + $0xdf0] sm:$0xff]
    %v538 = vld [vmem:[#allocation5 + $0xdf8] sm:$0xff]
    %v539 = vld [vmem:[#allocation5 + $0xe00] sm:$0xff]
    %v540 = vld [vmem:[#allocation5 + $0xe08] sm:$0xff]
    %v541 = vld [vmem:[#allocation5 + $0xe10] sm:$0xff]
    %v542 = vld [vmem:[#allocation5 + $0xe18] sm:$0xff]
    %v543 = vld [vmem:[#allocation5 + $0xe20] sm:$0xff]
    %v544 = vld [vmem:[#allocation5 + $0xe28] sm:$0xff]
    %v545 = vld [vmem:[#allocation5 + $0xe30] sm:$0xff]
    %v546 = vld [vmem:[#allocation5 + $0xe38] sm:$0xff]
    %v547 = vld [vmem:[#allocation5 + $0xe40] sm:$0xff]
    %v548 = vld [vmem:[#allocation5 + $0xe48] sm:$0xff]
    %v549 = vld [vmem:[#allocation5 + $0xe50] sm:$0xff]
    %v550 = vld [vmem:[#allocation5 + $0xe58] sm:$0xff]
    %v551 = vld [vmem:[#allocation5 + $0xe60] sm:$0xff]
    %v552 = vld [vmem:[#allocation5 + $0xe68] sm:$0xff]
    %v553 = vld [vmem:[#allocation5 + $0xe70] sm:$0xff]
    %v554 = vld [vmem:[#allocation5 + $0xe78] sm:$0xff]
    %v555 = vld [vmem:[#allocation5 + $0xe80] sm:$0xff]
    %v556 = vld [vmem:[#allocation5 + $0xe88] sm:$0xff]
    %v557 = vld [vmem:[#allocation5 + $0xe90] sm:$0xff]
    %v558 = vld [vmem:[#allocation5 + $0xe98] sm:$0xff]
    %v559 = vld [vmem:[#allocation5 + $0xea0] sm:$0xff]
    %v560 = vld [vmem:[#allocation5 + $0xea8] sm:$0xff]
    %v561 = vld [vmem:[#allocation5 + $0xeb0] sm:$0xff]
    %v562 = vld [vmem:[#allocation5 + $0xeb8] sm:$0xff]
    %v563 = vld [vmem:[#allocation5 + $0xec0] sm:$0xff]
    %v564 = vld [vmem:[#allocation5 + $0xec8] sm:$0xff]
    %v565 = vld [vmem:[#allocation5 + $0xed0] sm:$0xff]
    %v566 = vld [vmem:[#allocation5 + $0xed8] sm:$0xff]
    %v567 = vld [vmem:[#allocation5 + $0xee0] sm:$0xff]
    %v568 = vld [vmem:[#allocation5 + $0xee8] sm:$0xff]
    %v569 = vld [vmem:[#allocation5 + $0xef0] sm:$0xff]
    %v570 = vld [vmem:[#allocation5 + $0xef8] sm:$0xff]
    %v571 = vld [vmem:[#allocation5 + $0xf00] sm:$0xff]
    %v572 = vld [vmem:[#allocation5 + $0xf08] sm:$0xff]
    %v573 = vld [vmem:[#allocation5 + $0xf10] sm:$0xff]
    %v574 = vld [vmem:[#allocation5 + $0xf18] sm:$0xff]
    %v575 = vld [vmem:[#allocation5 + $0xf20] sm:$0xff]
    %v576 = vld [vmem:[#allocation5 + $0xf28] sm:$0xff]
    %v577 = vld [vmem:[#allocation5 + $0xf30] sm:$0xff]
    %v578 = vld [vmem:[#allocation5 + $0xf38] sm:$0xff]
    %v579 = vld [vmem:[#allocation5 + $0xf40] sm:$0xff]
    %v580 = vld [vmem:[#allocation5 + $0xf48] sm:$0xff]
    %v581 = vld [vmem:[#allocation5 + $0xf50] sm:$0xff]
    %v582 = vld [vmem:[#allocation5 + $0xf58] sm:$0xff]
    %v583 = vld [vmem:[#allocation5 + $0xf60] sm:$0xff]
    %v584 = vld [vmem:[#allocation5 + $0xf68] sm:$0xff]
    %v585 = vld [vmem:[#allocation5 + $0xf70] sm:$0xff]
    %v586 = vld [vmem:[#allocation5 + $0xf78] sm:$0xff]
    %v587 = vld [vmem:[#allocation5 + $0xf80] sm:$0xff]
    %v588 = vld [vmem:[#allocation5 + $0xf88] sm:$0xff]
    %v589 = vld [vmem:[#allocation5 + $0xf90] sm:$0xff]
    %v590 = vld [vmem:[#allocation5 + $0xf98] sm:$0xff]
    %v591 = vld [vmem:[#allocation5 + $0xfa0] sm:$0xff]
    %v592 = vld [vmem:[#allocation5 + $0xfa8] sm:$0xff]
    %v593 = vld [vmem:[#allocation5 + $0xfb0] sm:$0xff]
    %v594 = vld [vmem:[#allocation5 + $0xfb8] sm:$0xff]
    %v595 = vld [vmem:[#allocation5 + $0xfc0] sm:$0xff]
    %v596 = vld [vmem:[#allocation5 + $0xfc8] sm:$0xff]
    %v597 = vld [vmem:[#allocation5 + $0xfd0] sm:$0xff]
    %v598 = vld [vmem:[#allocation5 + $0xfd8] sm:$0xff]
    %v599 = vld [vmem:[#allocation5 + $0xfe0] sm:$0xff]
    %v600 = vld [vmem:[#allocation5 + $0xfe8] sm:$0xff]
    %v601 = vld [vmem:[#allocation5 + $0xff0] sm:$0xff]
    %v602 = vld [vmem:[#allocation5 + $0xff8] sm:$0xff]
    %v603 = vld [vmem:[#allocation5 + $0x1000] sm:$0xff]
    %v604 = vld [vmem:[#allocation5 + $0x1008] sm:$0xff]
    %v605 = vld [vmem:[#allocation5 + $0x1010] sm:$0xff]
    %v606 = vld [vmem:[#allocation5 + $0x1018] sm:$0xff]
    %v607 = vld [vmem:[#allocation5 + $0x1020] sm:$0xff]
    %v608 = vld [vmem:[#allocation5 + $0x1028] sm:$0xff]
    %v609 = vld [vmem:[#allocation5 + $0x1030] sm:$0xff]
    %v610 = vld [vmem:[#allocation5 + $0x1038] sm:$0xff]
    %v611 = vld [vmem:[#allocation5 + $0x1040] sm:$0xff]
    %v612 = vld [vmem:[#allocation5 + $0x1048] sm:$0xff]
    %v613 = vld [vmem:[#allocation5 + $0x1050] sm:$0xff]
    %v614 = vld [vmem:[#allocation5 + $0x1058] sm:$0xff]
    %v615 = vld [vmem:[#allocation5 + $0x1060] sm:$0xff]
    %v616 = vld [vmem:[#allocation5 + $0x1068] sm:$0xff]
    %v617 = vld [vmem:[#allocation5 + $0x1070] sm:$0xff]
    %v618 = vld [vmem:[#allocation5 + $0x1078] sm:$0xff]
    %v619 = vld [vmem:[#allocation5 + $0x1080] sm:$0xff]
    %v620 = vld [vmem:[#allocation5 + $0x1088] sm:$0xff]
    %v621 = vld [vmem:[#allocation5 + $0x1090] sm:$0xff]
    %v622 = vld [vmem:[#allocation5 + $0x1098] sm:$0xff]
    %v623 = vld [vmem:[#allocation5 + $0x10a0] sm:$0xff]
    %v624 = vld [vmem:[#allocation5 + $0x10a8] sm:$0xff]
    %v625 = vld [vmem:[#allocation5 + $0x10b0] sm:$0xff]
    %v626 = vld [vmem:[#allocation5 + $0x10b8] sm:$0xff]
    %v627 = vld [vmem:[#allocation5 + $0x10c0] sm:$0xff]
    %v628 = vld [vmem:[#allocation5 + $0x10c8] sm:$0xff]
    %v629 = vld [vmem:[#allocation5 + $0x10d0] sm:$0xff]
    %v630 = vld [vmem:[#allocation5 + $0x10d8] sm:$0xff]
    %v631 = vld [vmem:[#allocation5 + $0x10e0] sm:$0xff]
    %v632 = vld [vmem:[#allocation5 + $0x10e8] sm:$0xff]
    %v633 = vld [vmem:[#allocation5 + $0x10f0] sm:$0xff]
    %v634 = vld [vmem:[#allocation5 + $0x10f8] sm:$0xff]
    %v635 = vld [vmem:[#allocation5 + $0x1100] sm:$0xff]
    %v636 = vld [vmem:[#allocation5 + $0x1108] sm:$0xff]
    %v637 = vld [vmem:[#allocation5 + $0x1110] sm:$0xff]
    %v638 = vld [vmem:[#allocation5 + $0x1118] sm:$0xff]
    %v639 = vld [vmem:[#allocation5 + $0x1120] sm:$0xff]
    %v640 = vld [vmem:[#allocation5 + $0x1128] sm:$0xff]
    %v641 = vld [vmem:[#allocation5 + $0x1130] sm:$0xff]
    %v642 = vld [vmem:[#allocation5 + $0x1138] sm:$0xff]
    %v643 = vld [vmem:[#allocation5 + $0x1140] sm:$0xff]
    %v644 = vld [vmem:[#allocation5 + $0x1148] sm:$0xff]
    %v645 = vld [vmem:[#allocation5 + $0x1150] sm:$0xff]
    %v646 = vld [vmem:[#allocation5 + $0x1158] sm:$0xff]
    %v647 = vld [vmem:[#allocation5 + $0x1160] sm:$0xff]
    %v648 = vld [vmem:[#allocation5 + $0x1168] sm:$0xff]
    %v649 = vld [vmem:[#allocation5 + $0x1170] sm:$0xff]
    %v650 = vld [vmem:[#allocation5 + $0x1178] sm:$0xff]
    %v651 = vld [vmem:[#allocation5 + $0x1180] sm:$0xff]
    %v652 = vld [vmem:[#allocation5 + $0x1188] sm:$0xff]
    %v653 = vld [vmem:[#allocation5 + $0x1190] sm:$0xff]
    %v654 = vld [vmem:[#allocation5 + $0x1198] sm:$0xff]
    %v655 = vld [vmem:[#allocation5 + $0x11a0] sm:$0xff]
    %v656 = vld [vmem:[#allocation5 + $0x11a8] sm:$0xff]
    %v657 = vld [vmem:[#allocation5 + $0x11b0] sm:$0xff]
    %v658 = vld [vmem:[#allocation5 + $0x11b8] sm:$0xff]
    %v659 = vld [vmem:[#allocation5 + $0x11c0] sm:$0xff]
    %v660 = vld [vmem:[#allocation5 + $0x11c8] sm:$0xff]
    %v661 = vld [vmem:[#allocation5 + $0x11d0] sm:$0xff]
    %v662 = vld [vmem:[#allocation5 + $0x11d8] sm:$0xff]
    %v663 = vld [vmem:[#allocation5 + $0x11e0] sm:$0xff]
    %v664 = vld [vmem:[#allocation5 + $0x11e8] sm:$0xff]
    %v665 = vld [vmem:[#allocation5 + $0x11f0] sm:$0xff]
    %v666 = vld [vmem:[#allocation5 + $0x11f8] sm:$0xff]
    %v667 = vld [vmem:[#allocation8] sm:$0xff]
    %v668 = vld [vmem:[#allocation8 + $0x8] sm:$0xff]
    %v669 = vld [vmem:[#allocation8 + $0x10] sm:$0xff]
    %v670 = vld [vmem:[#allocation8 + $0x18] sm:$0xff]
    %v671 = vld [vmem:[#allocation8 + $0x20] sm:$0xff]
    %v672 = vld [vmem:[#allocation8 + $0x28] sm:$0xff]
    %v673 = vld [vmem:[#allocation8 + $0x30] sm:$0xff]
    %v674 = vld [vmem:[#allocation8 + $0x38] sm:$0xff]
    %v675 = vld [vmem:[#allocation8 + $0x40] sm:$0xff]
    %v676 = vld [vmem:[#allocation8 + $0x48] sm:$0xff]
    %v677 = vld [vmem:[#allocation8 + $0x50] sm:$0xff]
    %v678 = vld [vmem:[#allocation8 + $0x58] sm:$0xff]
    %v679 = vld [vmem:[#allocation8 + $0x60] sm:$0xff]
    %v680 = vld [vmem:[#allocation8 + $0x68] sm:$0xff]
    %v681 = vld [vmem:[#allocation8 + $0x70] sm:$0xff]
    %v682 = vld [vmem:[#allocation8 + $0x78] sm:$0xff]
    %v683 = vld [vmem:[#allocation8 + $0x80] sm:$0xff]
    %v684 = vld [vmem:[#allocation8 + $0x88] sm:$0xff]
    %v685 = vld [vmem:[#allocation8 + $0x90] sm:$0xff]
    %v686 = vld [vmem:[#allocation8 + $0x98] sm:$0xff]
    %v687 = vld [vmem:[#allocation8 + $0xa0] sm:$0xff]
    %v688 = vld [vmem:[#allocation8 + $0xa8] sm:$0xff]
    %v689 = vld [vmem:[#allocation8 + $0xb0] sm:$0xff]
    %v690 = vld [vmem:[#allocation8 + $0xb8] sm:$0xff]
    %v691 = vld [vmem:[#allocation8 + $0xc0] sm:$0xff]
    %v692 = vld [vmem:[#allocation8 + $0xc8] sm:$0xff]
    %v693 = vld [vmem:[#allocation8 + $0xd0] sm:$0xff]
    %v694 = vld [vmem:[#allocation8 + $0xd8] sm:$0xff]
    %v695 = vld [vmem:[#allocation8 + $0xe0] sm:$0xff]
    %v696 = vld [vmem:[#allocation8 + $0xe8] sm:$0xff]
    %v697 = vld [vmem:[#allocation8 + $0xf0] sm:$0xff]
    %v698 = vld [vmem:[#allocation8 + $0xf8] sm:$0xff]
    %v699 = vld [vmem:[#allocation8 + $0x100] sm:$0xff]
    %v700 = vld [vmem:[#allocation8 + $0x108] sm:$0xff]
    %v701 = vld [vmem:[#allocation8 + $0x110] sm:$0xff]
    %v702 = vld [vmem:[#allocation8 + $0x118] sm:$0xff]
    %v703 = vld [vmem:[#allocation8 + $0x120] sm:$0xff]
    %v704 = vld [vmem:[#allocation8 + $0x128] sm:$0xff]
    %v705 = vld [vmem:[#allocation8 + $0x130] sm:$0xff]
    %v706 = vld [vmem:[#allocation8 + $0x138] sm:$0xff]
    %v707 = vld [vmem:[#allocation8 + $0x140] sm:$0xff]
    %v708 = vld [vmem:[#allocation8 + $0x148] sm:$0xff]
    %v709 = vld [vmem:[#allocation8 + $0x150] sm:$0xff]
    %v710 = vld [vmem:[#allocation8 + $0x158] sm:$0xff]
    %v711 = vld [vmem:[#allocation8 + $0x160] sm:$0xff]
    %v712 = vld [vmem:[#allocation8 + $0x168] sm:$0xff]
    %v713 = vld [vmem:[#allocation8 + $0x170] sm:$0xff]
    %v714 = vld [vmem:[#allocation8 + $0x178] sm:$0xff]
    %v715 = vld [vmem:[#allocation8 + $0x180] sm:$0xff]
    %v716 = vld [vmem:[#allocation8 + $0x188] sm:$0xff]
    %v717 = vld [vmem:[#allocation8 + $0x190] sm:$0xff]
    %v718 = vld [vmem:[#allocation8 + $0x198] sm:$0xff]
    %v719 = vld [vmem:[#allocation8 + $0x1a0] sm:$0xff]
    %v720 = vld [vmem:[#allocation8 + $0x1a8] sm:$0xff]
    %v721 = vld [vmem:[#allocation8 + $0x1b0] sm:$0xff]
    %v722 = vld [vmem:[#allocation8 + $0x1b8] sm:$0xff]
    %v723 = vld [vmem:[#allocation8 + $0x1c0] sm:$0xff]
    %v724 = vld [vmem:[#allocation8 + $0x1c8] sm:$0xff]
    %v725 = vld [vmem:[#allocation8 + $0x1d0] sm:$0xff]
    %v726 = vld [vmem:[#allocation8 + $0x1d8] sm:$0xff]
    %v727 = vld [vmem:[#allocation8 + $0x1e0] sm:$0xff]
    %v728 = vld [vmem:[#allocation8 + $0x1e8] sm:$0xff]
    %v729 = vld [vmem:[#allocation8 + $0x1f0] sm:$0xff]
    %v730 = vld [vmem:[#allocation8 + $0x1f8] sm:$0xff]
    %v731 = vld [vmem:[#allocation8 + $0x200] sm:$0xff]
    %v732 = vld [vmem:[#allocation8 + $0x208] sm:$0xff]
    %v733 = vld [vmem:[#allocation8 + $0x210] sm:$0xff]
    %v734 = vld [vmem:[#allocation8 + $0x218] sm:$0xff]
    %v735 = vld [vmem:[#allocation8 + $0x220] sm:$0xff]
    %v736 = vld [vmem:[#allocation8 + $0x228] sm:$0xff]
    %v737 = vld [vmem:[#allocation8 + $0x230] sm:$0xff]
    %v738 = vld [vmem:[#allocation8 + $0x238] sm:$0xff]
    %v739 = vld [vmem:[#allocation8 + $0x240] sm:$0xff]
    %v740 = vld [vmem:[#allocation8 + $0x248] sm:$0xff]
    %v741 = vld [vmem:[#allocation8 + $0x250] sm:$0xff]
    %v742 = vld [vmem:[#allocation8 + $0x258] sm:$0xff]
    %v743 = vld [vmem:[#allocation8 + $0x260] sm:$0xff]
    %v744 = vld [vmem:[#allocation8 + $0x268] sm:$0xff]
    %v745 = vld [vmem:[#allocation8 + $0x270] sm:$0xff]
    %v746 = vld [vmem:[#allocation8 + $0x278] sm:$0xff]
    %v747 = vld [vmem:[#allocation8 + $0x280] sm:$0xff]
    %v748 = vld [vmem:[#allocation8 + $0x288] sm:$0xff]
    %v749 = vld [vmem:[#allocation8 + $0x290] sm:$0xff]
    %v750 = vld [vmem:[#allocation8 + $0x298] sm:$0xff]
    %v751 = vld [vmem:[#allocation8 + $0x2a0] sm:$0xff]
    %v752 = vld [vmem:[#allocation8 + $0x2a8] sm:$0xff]
    %v753 = vld [vmem:[#allocation8 + $0x2b0] sm:$0xff]
    %v754 = vld [vmem:[#allocation8 + $0x2b8] sm:$0xff]
    %v755 = vld [vmem:[#allocation8 + $0x2c0] sm:$0xff]
    %v756 = vld [vmem:[#allocation8 + $0x2c8] sm:$0xff]
    %v757 = vld [vmem:[#allocation8 + $0x2d0] sm:$0xff]
    %v758 = vld [vmem:[#allocation8 + $0x2d8] sm:$0xff]
    %v759 = vld [vmem:[#allocation8 + $0x2e0] sm:$0xff]
    %v760 = vld [vmem:[#allocation8 + $0x2e8] sm:$0xff]
    %v761 = vld [vmem:[#allocation8 + $0x2f0] sm:$0xff]
    %v762 = vld [vmem:[#allocation8 + $0x2f8] sm:$0xff]
    %v763 = vld [vmem:[#allocation8 + $0x300] sm:$0xff]
    %v764 = vld [vmem:[#allocation8 + $0x308] sm:$0xff]
    %v765 = vld [vmem:[#allocation8 + $0x310] sm:$0xff]
    %v766 = vld [vmem:[#allocation8 + $0x318] sm:$0xff]
    %v767 = vld [vmem:[#allocation8 + $0x320] sm:$0xff]
    %v768 = vld [vmem:[#allocation8 + $0x328] sm:$0xff]
    %v769 = vld [vmem:[#allocation8 + $0x330] sm:$0xff]
    %v770 = vld [vmem:[#allocation8 + $0x338] sm:$0xff]
    %v771 = vld [vmem:[#allocation8 + $0x340] sm:$0xff]
    %v772 = vld [vmem:[#allocation8 + $0x348] sm:$0xff]
    %v773 = vld [vmem:[#allocation8 + $0x350] sm:$0xff]
    %v774 = vld [vmem:[#allocation8 + $0x358] sm:$0xff]
    %v775 = vld [vmem:[#allocation8 + $0x360] sm:$0xff]
    %v776 = vld [vmem:[#allocation8 + $0x368] sm:$0xff]
    %v777 = vld [vmem:[#allocation8 + $0x370] sm:$0xff]
    %v778 = vld [vmem:[#allocation8 + $0x378] sm:$0xff]
    %v779 = vld [vmem:[#allocation8 + $0x380] sm:$0xff]
    %v780 = vld [vmem:[#allocation8 + $0x388] sm:$0xff]
    %v781 = vld [vmem:[#allocation8 + $0x390] sm:$0xff]
    %v782 = vld [vmem:[#allocation8 + $0x398] sm:$0xff]
    %v783 = vld [vmem:[#allocation8 + $0x3a0] sm:$0xff]
    %v784 = vld [vmem:[#allocation8 + $0x3a8] sm:$0xff]
    %v785 = vld [vmem:[#allocation8 + $0x3b0] sm:$0xff]
    %v786 = vld [vmem:[#allocation8 + $0x3b8] sm:$0xff]
    %v787 = vld [vmem:[#allocation8 + $0x3c0] sm:$0xff]
    %v788 = vld [vmem:[#allocation8 + $0x3c8] sm:$0xff]
    %v789 = vld [vmem:[#allocation8 + $0x3d0] sm:$0xff]
    %v790 = vld [vmem:[#allocation8 + $0x3d8] sm:$0xff]
    %v791 = vld [vmem:[#allocation8 + $0x3e0] sm:$0xff]
    %v792 = vld [vmem:[#allocation8 + $0x3e8] sm:$0xff]
    %v793 = vld [vmem:[#allocation8 + $0x3f0] sm:$0xff]
    %v794 = vld [vmem:[#allocation8 + $0x3f8] sm:$0xff]
    %v795 = vld [vmem:[#allocation8 + $0x400] sm:$0xff]
    %v796 = vld [vmem:[#allocation8 + $0x408] sm:$0xff]
    %v797 = vld [vmem:[#allocation8 + $0x410] sm:$0xff]
    %v798 = vld [vmem:[#allocation8 + $0x418] sm:$0xff]
    %v799 = vld [vmem:[#allocation8 + $0x420] sm:$0xff]
    %v800 = vld [vmem:[#allocation8 + $0x428] sm:$0xff]
    %v801 = vld [vmem:[#allocation8 + $0x430] sm:$0xff]
    %v802 = vld [vmem:[#allocation8 + $0x438] sm:$0xff]
    %v803 = vld [vmem:[#allocation8 + $0x440] sm:$0xff]
    %v804 = vld [vmem:[#allocation8 + $0x448] sm:$0xff]
    %v805 = vld [vmem:[#allocation8 + $0x450] sm:$0xff]
    %v806 = vld [vmem:[#allocation8 + $0x458] sm:$0xff]
    %v807 = vld [vmem:[#allocation8 + $0x460] sm:$0xff]
    %v808 = vld [vmem:[#allocation8 + $0x468] sm:$0xff]
    %v809 = vld [vmem:[#allocation8 + $0x470] sm:$0xff]
    %v810 = vld [vmem:[#allocation8 + $0x478] sm:$0xff]
    %v811 = vld [vmem:[#allocation8 + $0x480] sm:$0xff]
    %v812 = vld [vmem:[#allocation8 + $0x488] sm:$0xff]
    %v813 = vld [vmem:[#allocation8 + $0x490] sm:$0xff]
    %v814 = vld [vmem:[#allocation8 + $0x498] sm:$0xff]
    %v815 = vld [vmem:[#allocation8 + $0x4a0] sm:$0xff]
    %v816 = vld [vmem:[#allocation8 + $0x4a8] sm:$0xff]
    %v817 = vld [vmem:[#allocation8 + $0x4b0] sm:$0xff]
    %v818 = vld [vmem:[#allocation8 + $0x4b8] sm:$0xff]
    %v819 = vld [vmem:[#allocation8 + $0x4c0] sm:$0xff]
    %v820 = vld [vmem:[#allocation8 + $0x4c8] sm:$0xff]
    %v821 = vld [vmem:[#allocation8 + $0x4d0] sm:$0xff]
    %v822 = vld [vmem:[#allocation8 + $0x4d8] sm:$0xff]
    %v823 = vld [vmem:[#allocation8 + $0x4e0] sm:$0xff]
    %v824 = vld [vmem:[#allocation8 + $0x4e8] sm:$0xff]
    %v825 = vld [vmem:[#allocation8 + $0x4f0] sm:$0xff]
    %v826 = vld [vmem:[#allocation8 + $0x4f8] sm:$0xff]
    %v827 = vld [vmem:[#allocation8 + $0x500] sm:$0xff]
    %v828 = vld [vmem:[#allocation8 + $0x508] sm:$0xff]
    %v829 = vld [vmem:[#allocation8 + $0x510] sm:$0xff]
    %v830 = vld [vmem:[#allocation8 + $0x518] sm:$0xff]
    %v831 = vld [vmem:[#allocation8 + $0x520] sm:$0xff]
    %v832 = vld [vmem:[#allocation8 + $0x528] sm:$0xff]
    %v833 = vld [vmem:[#allocation8 + $0x530] sm:$0xff]
    %v834 = vld [vmem:[#allocation8 + $0x538] sm:$0xff]
    %v835 = vld [vmem:[#allocation8 + $0x540] sm:$0xff]
    %v836 = vld [vmem:[#allocation8 + $0x548] sm:$0xff]
    %v837 = vld [vmem:[#allocation8 + $0x550] sm:$0xff]
    %v838 = vld [vmem:[#allocation8 + $0x558] sm:$0xff]
    %v839 = vld [vmem:[#allocation8 + $0x560] sm:$0xff]
    %v840 = vld [vmem:[#allocation8 + $0x568] sm:$0xff]
    %v841 = vld [vmem:[#allocation8 + $0x570] sm:$0xff]
    %v842 = vld [vmem:[#allocation8 + $0x578] sm:$0xff]
    %v843 = vld [vmem:[#allocation8 + $0x580] sm:$0xff]
    %v844 = vld [vmem:[#allocation8 + $0x588] sm:$0xff]
    %v845 = vld [vmem:[#allocation8 + $0x590] sm:$0xff]
    %v846 = vld [vmem:[#allocation8 + $0x598] sm:$0xff]
    %v847 = vld [vmem:[#allocation8 + $0x5a0] sm:$0xff]
    %v848 = vld [vmem:[#allocation8 + $0x5a8] sm:$0xff]
    %v849 = vld [vmem:[#allocation8 + $0x5b0] sm:$0xff]
    %v850 = vld [vmem:[#allocation8 + $0x5b8] sm:$0xff]
    %v851 = vld [vmem:[#allocation8 + $0x5c0] sm:$0xff]
    %v852 = vld [vmem:[#allocation8 + $0x5c8] sm:$0xff]
    %v853 = vld [vmem:[#allocation8 + $0x5d0] sm:$0xff]
    %v854 = vld [vmem:[#allocation8 + $0x5d8] sm:$0xff]
    %v855 = vld [vmem:[#allocation8 + $0x5e0] sm:$0xff]
    %v856 = vld [vmem:[#allocation8 + $0x5e8] sm:$0xff]
    %v857 = vld [vmem:[#allocation8 + $0x5f0] sm:$0xff]
    %v858 = vld [vmem:[#allocation8 + $0x5f8] sm:$0xff]
    %v859 = vld [vmem:[#allocation8 + $0x600] sm:$0xff]
    %v860 = vld [vmem:[#allocation8 + $0x608] sm:$0xff]
    %v861 = vld [vmem:[#allocation8 + $0x610] sm:$0xff]
    %v862 = vld [vmem:[#allocation8 + $0x618] sm:$0xff]
    %v863 = vld [vmem:[#allocation8 + $0x620] sm:$0xff]
    %v864 = vld [vmem:[#allocation8 + $0x628] sm:$0xff]
    %v865 = vld [vmem:[#allocation8 + $0x630] sm:$0xff]
    %v866 = vld [vmem:[#allocation8 + $0x638] sm:$0xff]
    %v867 = vld [vmem:[#allocation8 + $0x640] sm:$0xff]
    %v868 = vld [vmem:[#allocation8 + $0x648] sm:$0xff]
    %v869 = vld [vmem:[#allocation8 + $0x650] sm:$0xff]
    %v870 = vld [vmem:[#allocation8 + $0x658] sm:$0xff]
    %v871 = vld [vmem:[#allocation8 + $0x660] sm:$0xff]
    %v872 = vld [vmem:[#allocation8 + $0x668] sm:$0xff]
    %v873 = vld [vmem:[#allocation8 + $0x670] sm:$0xff]
    %v874 = vld [vmem:[#allocation8 + $0x678] sm:$0xff]
    %v875 = vld [vmem:[#allocation8 + $0x680] sm:$0xff]
    %v876 = vld [vmem:[#allocation8 + $0x688] sm:$0xff]
    %v877 = vld [vmem:[#allocation8 + $0x690] sm:$0xff]
    %v878 = vld [vmem:[#allocation8 + $0x698] sm:$0xff]
    %v879 = vld [vmem:[#allocation8 + $0x6a0] sm:$0xff]
    %v880 = vld [vmem:[#allocation8 + $0x6a8] sm:$0xff]
    %v881 = vld [vmem:[#allocation8 + $0x6b0] sm:$0xff]
    %v882 = vld [vmem:[#allocation8 + $0x6b8] sm:$0xff]
    %v883 = vld [vmem:[#allocation8 + $0x6c0] sm:$0xff]
    %v884 = vld [vmem:[#allocation8 + $0x6c8] sm:$0xff]
    %v885 = vld [vmem:[#allocation8 + $0x6d0] sm:$0xff]
    %v886 = vld [vmem:[#allocation8 + $0x6d8] sm:$0xff]
    %v887 = vld [vmem:[#allocation8 + $0x6e0] sm:$0xff]
    %v888 = vld [vmem:[#allocation8 + $0x6e8] sm:$0xff]
    %v889 = vld [vmem:[#allocation8 + $0x6f0] sm:$0xff]
    %v890 = vld [vmem:[#allocation8 + $0x6f8] sm:$0xff]
    %v891 = vld [vmem:[#allocation8 + $0x700] sm:$0xff]
    %v892 = vld [vmem:[#allocation8 + $0x708] sm:$0xff]
    %v893 = vld [vmem:[#allocation8 + $0x710] sm:$0xff]
    %v894 = vld [vmem:[#allocation8 + $0x718] sm:$0xff]
    %v895 = vld [vmem:[#allocation8 + $0x720] sm:$0xff]
    %v896 = vld [vmem:[#allocation8 + $0x728] sm:$0xff]
    %v897 = vld [vmem:[#allocation8 + $0x730] sm:$0xff]
    %v898 = vld [vmem:[#allocation8 + $0x738] sm:$0xff]
    %v899 = vld [vmem:[#allocation8 + $0x740] sm:$0xff]
    %v900 = vld [vmem:[#allocation8 + $0x748] sm:$0xff]
    %v901 = vld [vmem:[#allocation8 + $0x750] sm:$0xff]
    %v902 = vld [vmem:[#allocation8 + $0x758] sm:$0xff]
    %v903 = vld [vmem:[#allocation8 + $0x760] sm:$0xff]
    %v904 = vld [vmem:[#allocation8 + $0x768] sm:$0xff]
    %v905 = vld [vmem:[#allocation8 + $0x770] sm:$0xff]
    %v906 = vld [vmem:[#allocation8 + $0x778] sm:$0xff]
    %v907 = vld [vmem:[#allocation8 + $0x780] sm:$0xff]
    %v908 = vld [vmem:[#allocation8 + $0x788] sm:$0xff]
    %v909 = vld [vmem:[#allocation8 + $0x790] sm:$0xff]
    %v910 = vld [vmem:[#allocation8 + $0x798] sm:$0xff]
    %v911 = vld [vmem:[#allocation8 + $0x7a0] sm:$0xff]
    %v912 = vld [vmem:[#allocation8 + $0x7a8] sm:$0xff]
    %v913 = vld [vmem:[#allocation8 + $0x7b0] sm:$0xff]
    %v914 = vld [vmem:[#allocation8 + $0x7b8] sm:$0xff]
    %v915 = vld [vmem:[#allocation8 + $0x7c0] sm:$0xff]
    %v916 = vld [vmem:[#allocation8 + $0x7c8] sm:$0xff]
    %v917 = vld [vmem:[#allocation8 + $0x7d0] sm:$0xff]
    %v918 = vld [vmem:[#allocation8 + $0x7d8] sm:$0xff]
    %v919 = vld [vmem:[#allocation8 + $0x7e0] sm:$0xff]
    %v920 = vld [vmem:[#allocation8 + $0x7e8] sm:$0xff]
    %v921 = vld [vmem:[#allocation8 + $0x7f0] sm:$0xff]
    %v922 = vld [vmem:[#allocation8 + $0x7f8] sm:$0xff]
    %v923 = vld [vmem:[#allocation8 + $0x800] sm:$0xff]
    %v924 = vld [vmem:[#allocation8 + $0x808] sm:$0xff]
    %v925 = vld [vmem:[#allocation8 + $0x810] sm:$0xff]
    %v926 = vld [vmem:[#allocation8 + $0x818] sm:$0xff]
    %v927 = vld [vmem:[#allocation8 + $0x820] sm:$0xff]
    %v928 = vld [vmem:[#allocation8 + $0x828] sm:$0xff]
    %v929 = vld [vmem:[#allocation8 + $0x830] sm:$0xff]
    %v930 = vld [vmem:[#allocation8 + $0x838] sm:$0xff]
    %v931 = vld [vmem:[#allocation8 + $0x840] sm:$0xff]
    %v932 = vld [vmem:[#allocation8 + $0x848] sm:$0xff]
    %v933 = vld [vmem:[#allocation8 + $0x850] sm:$0xff]
    %v934 = vld [vmem:[#allocation8 + $0x858] sm:$0xff]
    %v935 = vld [vmem:[#allocation8 + $0x860] sm:$0xff]
    %v936 = vld [vmem:[#allocation8 + $0x868] sm:$0xff]
    %v937 = vld [vmem:[#allocation8 + $0x870] sm:$0xff]
    %v938 = vld [vmem:[#allocation8 + $0x878] sm:$0xff]
    %v939 = vld [vmem:[#allocation8 + $0x880] sm:$0xff]
    %v940 = vld [vmem:[#allocation8 + $0x888] sm:$0xff]
    %v941 = vld [vmem:[#allocation8 + $0x890] sm:$0xff]
    %v942 = vld [vmem:[#allocation8 + $0x898] sm:$0xff]
    %v943 = vld [vmem:[#allocation8 + $0x8a0] sm:$0xff]
    %v944 = vld [vmem:[#allocation8 + $0x8a8] sm:$0xff]
    %v945 = vld [vmem:[#allocation8 + $0x8b0] sm:$0xff]
    %v946 = vld [vmem:[#allocation8 + $0x8b8] sm:$0xff]
    %v947 = vld [vmem:[#allocation8 + $0x8c0] sm:$0xff]
    %v948 = vld [vmem:[#allocation8 + $0x8c8] sm:$0xff]
    %v949 = vld [vmem:[#allocation8 + $0x8d0] sm:$0xff]
    %v950 = vld [vmem:[#allocation8 + $0x8d8] sm:$0xff]
    %v951 = vld [vmem:[#allocation8 + $0x8e0] sm:$0xff]
    %v952 = vld [vmem:[#allocation8 + $0x8e8] sm:$0xff]
    %v953 = vld [vmem:[#allocation8 + $0x8f0] sm:$0xff]
    %v954 = vld [vmem:[#allocation8 + $0x8f8] sm:$0xff]
    %v955 = vld [vmem:[#allocation8 + $0x900] sm:$0xff]
    %v956 = vld [vmem:[#allocation8 + $0x908] sm:$0xff]
    %v957 = vld [vmem:[#allocation8 + $0x910] sm:$0xff]
    %v958 = vld [vmem:[#allocation8 + $0x918] sm:$0xff]
    %v959 = vld [vmem:[#allocation8 + $0x920] sm:$0xff]
    %v960 = vld [vmem:[#allocation8 + $0x928] sm:$0xff]
    %v961 = vld [vmem:[#allocation8 + $0x930] sm:$0xff]
    %v962 = vld [vmem:[#allocation8 + $0x938] sm:$0xff]
    %v963 = vld [vmem:[#allocation8 + $0x940] sm:$0xff]
    %v964 = vld [vmem:[#allocation8 + $0x948] sm:$0xff]
    %v965 = vld [vmem:[#allocation8 + $0x950] sm:$0xff]
    %v966 = vld [vmem:[#allocation8 + $0x958] sm:$0xff]
    %v967 = vld [vmem:[#allocation8 + $0x960] sm:$0xff]
    %v968 = vld [vmem:[#allocation8 + $0x968] sm:$0xff]
    %v969 = vld [vmem:[#allocation8 + $0x970] sm:$0xff]
    %v970 = vld [vmem:[#allocation8 + $0x978] sm:$0xff]
    %v971 = vld [vmem:[#allocation8 + $0x980] sm:$0xff]
    %v972 = vld [vmem:[#allocation8 + $0x988] sm:$0xff]
    %v973 = vld [vmem:[#allocation8 + $0x990] sm:$0xff]
    %v974 = vld [vmem:[#allocation8 + $0x998] sm:$0xff]
    %v975 = vld [vmem:[#allocation8 + $0x9a0] sm:$0xff]
    %v976 = vld [vmem:[#allocation8 + $0x9a8] sm:$0xff]
    %v977 = vld [vmem:[#allocation8 + $0x9b0] sm:$0xff]
    %v978 = vld [vmem:[#allocation8 + $0x9b8] sm:$0xff]
    %v979 = vld [vmem:[#allocation8 + $0x9c0] sm:$0xff]
    %v980 = vld [vmem:[#allocation8 + $0x9c8] sm:$0xff]
    %v981 = vld [vmem:[#allocation8 + $0x9d0] sm:$0xff]
    %v982 = vld [vmem:[#allocation8 + $0x9d8] sm:$0xff]
    %v983 = vld [vmem:[#allocation8 + $0x9e0] sm:$0xff]
    %v984 = vld [vmem:[#allocation8 + $0x9e8] sm:$0xff]
    %v985 = vld [vmem:[#allocation8 + $0x9f0] sm:$0xff]
    %v986 = vld [vmem:[#allocation8 + $0x9f8] sm:$0xff]
    %v987 = vld [vmem:[#allocation8 + $0xa00] sm:$0xff]
    %v988 = vld [vmem:[#allocation8 + $0xa08] sm:$0xff]
    %v989 = vld [vmem:[#allocation8 + $0xa10] sm:$0xff]
    %v990 = vld [vmem:[#allocation8 + $0xa18] sm:$0xff]
    %v991 = vld [vmem:[#allocation8 + $0xa20] sm:$0xff]
    %v992 = vld [vmem:[#allocation8 + $0xa28] sm:$0xff]
    %v993 = vld [vmem:[#allocation8 + $0xa30] sm:$0xff]
    %v994 = vld [vmem:[#allocation8 + $0xa38] sm:$0xff]
    %v995 = vld [vmem:[#allocation8 + $0xa40] sm:$0xff]
    %v996 = vld [vmem:[#allocation8 + $0xa48] sm:$0xff]
    %v997 = vld [vmem:[#allocation8 + $0xa50] sm:$0xff]
    %v998 = vld [vmem:[#allocation8 + $0xa58] sm:$0xff]
    %v999 = vld [vmem:[#allocation8 + $0xa60] sm:$0xff]
    %v1000 = vld [vmem:[#allocation8 + $0xa68] sm:$0xff]
    %v1001 = vld [vmem:[#allocation8 + $0xa70] sm:$0xff]
    %v1002 = vld [vmem:[#allocation8 + $0xa78] sm:$0xff]
    %v1003 = vld [vmem:[#allocation8 + $0xa80] sm:$0xff]
    %v1004 = vld [vmem:[#allocation8 + $0xa88] sm:$0xff]
    %v1005 = vld [vmem:[#allocation8 + $0xa90] sm:$0xff]
    %v1006 = vld [vmem:[#allocation8 + $0xa98] sm:$0xff]
    %v1007 = vld [vmem:[#allocation8 + $0xaa0] sm:$0xff]
    %v1008 = vld [vmem:[#allocation8 + $0xaa8] sm:$0xff]
    %v1009 = vld [vmem:[#allocation8 + $0xab0] sm:$0xff]
    %v1010 = vld [vmem:[#allocation8 + $0xab8] sm:$0xff]
    %v1011 = vld [vmem:[#allocation8 + $0xac0] sm:$0xff]
    %v1012 = vld [vmem:[#allocation8 + $0xac8] sm:$0xff]
    %v1013 = vld [vmem:[#allocation8 + $0xad0] sm:$0xff]
    %v1014 = vld [vmem:[#allocation8 + $0xad8] sm:$0xff]
    %v1015 = vld [vmem:[#allocation8 + $0xae0] sm:$0xff]
    %v1016 = vld [vmem:[#allocation8 + $0xae8] sm:$0xff]
    %v1017 = vld [vmem:[#allocation8 + $0xaf0] sm:$0xff]
    %v1018 = vld [vmem:[#allocation8 + $0xaf8] sm:$0xff]
    %v1019 = vld [vmem:[#allocation8 + $0xb00] sm:$0xff]
    %v1020 = vld [vmem:[#allocation8 + $0xb08] sm:$0xff]
    %v1021 = vld [vmem:[#allocation8 + $0xb10] sm:$0xff]
    %v1022 = vld [vmem:[#allocation8 + $0xb18] sm:$0xff]
    %v1023 = vld [vmem:[#allocation8 + $0xb20] sm:$0xff]
    %v1024 = vld [vmem:[#allocation8 + $0xb28] sm:$0xff]
    %v1025 = vld [vmem:[#allocation8 + $0xb30] sm:$0xff]
    %v1026 = vld [vmem:[#allocation8 + $0xb38] sm:$0xff]
    %v1027 = vld [vmem:[#allocation8 + $0xb40] sm:$0xff]
    %v1028 = vld [vmem:[#allocation8 + $0xb48] sm:$0xff]
    %v1029 = vld [vmem:[#allocation8 + $0xb50] sm:$0xff]
    %v1030 = vld [vmem:[#allocation8 + $0xb58] sm:$0xff]
    %v1031 = vld [vmem:[#allocation8 + $0xb60] sm:$0xff]
    %v1032 = vld [vmem:[#allocation8 + $0xb68] sm:$0xff]
    %v1033 = vld [vmem:[#allocation8 + $0xb70] sm:$0xff]
    %v1034 = vld [vmem:[#allocation8 + $0xb78] sm:$0xff]
    %v1035 = vld [vmem:[#allocation8 + $0xb80] sm:$0xff]
    %v1036 = vld [vmem:[#allocation8 + $0xb88] sm:$0xff]
    %v1037 = vld [vmem:[#allocation8 + $0xb90] sm:$0xff]
    %v1038 = vld [vmem:[#allocation8 + $0xb98] sm:$0xff]
    %v1039 = vld [vmem:[#allocation8 + $0xba0] sm:$0xff]
    %v1040 = vld [vmem:[#allocation8 + $0xba8] sm:$0xff]
    %v1041 = vld [vmem:[#allocation8 + $0xbb0] sm:$0xff]
    %v1042 = vld [vmem:[#allocation8 + $0xbb8] sm:$0xff]
    %v1043 = vld [vmem:[#allocation8 + $0xbc0] sm:$0xff]
    %v1044 = vld [vmem:[#allocation8 + $0xbc8] sm:$0xff]
    %v1045 = vld [vmem:[#allocation8 + $0xbd0] sm:$0xff]
    %v1046 = vld [vmem:[#allocation8 + $0xbd8] sm:$0xff]
    %v1047 = vld [vmem:[#allocation8 + $0xbe0] sm:$0xff]
    %v1048 = vld [vmem:[#allocation8 + $0xbe8] sm:$0xff]
    %v1049 = vld [vmem:[#allocation8 + $0xbf0] sm:$0xff]
    %v1050 = vld [vmem:[#allocation8 + $0xbf8] sm:$0xff]
    %v1051 = vld [vmem:[#allocation8 + $0xc00] sm:$0xff]
    %v1052 = vld [vmem:[#allocation8 + $0xc08] sm:$0xff]
    %v1053 = vld [vmem:[#allocation8 + $0xc10] sm:$0xff]
    %v1054 = vld [vmem:[#allocation8 + $0xc18] sm:$0xff]
    %v1055 = vld [vmem:[#allocation8 + $0xc20] sm:$0xff]
    %v1056 = vld [vmem:[#allocation8 + $0xc28] sm:$0xff]
    %v1057 = vld [vmem:[#allocation8 + $0xc30] sm:$0xff]
    %v1058 = vld [vmem:[#allocation8 + $0xc38] sm:$0xff]
    %v1059 = vld [vmem:[#allocation8 + $0xc40] sm:$0xff]
    %v1060 = vld [vmem:[#allocation8 + $0xc48] sm:$0xff]
    %v1061 = vld [vmem:[#allocation8 + $0xc50] sm:$0xff]
    %v1062 = vld [vmem:[#allocation8 + $0xc58] sm:$0xff]
    %v1063 = vld [vmem:[#allocation8 + $0xc60] sm:$0xff]
    %v1064 = vld [vmem:[#allocation8 + $0xc68] sm:$0xff]
    %v1065 = vld [vmem:[#allocation8 + $0xc70] sm:$0xff]
    %v1066 = vld [vmem:[#allocation8 + $0xc78] sm:$0xff]
    %v1067 = vld [vmem:[#allocation8 + $0xc80] sm:$0xff]
    %v1068 = vld [vmem:[#allocation8 + $0xc88] sm:$0xff]
    %v1069 = vld [vmem:[#allocation8 + $0xc90] sm:$0xff]
    %v1070 = vld [vmem:[#allocation8 + $0xc98] sm:$0xff]
    %v1071 = vld [vmem:[#allocation8 + $0xca0] sm:$0xff]
    %v1072 = vld [vmem:[#allocation8 + $0xca8] sm:$0xff]
    %v1073 = vld [vmem:[#allocation8 + $0xcb0] sm:$0xff]
    %v1074 = vld [vmem:[#allocation8 + $0xcb8] sm:$0xff]
    %v1075 = vld [vmem:[#allocation8 + $0xcc0] sm:$0xff]
    %v1076 = vld [vmem:[#allocation8 + $0xcc8] sm:$0xff]
    %v1077 = vld [vmem:[#allocation8 + $0xcd0] sm:$0xff]
    %v1078 = vld [vmem:[#allocation8 + $0xcd8] sm:$0xff]
    %v1079 = vld [vmem:[#allocation8 + $0xce0] sm:$0xff]
    %v1080 = vld [vmem:[#allocation8 + $0xce8] sm:$0xff]
    %v1081 = vld [vmem:[#allocation8 + $0xcf0] sm:$0xff]
    %v1082 = vld [vmem:[#allocation8 + $0xcf8] sm:$0xff]
    %v1083 = vld [vmem:[#allocation8 + $0xd00] sm:$0xff]
    %v1084 = vld [vmem:[#allocation8 + $0xd08] sm:$0xff]
    %v1085 = vld [vmem:[#allocation8 + $0xd10] sm:$0xff]
    %v1086 = vld [vmem:[#allocation8 + $0xd18] sm:$0xff]
    %v1087 = vld [vmem:[#allocation8 + $0xd20] sm:$0xff]
    %v1088 = vld [vmem:[#allocation8 + $0xd28] sm:$0xff]
    %v1089 = vld [vmem:[#allocation8 + $0xd30] sm:$0xff]
    %v1090 = vld [vmem:[#allocation8 + $0xd38] sm:$0xff]
    %v1091 = vld [vmem:[#allocation8 + $0xd40] sm:$0xff]
    %v1092 = vld [vmem:[#allocation8 + $0xd48] sm:$0xff]
    %v1093 = vld [vmem:[#allocation8 + $0xd50] sm:$0xff]
    %v1094 = vld [vmem:[#allocation8 + $0xd58] sm:$0xff]
    %v1095 = vld [vmem:[#allocation8 + $0xd60] sm:$0xff]
    %v1096 = vld [vmem:[#allocation8 + $0xd68] sm:$0xff]
    %v1097 = vld [vmem:[#allocation8 + $0xd70] sm:$0xff]
    %v1098 = vld [vmem:[#allocation8 + $0xd78] sm:$0xff]
    %v1099 = vld [vmem:[#allocation8 + $0xd80] sm:$0xff]
    %v1100 = vld [vmem:[#allocation8 + $0xd88] sm:$0xff]
    %v1101 = vld [vmem:[#allocation8 + $0xd90] sm:$0xff]
    %v1102 = vld [vmem:[#allocation8 + $0xd98] sm:$0xff]
    %v1103 = vld [vmem:[#allocation8 + $0xda0] sm:$0xff]
    %v1104 = vld [vmem:[#allocation8 + $0xda8] sm:$0xff]
    %v1105 = vld [vmem:[#allocation8 + $0xdb0] sm:$0xff]
    %v1106 = vld [vmem:[#allocation8 + $0xdb8] sm:$0xff]
    %v1107 = vld [vmem:[#allocation8 + $0xdc0] sm:$0xff]
    %v1108 = vld [vmem:[#allocation8 + $0xdc8] sm:$0xff]
    %v1109 = vld [vmem:[#allocation8 + $0xdd0] sm:$0xff]
    %v1110 = vld [vmem:[#allocation8 + $0xdd8] sm:$0xff]
    %v1111 = vld [vmem:[#allocation8 + $0xde0] sm:$0xff]
    %v1112 = vld [vmem:[#allocation8 + $0xde8] sm:$0xff]
    %v1113 = vld [vmem:[#allocation8 + $0xdf0] sm:$0xff]
    %v1114 = vld [vmem:[#allocation8 + $0xdf8] sm:$0xff]
    %v1115 = vld [vmem:[#allocation8 + $0xe00] sm:$0xff]
    %v1116 = vld [vmem:[#allocation8 + $0xe08] sm:$0xff]
    %v1117 = vld [vmem:[#allocation8 + $0xe10] sm:$0xff]
    %v1118 = vld [vmem:[#allocation8 + $0xe18] sm:$0xff]
    %v1119 = vld [vmem:[#allocation8 + $0xe20] sm:$0xff]
    %v1120 = vld [vmem:[#allocation8 + $0xe28] sm:$0xff]
    %v1121 = vld [vmem:[#allocation8 + $0xe30] sm:$0xff]
    %v1122 = vld [vmem:[#allocation8 + $0xe38] sm:$0xff]
    %v1123 = vld [vmem:[#allocation8 + $0xe40] sm:$0xff]
    %v1124 = vld [vmem:[#allocation8 + $0xe48] sm:$0xff]
    %v1125 = vld [vmem:[#allocation8 + $0xe50] sm:$0xff]
    %v1126 = vld [vmem:[#allocation8 + $0xe58] sm:$0xff]
    %v1127 = vld [vmem:[#allocation8 + $0xe60] sm:$0xff]
    %v1128 = vld [vmem:[#allocation8 + $0xe68] sm:$0xff]
    %v1129 = vld [vmem:[#allocation8 + $0xe70] sm:$0xff]
    %v1130 = vld [vmem:[#allocation8 + $0xe78] sm:$0xff]
    %v1131 = vld [vmem:[#allocation8 + $0xe80] sm:$0xff]
    %v1132 = vld [vmem:[#allocation8 + $0xe88] sm:$0xff]
    %v1133 = vld [vmem:[#allocation8 + $0xe90] sm:$0xff]
    %v1134 = vld [vmem:[#allocation8 + $0xe98] sm:$0xff]
    %v1135 = vld [vmem:[#allocation8 + $0xea0] sm:$0xff]
    %v1136 = vld [vmem:[#allocation8 + $0xea8] sm:$0xff]
    %v1137 = vld [vmem:[#allocation8 + $0xeb0] sm:$0xff]
    %v1138 = vld [vmem:[#allocation8 + $0xeb8] sm:$0xff]
    %v1139 = vld [vmem:[#allocation8 + $0xec0] sm:$0xff]
    %v1140 = vld [vmem:[#allocation8 + $0xec8] sm:$0xff]
    %v1141 = vld [vmem:[#allocation8 + $0xed0] sm:$0xff]
    %v1142 = vld [vmem:[#allocation8 + $0xed8] sm:$0xff]
    %v1143 = vld [vmem:[#allocation8 + $0xee0] sm:$0xff]
    %v1144 = vld [vmem:[#allocation8 + $0xee8] sm:$0xff]
    %v1145 = vld [vmem:[#allocation8 + $0xef0] sm:$0xff]
    %v1146 = vld [vmem:[#allocation8 + $0xef8] sm:$0xff]
    %v1147 = vld [vmem:[#allocation8 + $0xf00] sm:$0xff]
    %v1148 = vld [vmem:[#allocation8 + $0xf08] sm:$0xff]
    %v1149 = vld [vmem:[#allocation8 + $0xf10] sm:$0xff]
    %v1150 = vld [vmem:[#allocation8 + $0xf18] sm:$0xff]
    %v1151 = vld [vmem:[#allocation8 + $0xf20] sm:$0xff]
    %v1152 = vld [vmem:[#allocation8 + $0xf28] sm:$0xff]
    %v1153 = vld [vmem:[#allocation8 + $0xf30] sm:$0xff]
    %v1154 = vld [vmem:[#allocation8 + $0xf38] sm:$0xff]
    %v1155 = vld [vmem:[#allocation8 + $0xf40] sm:$0xff]
    %v1156 = vld [vmem:[#allocation8 + $0xf48] sm:$0xff]
    %v1157 = vld [vmem:[#allocation8 + $0xf50] sm:$0xff]
    %v1158 = vld [vmem:[#allocation8 + $0xf58] sm:$0xff]
    %v1159 = vld [vmem:[#allocation8 + $0xf60] sm:$0xff]
    %v1160 = vld [vmem:[#allocation8 + $0xf68] sm:$0xff]
    %v1161 = vld [vmem:[#allocation8 + $0xf70] sm:$0xff]
    %v1162 = vld [vmem:[#allocation8 + $0xf78] sm:$0xff]
    %v1163 = vld [vmem:[#allocation8 + $0xf80] sm:$0xff]
    %v1164 = vld [vmem:[#allocation8 + $0xf88] sm:$0xff]
    %v1165 = vld [vmem:[#allocation8 + $0xf90] sm:$0xff]
    %v1166 = vld [vmem:[#allocation8 + $0xf98] sm:$0xff]
    %v1167 = vld [vmem:[#allocation8 + $0xfa0] sm:$0xff]
    %v1168 = vld [vmem:[#allocation8 + $0xfa8] sm:$0xff]
    %v1169 = vld [vmem:[#allocation8 + $0xfb0] sm:$0xff]
    %v1170 = vld [vmem:[#allocation8 + $0xfb8] sm:$0xff]
    %v1171 = vld [vmem:[#allocation8 + $0xfc0] sm:$0xff]
    %v1172 = vld [vmem:[#allocation8 + $0xfc8] sm:$0xff]
    %v1173 = vld [vmem:[#allocation8 + $0xfd0] sm:$0xff]
    %v1174 = vld [vmem:[#allocation8 + $0xfd8] sm:$0xff]
    %v1175 = vld [vmem:[#allocation8 + $0xfe0] sm:$0xff]
    %v1176 = vld [vmem:[#allocation8 + $0xfe8] sm:$0xff]
    %v1177 = vld [vmem:[#allocation8 + $0xff0] sm:$0xff]
    %v1178 = vld [vmem:[#allocation8 + $0xff8] sm:$0xff]
    %v1179 = vld [vmem:[#allocation8 + $0x1000] sm:$0xff]
    %v1180 = vld [vmem:[#allocation8 + $0x1008] sm:$0xff]
    %v1181 = vld [vmem:[#allocation8 + $0x1010] sm:$0xff]
    %v1182 = vld [vmem:[#allocation8 + $0x1018] sm:$0xff]
    %v1183 = vld [vmem:[#allocation8 + $0x1020] sm:$0xff]
    %v1184 = vld [vmem:[#allocation8 + $0x1028] sm:$0xff]
    %v1185 = vld [vmem:[#allocation8 + $0x1030] sm:$0xff]
    %v1186 = vld [vmem:[#allocation8 + $0x1038] sm:$0xff]
    %v1187 = vld [vmem:[#allocation8 + $0x1040] sm:$0xff]
    %v1188 = vld [vmem:[#allocation8 + $0x1048] sm:$0xff]
    %v1189 = vld [vmem:[#allocation8 + $0x1050] sm:$0xff]
    %v1190 = vld [vmem:[#allocation8 + $0x1058] sm:$0xff]
    %v1191 = vld [vmem:[#allocation8 + $0x1060] sm:$0xff]
    %v1192 = vld [vmem:[#allocation8 + $0x1068] sm:$0xff]
    %v1193 = vld [vmem:[#allocation8 + $0x1070] sm:$0xff]
    %v1194 = vld [vmem:[#allocation8 + $0x1078] sm:$0xff]
    %v1195 = vld [vmem:[#allocation8 + $0x1080] sm:$0xff]
    %v1196 = vld [vmem:[#allocation8 + $0x1088] sm:$0xff]
    %v1197 = vld [vmem:[#allocation8 + $0x1090] sm:$0xff]
    %v1198 = vld [vmem:[#allocation8 + $0x1098] sm:$0xff]
    %v1199 = vld [vmem:[#allocation8 + $0x10a0] sm:$0xff]
    %v1200 = vld [vmem:[#allocation8 + $0x10a8] sm:$0xff]
    %v1201 = vld [vmem:[#allocation8 + $0x10b0] sm:$0xff]
    %v1202 = vld [vmem:[#allocation8 + $0x10b8] sm:$0xff]
    %v1203 = vld [vmem:[#allocation8 + $0x10c0] sm:$0xff]
    %v1204 = vld [vmem:[#allocation8 + $0x10c8] sm:$0xff]
    %v1205 = vld [vmem:[#allocation8 + $0x10d0] sm:$0xff]
    %v1206 = vld [vmem:[#allocation8 + $0x10d8] sm:$0xff]
    %v1207 = vld [vmem:[#allocation8 + $0x10e0] sm:$0xff]
    %v1208 = vld [vmem:[#allocation8 + $0x10e8] sm:$0xff]
    %v1209 = vld [vmem:[#allocation8 + $0x10f0] sm:$0xff]
    %v1210 = vld [vmem:[#allocation8 + $0x10f8] sm:$0xff]
    %v1211 = vld [vmem:[#allocation8 + $0x1100] sm:$0xff]
    %v1212 = vld [vmem:[#allocation8 + $0x1108] sm:$0xff]
    %v1213 = vld [vmem:[#allocation8 + $0x1110] sm:$0xff]
    %v1214 = vld [vmem:[#allocation8 + $0x1118] sm:$0xff]
    %v1215 = vld [vmem:[#allocation8 + $0x1120] sm:$0xff]
    %v1216 = vld [vmem:[#allocation8 + $0x1128] sm:$0xff]
    %v1217 = vld [vmem:[#allocation8 + $0x1130] sm:$0xff]
    %v1218 = vld [vmem:[#allocation8 + $0x1138] sm:$0xff]
    %v1219 = vld [vmem:[#allocation8 + $0x1140] sm:$0xff]
    %v1220 = vld [vmem:[#allocation8 + $0x1148] sm:$0xff]
    %v1221 = vld [vmem:[#allocation8 + $0x1150] sm:$0xff]
    %v1222 = vld [vmem:[#allocation8 + $0x1158] sm:$0xff]
    %v1223 = vld [vmem:[#allocation8 + $0x1160] sm:$0xff]
    %v1224 = vld [vmem:[#allocation8 + $0x1168] sm:$0xff]
    %v1225 = vld [vmem:[#allocation8 + $0x1170] sm:$0xff]
    %v1226 = vld [vmem:[#allocation8 + $0x1178] sm:$0xff]
    %v1227 = vld [vmem:[#allocation8 + $0x1180] sm:$0xff]
    %v1228 = vld [vmem:[#allocation8 + $0x1188] sm:$0xff]
    %v1229 = vld [vmem:[#allocation8 + $0x1190] sm:$0xff]
    %v1230 = vld [vmem:[#allocation8 + $0x1198] sm:$0xff]
    %v1231 = vld [vmem:[#allocation8 + $0x11a0] sm:$0xff]
    %v1232 = vld [vmem:[#allocation8 + $0x11a8] sm:$0xff]
    %v1233 = vld [vmem:[#allocation8 + $0x11b0] sm:$0xff]
    %v1234 = vld [vmem:[#allocation8 + $0x11b8] sm:$0xff]
    %v1235 = vld [vmem:[#allocation8 + $0x11c0] sm:$0xff]
    %v1236 = vld [vmem:[#allocation8 + $0x11c8] sm:$0xff]
    %v1237 = vld [vmem:[#allocation8 + $0x11d0] sm:$0xff]
    %v1238 = vld [vmem:[#allocation8 + $0x11d8] sm:$0xff]
    %v1239 = vld [vmem:[#allocation8 + $0x11e0] sm:$0xff]
    %v1240 = vld [vmem:[#allocation8 + $0x11e8] sm:$0xff]
    %v1241 = vld [vmem:[#allocation8 + $0x11f0] sm:$0xff]
    %v1242 = vld [vmem:[#allocation8 + $0x11f8] sm:$0xff]
    %v1243 = vld [vmem:[#allocation7] sm:$0xff]
    %v1244 = vld [vmem:[#allocation7 + $0x8] sm:$0xf]
    %v1247 = vlaneseq
    %v1248 = vshrl.u32 %v1247, 7
    %v1249 = vsub.s32 0, %v1248
    %v1250 = vrot.slane %v1243, %v1249
    %v1251 = vlaneseq
    %v1252 = vshrl.u32 %v1251, 7
    %v1253 = vsub.s32 1, %v1252
    %v1254 = vrot.slane %v1243, %v1253
    %v1255 = vlaneseq
    %v1256 = vshrl.u32 %v1255, 7
    %v1257 = vsub.s32 2, %v1256
    %v1258 = vrot.slane %v1243, %v1257
    %v1259 = vlaneseq
    %v1260 = vshrl.u32 %v1259, 7
    %v1261 = vsub.s32 3, %v1260
    %v1262 = vrot.slane %v1243, %v1261
    %v1263 = vlaneseq
    %v1264 = vshrl.u32 %v1263, 7
    %v1265 = vsub.s32 4, %v1264
    %v1266 = vrot.slane %v1243, %v1265
    %v1267 = vlaneseq
    %v1268 = vshrl.u32 %v1267, 7
    %v1269 = vsub.s32 5, %v1268
    %v1270 = vrot.slane %v1243, %v1269
    %v1271 = vlaneseq
    %v1272 = vshrl.u32 %v1271, 7
    %v1273 = vsub.s32 6, %v1272
    %v1274 = vrot.slane %v1243, %v1273
    %v1275 = vlaneseq
    %v1276 = vshrl.u32 %v1275, 7
    %v1277 = vsub.s32 7, %v1276
    %v1278 = vrot.slane %v1243, %v1277
    %v1279 = vlaneseq
    %v1280 = vshrl.u32 %v1279, 7
    %v1281 = vsub.s32 0, %v1280
    %v1282 = vrot.slane %v1244, %v1281
    %v1283 = vlaneseq
    %v1284 = vshrl.u32 %v1283, 7
    %v1285 = vsub.s32 1, %v1284
    %v1286 = vrot.slane %v1244, %v1285
    %v1287 = vlaneseq
    %v1288 = vshrl.u32 %v1287, 7
    %v1289 = vsub.s32 2, %v1288
    %v1290 = vrot.slane %v1244, %v1289
    %v1291 = vlaneseq
    %v1292 = vshrl.u32 %v1291, 7
    %v1293 = vsub.s32 3, %v1292
    %v1294 = vrot.slane %v1244, %v1293
    %1307 = vmatprep.subr.mxu0 %v92
    %1308 = vmatpush1.msra.mxu0 %v91
    %1309 = vmatprep.subr.mxu0 %v104
    %1310 = vmatpush1.msra.mxu0 %v103
    %1311 = vmatprep.subr.mxu0 %v116
    %1312 = vmatpush1.msra.mxu0 %v115
    %1313 = vmatprep.subr.mxu0 %v128
    %1314 = vmatpush1.msra.mxu0 %v127
    %1315 = vmatprep.subr.mxu0 %v140
    %1316 = vmatpush1.msra.mxu0 %v139
    %1317 = vmatprep.subr.mxu0 %v152
    %1318 = vmatpush1.msra.mxu0 %v151
    %1319 = vmatprep.subr.mxu0 %v164
    %1320 = vmatpush1.msra.mxu0 %v163
    %1321 = vmatprep.subr.mxu0 %v176
    %1322 = vmatpush1.msra.mxu0 %v175
    %1323 = vmatprep.subr.mxu0 %v188
    %1324 = vmatpush1.msra.mxu0 %v187
    %1325 = vmatprep.subr.mxu0 %v200
    %1326 = vmatpush1.msra.mxu0 %v199
    %1327 = vmatprep.subr.mxu0 %v212
    %1328 = vmatpush1.msra.mxu0 %v211
    %1329 = vmatprep.subr.mxu0 %v224
    %1330 = vmatpush1.msra.mxu0 %v223
    %1331 = vmatprep.subr.mxu0 %v236
    %1332 = vmatpush1.msra.mxu0 %v235
    %1333 = vmatprep.subr.mxu0 %v248
    %1334 = vmatpush1.msra.mxu0 %v247
    %1335 = vmatprep.subr.mxu0 %v260
    %1336 = vmatpush1.msra.mxu0 %v259
    %1337 = vmatprep.subr.mxu0 %v272
    %1338 = vmatpush1.msra.mxu0 %v271
    %1339 = vmatprep.subr.mxu0 %v284
    %1340 = vmatpush1.msra.mxu0 %v283
    %1341 = vmatprep.subr.mxu0 %v296
    %1342 = vmatpush1.msra.mxu0 %v295
    %1343 = vmatprep.subr.mxu0 %v308
    %1344 = vmatpush1.msra.mxu0 %v307
    %1345 = vmatprep.subr.mxu0 %v320
    %1346 = vmatpush1.msra.mxu0 %v319
    %1347 = vmatprep.subr.mxu0 %v332
    %1348 = vmatpush1.msra.mxu0 %v331
    %1349 = vmatprep.subr.mxu0 %v344
    %1350 = vmatpush1.msra.mxu0 %v343
    %1351 = vmatprep.subr.mxu0 %v356
    %1352 = vmatpush1.msra.mxu0 %v355
    %1353 = vmatprep.subr.mxu0 %v368
    %1354 = vmatpush1.msra.mxu0 %v367
    %1355 = vmatprep.subr.mxu0 %v380
    %1356 = vmatpush1.msra.mxu0 %v379
    %1357 = vmatprep.subr.mxu0 %v392
    %1358 = vmatpush1.msra.mxu0 %v391
    %1359 = vmatprep.subr.mxu0 %v404
    %1360 = vmatpush1.msra.mxu0 %v403
    %1361 = vmatprep.subr.mxu0 %v416
    %1362 = vmatpush1.msra.mxu0 %v415
    %1363 = vmatprep.subr.mxu0 %v428
    %1364 = vmatpush1.msra.mxu0 %v427
    %1365 = vmatprep.subr.mxu0 %v440
    %1366 = vmatpush1.msra.mxu0 %v439
    %1367 = vmatprep.subr.mxu0 %v452
    %1368 = vmatpush1.msra.mxu0 %v451
    %1369 = vmatprep.subr.mxu0 %v464
    %1370 = vmatpush1.msra.mxu0 %v463
    %1371 = vmatprep.mubr.f32.mxu0 %v86
    %1372 = vmatmul.mubr.f32.gmra.mrb[0].mxu0 %v85
    %v1373 = vpop.f32.mrb[0].mxu0
    %v1374 = vadd.f32 %v1250, %v1373
    %v1375 = vpop.f32.mrb[0].mxu0
    %v1376 = vadd.f32 %v1254, %v1375
    %1377 = vmatprep.mubr.f32.mxu0 %v89
    %1378 = vmatmul.mubr.f32.gmra.mrb[0].mxu0 %v88
    %v1379 = vpop.f32.mrb[0].mxu0
    %v1380 = vadd.f32 %v1250, %v1379
    %v1381 = vpop.f32.mrb[0].mxu0
    %v1382 = vadd.f32 %v1254, %v1381
    %1383 = vdwg.mxu0
    %1384 = vmatprep.subr.mxu0 %v476
    %1385 = vmatpush1.msra.mxu0 %v475
    %1386 = vmatprep.subr.mxu0 %v488
    %1387 = vmatpush1.msra.mxu0 %v487
    %1388 = vmatprep.subr.mxu0 %v500
    %1389 = vmatpush1.msra.mxu0 %v499
    %1390 = vmatprep.subr.mxu0 %v512
    %1391 = vmatpush1.msra.mxu0 %v511
    %1392 = vmatprep.subr.mxu0 %v524
    %1393 = vmatpush1.msra.mxu0 %v523
    %1394 = vmatprep.subr.mxu0 %v536
    %1395 = vmatpush1.msra.mxu0 %v535
    %1396 = vmatprep.subr.mxu0 %v548
    %1397 = vmatpush1.msra.mxu0 %v547
    %1398 = vmatprep.subr.mxu0 %v560
    %1399 = vmatpush1.msra.mxu0 %v559
    %1400 = vmatprep.subr.mxu0 %v572
    %1401 = vmatpush1.msra.mxu0 %v571
    %1402 = vmatprep.subr.mxu0 %v584
    %1403 = vmatpush1.msra.mxu0 %v583
    %1404 = vmatprep.subr.mxu0 %v596
    %1405 = vmatpush1.msra.mxu0 %v595
    %1406 = vmatprep.subr.mxu0 %v608
    %1407 = vmatpush1.msra.mxu0 %v607
    %1408 = vmatprep.subr.mxu0 %v620
    %1409 = vmatpush1.msra.mxu0 %v619
    %1410 = vmatprep.subr.mxu0 %v632
    %1411 = vmatpush1.msra.mxu0 %v631
    %1412 = vmatprep.subr.mxu0 %v644
    %1413 = vmatpush1.msra.mxu0 %v643
    %1414 = vmatprep.subr.mxu0 %v656
    %1415 = vmatpush1.msra.mxu0 %v655
    %1416 = vmatprep.subr.mxu0 0.0
    %1417 = vmatpush1.msra.mxu0 0.0
    %1418 = vmatprep.subr.mxu0 0.0
    %1419 = vmatpush1.msra.mxu0 0.0
    %1420 = vmatprep.subr.mxu0 0.0
    %1421 = vmatpush1.msra.mxu0 0.0
    %1422 = vmatprep.subr.mxu0 0.0
    %1423 = vmatpush1.msra.mxu0 0.0
    %1424 = vmatprep.subr.mxu0 0.0
    %1425 = vmatpush1.msra.mxu0 0.0
    %1426 = vmatprep.subr.mxu0 0.0
    %1427 = vmatpush1.msra.mxu0 0.0
    %1428 = vmatprep.subr.mxu0 0.0
    %1429 = vmatpush1.msra.mxu0 0.0
    %1430 = vmatprep.subr.mxu0 0.0
    %1431 = vmatpush1.msra.mxu0 0.0
    %1432 = vmatprep.subr.mxu0 0.0
    %1433 = vmatpush1.msra.mxu0 0.0
    %1434 = vmatprep.subr.mxu0 0.0
    %1435 = vmatpush1.msra.mxu0 0.0
    %1436 = vmatprep.subr.mxu0 0.0
    %1437 = vmatpush1.msra.mxu0 0.0
    %1438 = vmatprep.subr.mxu0 0.0
    %1439 = vmatpush1.msra.mxu0 0.0
    %1440 = vmatprep.subr.mxu0 0.0
    %1441 = vmatpush1.msra.mxu0 0.0
    %1442 = vmatprep.subr.mxu0 0.0
    %1443 = vmatpush1.msra.mxu0 0.0
    %1444 = vmatprep.subr.mxu0 0.0
    %1445 = vmatpush1.msra.mxu0 0.0
    %1446 = vmatprep.subr.mxu0 0.0
    %1447 = vmatpush1.msra.mxu0 0.0
    %1448 = vmatprep.mubr.f32.mxu0 0.0
    %1449 = vmatmul.mubr.f32.gmra.mrb[0].mxu0 %v87
    %v1450 = vpop.f32.mrb[0].mxu0
    %v1451 = vadd.f32 %v1374, %v1450
    %v1452 = vpop.f32.mrb[0].mxu0
    %v1453 = vadd.f32 %v1376, %v1452
    %1454 = vmatprep.mubr.f32.mxu0 0.0
    %1455 = vmatmul.mubr.f32.gmra.mrb[0].mxu0 %v90
    %v1456 = vpop.f32.mrb[0].mxu0
    %v1457 = vadd.f32 %v1380, %v1456
    %v1458 = vpop.f32.mrb[0].mxu0
    %v1459 = vadd.f32 %v1382, %v1458
    %1460 = vdwg.mxu0
    %1461 = vmatprep.subr.mxu0 %v94
    %1462 = vmatpush1.msra.mxu0 %v93
    %1463 = vmatprep.subr.mxu0 %v106
    %1464 = vmatpush1.msra.mxu0 %v105
    %1465 = vmatprep.subr.mxu0 %v118
    %1466 = vmatpush1.msra.mxu0 %v117
    %1467 = vmatprep.subr.mxu0 %v130
    %1468 = vmatpush1.msra.mxu0 %v129
    %1469 = vmatprep.subr.mxu0 %v142
    %1470 = vmatpush1.msra.mxu0 %v141
    %1471 = vmatprep.subr.mxu0 %v154
    %1472 = vmatpush1.msra.mxu0 %v153
    %1473 = vmatprep.subr.mxu0 %v166
    %1474 = vmatpush1.msra.mxu0 %v165
    %1475 = vmatprep.subr.mxu0 %v178
    %1476 = vmatpush1.msra.mxu0 %v177
    %1477 = vmatprep.subr.mxu0 %v190
    %1478 = vmatpush1.msra.mxu0 %v189
    %1479 = vmatprep.subr.mxu0 %v202
    %1480 = vmatpush1.msra.mxu0 %v201
    %1481 = vmatprep.subr.mxu0 %v214
    %1482 = vmatpush1.msra.mxu0 %v213
    %1483 = vmatprep.subr.mxu0 %v226
    %1484 = vmatpush1.msra.mxu0 %v225
    %1485 = vmatprep.subr.mxu0 %v238
    %1486 = vmatpush1.msra.mxu0 %v237
    %1487 = vmatprep.subr.mxu0 %v250
    %1488 = vmatpush1.msra.mxu0 %v249
    %1489 = vmatprep.subr.mxu0 %v262
    %1490 = vmatpush1.msra.mxu0 %v261
    %1491 = vmatprep.subr.mxu0 %v274
    %1492 = vmatpush1.msra.mxu0 %v273
    %1493 = vmatprep.subr.mxu0 %v286
    %1494 = vmatpush1.msra.mxu0 %v285
    %1495 = vmatprep.subr.mxu0 %v298
    %1496 = vmatpush1.msra.mxu0 %v297
    %1497 = vmatprep.subr.mxu0 %v310
    %1498 = vmatpush1.msra.mxu0 %v309
    %1499 = vmatprep.subr.mxu0 %v322
    %1500 = vmatpush1.msra.mxu0 %v321
    %1501 = vmatprep.subr.mxu0 %v334
    %1502 = vmatpush1.msra.mxu0 %v333
    %1503 = vmatprep.subr.mxu0 %v346
    %1504 = vmatpush1.msra.mxu0 %v345
    %1505 = vmatprep.subr.mxu0 %v358
    %1506 = vmatpush1.msra.mxu0 %v357
    %1507 = vmatprep.subr.mxu0 %v370
    %1508 = vmatpush1.msra.mxu0 %v369
    %1509 = vmatprep.subr.mxu0 %v382
    %1510 = vmatpush1.msra.mxu0 %v381
    %1511 = vmatprep.subr.mxu0 %v394
    %1512 = vmatpush1.msra.mxu0 %v393
    %1513 = vmatprep.subr.mxu0 %v406
    %1514 = vmatpush1.msra.mxu0 %v405
    %1515 = vmatprep.subr.mxu0 %v418
    %1516 = vmatpush1.msra.mxu0 %v417
    %1517 = vmatprep.subr.mxu0 %v430
    %1518 = vmatpush1.msra.mxu0 %v429
    %1519 = vmatprep.subr.mxu0 %v442
    %1520 = vmatpush1.msra.mxu0 %v441
    %1521 = vmatprep.subr.mxu0 %v454
    %1522 = vmatpush1.msra.mxu0 %v453
    %1523 = vmatprep.subr.mxu0 %v466
    %1524 = vmatpush1.msra.mxu0 %v465
    %1525 = vmatprep.mubr.f32.mxu0 %v86
    %1526 = vmatmul.mubr.f32.gmra.mrb[0].mxu0 %v85
    %v1527 = vpop.f32.mrb[0].mxu0
    %v1528 = vadd.f32 %v1258, %v1527
    %v1529 = vpop.f32.mrb[0].mxu0
    %v1530 = vadd.f32 %v1262, %v1529
    %1531 = vmatprep.mubr.f32.mxu0 %v89
    %1532 = vmatmul.mubr.f32.gmra.mrb[0].mxu0 %v88
    %v1533 = vpop.f32.mrb[0].mxu0
    %v1534 = vadd.f32 %v1258, %v1533
    %v1535 = vpop.f32.mrb[0].mxu0
    %v1536 = vadd.f32 %v1262, %v1535
    %1537 = vdwg.mxu0
    %1538 = vmatprep.subr.mxu0 %v478
    %1539 = vmatpush1.msra.mxu0 %v477
    %1540 = vmatprep.subr.mxu0 %v490
    %1541 = vmatpush1.msra.mxu0 %v489
    %1542 = vmatprep.subr.mxu0 %v502
    %1543 = vmatpush1.msra.mxu0 %v501
    %1544 = vmatprep.subr.mxu0 %v514
    %1545 = vmatpush1.msra.mxu0 %v513
    %1546 = vmatprep.subr.mxu0 %v526
    %1547 = vmatpush1.msra.mxu0 %v525
    %1548 = vmatprep.subr.mxu0 %v538
    %1549 = vmatpush1.msra.mxu0 %v537
    %1550 = vmatprep.subr.mxu0 %v550
    %1551 = vmatpush1.msra.mxu0 %v549
    %1552 = vmatprep.subr.mxu0 %v562
    %1553 = vmatpush1.msra.mxu0 %v561
    %1554 = vmatprep.subr.mxu0 %v574
    %1555 = vmatpush1.msra.mxu0 %v573
    %1556 = vmatprep.subr.mxu0 %v586
    %1557 = vmatpush1.msra.mxu0 %v585
    %1558 = vmatprep.subr.mxu0 %v598
    %1559 = vmatpush1.msra.mxu0 %v597
    %1560 = vmatprep.subr.mxu0 %v610
    %1561 = vmatpush1.msra.mxu0 %v609
    %1562 = vmatprep.subr.mxu0 %v622
    %1563 = vmatpush1.msra.mxu0 %v621
    %1564 = vmatprep.subr.mxu0 %v634
    %1565 = vmatpush1.msra.mxu0 %v633
    %1566 = vmatprep.subr.mxu0 %v646
    %1567 = vmatpush1.msra.mxu0 %v645
    %1568 = vmatprep.subr.mxu0 %v658
    %1569 = vmatpush1.msra.mxu0 %v657
    %1570 = vmatprep.subr.mxu0 0.0
    %1571 = vmatpush1.msra.mxu0 0.0
    %1572 = vmatprep.subr.mxu0 0.0
    %1573 = vmatpush1.msra.mxu0 0.0
    %1574 = vmatprep.subr.mxu0 0.0
    %1575 = vmatpush1.msra.mxu0 0.0
    %1576 = vmatprep.subr.mxu0 0.0
    %1577 = vmatpush1.msra.mxu0 0.0
    %1578 = vmatprep.subr.mxu0 0.0
    %1579 = vmatpush1.msra.mxu0 0.0
    %1580 = vmatprep.subr.mxu0 0.0
    %1581 = vmatpush1.msra.mxu0 0.0
    %1582 = vmatprep.subr.mxu0 0.0
    %1583 = vmatpush1.msra.mxu0 0.0
    %1584 = vmatprep.subr.mxu0 0.0
    %1585 = vmatpush1.msra.mxu0 0.0
    %1586 = vmatprep.subr.mxu0 0.0
    %1587 = vmatpush1.msra.mxu0 0.0
    %1588 = vmatprep.subr.mxu0 0.0
    %1589 = vmatpush1.msra.mxu0 0.0
    %1590 = vmatprep.subr.mxu0 0.0
    %1591 = vmatpush1.msra.mxu0 0.0
    %1592 = vmatprep.subr.mxu0 0.0
    %1593 = vmatpush1.msra.mxu0 0.0
    %1594 = vmatprep.subr.mxu0 0.0
    %1595 = vmatpush1.msra.mxu0 0.0
    %1596 = vmatprep.subr.mxu0 0.0
    %1597 = vmatpush1.msra.mxu0 0.0
    %1598 = vmatprep.subr.mxu0 0.0
    %1599 = vmatpush1.msra.mxu0 0.0
    %1600 = vmatprep.subr.mxu0 0.0
    %1601 = vmatpush1.msra.mxu0 0.0
    %1602 = vmatprep.mubr.f32.mxu0 0.0
    %1603 = vmatmul.mubr.f32.gmra.mrb[0].mxu0 %v87
    %v1604 = vpop.f32.mrb[0].mxu0
    %v1605 = vadd.f32 %v1528, %v1604
    %v1606 = vpop.f32.mrb[0].mxu0
    %v1607 = vadd.f32 %v1530, %v1606
    %1608 = vmatprep.mubr.f32.mxu0 0.0
    %1609 = vmatmul.mubr.f32.gmra.mrb[0].mxu0 %v90
    %v1610 = vpop.f32.mrb[0].mxu0
    %v1611 = vadd.f32 %v1534, %v1610
    %v1612 = vpop.f32.mrb[0].mxu0
    %v1613 = vadd.f32 %v1536, %v1612
    %1614 = vdwg.mxu0
    %1615 = vmatprep.subr.mxu0 %v96
    %1616 = vmatpush1.msra.mxu0 %v95
    %1617 = vmatprep.subr.mxu0 %v108
    %1618 = vmatpush1.msra.mxu0 %v107
    %1619 = vmatprep.subr.mxu0 %v120
    %1620 = vmatpush1.msra.mxu0 %v119
    %1621 = vmatprep.subr.mxu0 %v132
    %1622 = vmatpush1.msra.mxu0 %v131
    %1623 = vmatprep.subr.mxu0 %v144
    %1624 = vmatpush1.msra.mxu0 %v143
    %1625 = vmatprep.subr.mxu0 %v156
    %1626 = vmatpush1.msra.mxu0 %v155
    %1627 = vmatprep.subr.mxu0 %v168
    %1628 = vmatpush1.msra.mxu0 %v167
    %1629 = vmatprep.subr.mxu0 %v180
    %1630 = vmatpush1.msra.mxu0 %v179
    %1631 = vmatprep.subr.mxu0 %v192
    %1632 = vmatpush1.msra.mxu0 %v191
    %1633 = vmatprep.subr.mxu0 %v204
    %1634 = vmatpush1.msra.mxu0 %v203
    %1635 = vmatprep.subr.mxu0 %v216
    %1636 = vmatpush1.msra.mxu0 %v215
    %1637 = vmatprep.subr.mxu0 %v228
    %1638 = vmatpush1.msra.mxu0 %v227
    %1639 = vmatprep.subr.mxu0 %v240
    %1640 = vmatpush1.msra.mxu0 %v239
    %1641 = vmatprep.subr.mxu0 %v252
    %1642 = vmatpush1.msra.mxu0 %v251
    %1643 = vmatprep.subr.mxu0 %v264
    %1644 = vmatpush1.msra.mxu0 %v263
    %1645 = vmatprep.subr.mxu0 %v276
    %1646 = vmatpush1.msra.mxu0 %v275
    %1647 = vmatprep.subr.mxu0 %v288
    %1648 = vmatpush1.msra.mxu0 %v287
    %1649 = vmatprep.subr.mxu0 %v300
    %1650 = vmatpush1.msra.mxu0 %v299
    %1651 = vmatprep.subr.mxu0 %v312
    %1652 = vmatpush1.msra.mxu0 %v311
    %1653 = vmatprep.subr.mxu0 %v324
    %1654 = vmatpush1.msra.mxu0 %v323
    %1655 = vmatprep.subr.mxu0 %v336
    %1656 = vmatpush1.msra.mxu0 %v335
    %1657 = vmatprep.subr.mxu0 %v348
    %1658 = vmatpush1.msra.mxu0 %v347
    %1659 = vmatprep.subr.mxu0 %v360
    %1660 = vmatpush1.msra.mxu0 %v359
    %1661 = vmatprep.subr.mxu0 %v372
    %1662 = vmatpush1.msra.mxu0 %v371
    %1663 = vmatprep.subr.mxu0 %v384
    %1664 = vmatpush1.msra.mxu0 %v383
    %1665 = vmatprep.subr.mxu0 %v396
    %1666 = vmatpush1.msra.mxu0 %v395
    %1667 = vmatprep.subr.mxu0 %v408
    %1668 = vmatpush1.msra.mxu0 %v407
    %1669 = vmatprep.subr.mxu0 %v420
    %1670 = vmatpush1.msra.mxu0 %v419
    %1671 = vmatprep.subr.mxu0 %v432
    %1672 = vmatpush1.msra.mxu0 %v431
    %1673 = vmatprep.subr.mxu0 %v444
    %1674 = vmatpush1.msra.mxu0 %v443
    %1675 = vmatprep.subr.mxu0 %v456
    %1676 = vmatpush1.msra.mxu0 %v455
    %1677 = vmatprep.subr.mxu0 %v468
    %1678 = vmatpush1.msra.mxu0 %v467
    %1679 = vmatprep.mubr.f32.mxu0 %v86
    %1680 = vmatmul.mubr.f32.gmra.mrb[0].mxu0 %v85
    %v1681 = vpop.f32.mrb[0].mxu0
    %v1682 = vadd.f32 %v1266, %v1681
    %v1683 = vpop.f32.mrb[0].mxu0
    %v1684 = vadd.f32 %v1270, %v1683
    %1685 = vmatprep.mubr.f32.mxu0 %v89
    %1686 = vmatmul.mubr.f32.gmra.mrb[0].mxu0 %v88
    %v1687 = vpop.f32.mrb[0].mxu0
    %v1688 = vadd.f32 %v1266, %v1687
    %v1689 = vpop.f32.mrb[0].mxu0
    %v1690 = vadd.f32 %v1270, %v1689
    %1691 = vdwg.mxu0
    %1692 = vmatprep.subr.mxu0 %v480
    %1693 = vmatpush1.msra.mxu0 %v479
    %1694 = vmatprep.subr.mxu0 %v492
    %1695 = vmatpush1.msra.mxu0 %v491
    %1696 = vmatprep.subr.mxu0 %v504
    %1697 = vmatpush1.msra.mxu0 %v503
    %1698 = vmatprep.subr.mxu0 %v516
    %1699 = vmatpush1.msra.mxu0 %v515
    %1700 = vmatprep.subr.mxu0 %v528
    %1701 = vmatpush1.msra.mxu0 %v527
    %1702 = vmatprep.subr.mxu0 %v540
    %1703 = vmatpush1.msra.mxu0 %v539
    %1704 = vmatprep.subr.mxu0 %v552
    %1705 = vmatpush1.msra.mxu0 %v551
    %1706 = vmatprep.subr.mxu0 %v564
    %1707 = vmatpush1.msra.mxu0 %v563
    %1708 = vmatprep.subr.mxu0 %v576
    %1709 = vmatpush1.msra.mxu0 %v575
    %1710 = vmatprep.subr.mxu0 %v588
    %1711 = vmatpush1.msra.mxu0 %v587
    %1712 = vmatprep.subr.mxu0 %v600
    %1713 = vmatpush1.msra.mxu0 %v599
    %1714 = vmatprep.subr.mxu0 %v612
    %1715 = vmatpush1.msra.mxu0 %v611
    %1716 = vmatprep.subr.mxu0 %v624
    %1717 = vmatpush1.msra.mxu0 %v623
    %1718 = vmatprep.subr.mxu0 %v636
    %1719 = vmatpush1.msra.mxu0 %v635
    %1720 = vmatprep.subr.mxu0 %v648
    %1721 = vmatpush1.msra.mxu0 %v647
    %1722 = vmatprep.subr.mxu0 %v660
    %1723 = vmatpush1.msra.mxu0 %v659
    %1724 = vmatprep.subr.mxu0 0.0
    %1725 = vmatpush1.msra.mxu0 0.0
    %1726 = vmatprep.subr.mxu0 0.0
    %1727 = vmatpush1.msra.mxu0 0.0
    %1728 = vmatprep.subr.mxu0 0.0
    %1729 = vmatpush1.msra.mxu0 0.0
    %1730 = vmatprep.subr.mxu0 0.0
    %1731 = vmatpush1.msra.mxu0 0.0
    %1732 = vmatprep.subr.mxu0 0.0
    %1733 = vmatpush1.msra.mxu0 0.0
    %1734 = vmatprep.subr.mxu0 0.0
    %1735 = vmatpush1.msra.mxu0 0.0
    %1736 = vmatprep.subr.mxu0 0.0
    %1737 = vmatpush1.msra.mxu0 0.0
    %1738 = vmatprep.subr.mxu0 0.0
    %1739 = vmatpush1.msra.mxu0 0.0
    %1740 = vmatprep.subr.mxu0 0.0
    %1741 = vmatpush1.msra.mxu0 0.0
    %1742 = vmatprep.subr.mxu0 0.0
    %1743 = vmatpush1.msra.mxu0 0.0
    %1744 = vmatprep.subr.mxu0 0.0
    %1745 = vmatpush1.msra.mxu0 0.0
    %1746 = vmatprep.subr.mxu0 0.0
    %1747 = vmatpush1.msra.mxu0 0.0
    %1748 = vmatprep.subr.mxu0 0.0
    %1749 = vmatpush1.msra.mxu0 0.0
    %1750 = vmatprep.subr.mxu0 0.0
    %1751 = vmatpush1.msra.mxu0 0.0
    %1752 = vmatprep.subr.mxu0 0.0
    %1753 = vmatpush1.msra.mxu0 0.0
    %1754 = vmatprep.subr.mxu0 0.0
    %1755 = vmatpush1.msra.mxu0 0.0
    %1756 = vmatprep.mubr.f32.mxu0 0.0
    %1757 = vmatmul.mubr.f32.gmra.mrb[0].mxu0 %v87
    %v1758 = vpop.f32.mrb[0].mxu0
    %v1759 = vadd.f32 %v1682, %v1758
    %v1760 = vpop.f32.mrb[0].mxu0
    %v1761 = vadd.f32 %v1684, %v1760
    %1762 = vmatprep.mubr.f32.mxu0 0.0
    %1763 = vmatmul.mubr.f32.gmra.mrb[0].mxu0 %v90
    %v1764 = vpop.f32.mrb[0].mxu0
    %v1765 = vadd.f32 %v1688, %v1764
    %v1766 = vpop.f32.mrb[0].mxu0
    %v1767 = vadd.f32 %v1690, %v1766
    %1768 = vdwg.mxu0
    %1769 = vmatprep.subr.mxu0 %v98
    %1770 = vmatpush1.msra.mxu0 %v97
    %1771 = vmatprep.subr.mxu0 %v110
    %1772 = vmatpush1.msra.mxu0 %v109
    %1773 = vmatprep.subr.mxu0 %v122
    %1774 = vmatpush1.msra.mxu0 %v121
    %1775 = vmatprep.subr.mxu0 %v134
    %1776 = vmatpush1.msra.mxu0 %v133
    %1777 = vmatprep.subr.mxu0 %v146
    %1778 = vmatpush1.msra.mxu0 %v145
    %1779 = vmatprep.subr.mxu0 %v158
    %1780 = vmatpush1.msra.mxu0 %v157
    %1781 = vmatprep.subr.mxu0 %v170
    %1782 = vmatpush1.msra.mxu0 %v169
    %1783 = vmatprep.subr.mxu0 %v182
    %1784 = vmatpush1.msra.mxu0 %v181
    %1785 = vmatprep.subr.mxu0 %v194
    %1786 = vmatpush1.msra.mxu0 %v193
    %1787 = vmatprep.subr.mxu0 %v206
    %1788 = vmatpush1.msra.mxu0 %v205
    %1789 = vmatprep.subr.mxu0 %v218
    %1790 = vmatpush1.msra.mxu0 %v217
    %1791 = vmatprep.subr.mxu0 %v230
    %1792 = vmatpush1.msra.mxu0 %v229
    %1793 = vmatprep.subr.mxu0 %v242
    %1794 = vmatpush1.msra.mxu0 %v241
    %1795 = vmatprep.subr.mxu0 %v254
    %1796 = vmatpush1.msra.mxu0 %v253
    %1797 = vmatprep.subr.mxu0 %v266
    %1798 = vmatpush1.msra.mxu0 %v265
    %1799 = vmatprep.subr.mxu0 %v278
    %1800 = vmatpush1.msra.mxu0 %v277
    %1801 = vmatprep.subr.mxu0 %v290
    %1802 = vmatpush1.msra.mxu0 %v289
    %1803 = vmatprep.subr.mxu0 %v302
    %1804 = vmatpush1.msra.mxu0 %v301
    %1805 = vmatprep.subr.mxu0 %v314
    %1806 = vmatpush1.msra.mxu0 %v313
    %1807 = vmatprep.subr.mxu0 %v326
    %1808 = vmatpush1.msra.mxu0 %v325
    %1809 = vmatprep.subr.mxu0 %v338
    %1810 = vmatpush1.msra.mxu0 %v337
    %1811 = vmatprep.subr.mxu0 %v350
    %1812 = vmatpush1.msra.mxu0 %v349
    %1813 = vmatprep.subr.mxu0 %v362
    %1814 = vmatpush1.msra.mxu0 %v361
    %1815 = vmatprep.subr.mxu0 %v374
    %1816 = vmatpush1.msra.mxu0 %v373
    %1817 = vmatprep.subr.mxu0 %v386
    %1818 = vmatpush1.msra.mxu0 %v385
    %1819 = vmatprep.subr.mxu0 %v398
    %1820 = vmatpush1.msra.mxu0 %v397
    %1821 = vmatprep.subr.mxu0 %v410
    %1822 = vmatpush1.msra.mxu0 %v409
    %1823 = vmatprep.subr.mxu0 %v422
    %1824 = vmatpush1.msra.mxu0 %v421
    %1825 = vmatprep.subr.mxu0 %v434
    %1826 = vmatpush1.msra.mxu0 %v433
    %1827 = vmatprep.subr.mxu0 %v446
    %1828 = vmatpush1.msra.mxu0 %v445
    %1829 = vmatprep.subr.mxu0 %v458
    %1830 = vmatpush1.msra.mxu0 %v457
    %1831 = vmatprep.subr.mxu0 %v470
    %1832 = vmatpush1.msra.mxu0 %v469
    %1833 = vmatprep.mubr.f32.mxu0 %v86
    %1834 = vmatmul.mubr.f32.gmra.mrb[0].mxu0 %v85
    %v1835 = vpop.f32.mrb[0].mxu0
    %v1836 = vadd.f32 %v1274, %v1835
    %v1837 = vpop.f32.mrb[0].mxu0
    %v1838 = vadd.f32 %v1278, %v1837
    %1839 = vmatprep.mubr.f32.mxu0 %v89
    %1840 = vmatmul.mubr.f32.gmra.mrb[0].mxu0 %v88
    %v1841 = vpop.f32.mrb[0].mxu0
    %v1842 = vadd.f32 %v1274, %v1841
    %v1843 = vpop.f32.mrb[0].mxu0
    %v1844 = vadd.f32 %v1278, %v1843
    %1845 = vdwg.mxu0
    %1846 = vmatprep.subr.mxu0 %v482
    %1847 = vmatpush1.msra.mxu0 %v481
    %1848 = vmatprep.subr.mxu0 %v494
    %1849 = vmatpush1.msra.mxu0 %v493
    %1850 = vmatprep.subr.mxu0 %v506
    %1851 = vmatpush1.msra.mxu0 %v505
    %1852 = vmatprep.subr.mxu0 %v518
    %1853 = vmatpush1.msra.mxu0 %v517
    %1854 = vmatprep.subr.mxu0 %v530
    %1855 = vmatpush1.msra.mxu0 %v529
    %1856 = vmatprep.subr.mxu0 %v542
    %1857 = vmatpush1.msra.mxu0 %v541
    %1858 = vmatprep.subr.mxu0 %v554
    %1859 = vmatpush1.msra.mxu0 %v553
    %1860 = vmatprep.subr.mxu0 %v566
    %1861 = vmatpush1.msra.mxu0 %v565
    %1862 = vmatprep.subr.mxu0 %v578
    %1863 = vmatpush1.msra.mxu0 %v577
    %1864 = vmatprep.subr.mxu0 %v590
    %1865 = vmatpush1.msra.mxu0 %v589
    %1866 = vmatprep.subr.mxu0 %v602
    %1867 = vmatpush1.msra.mxu0 %v601
    %1868 = vmatprep.subr.mxu0 %v614
    %1869 = vmatpush1.msra.mxu0 %v613
    %1870 = vmatprep.subr.mxu0 %v626
    %1871 = vmatpush1.msra.mxu0 %v625
    %1872 = vmatprep.subr.mxu0 %v638
    %1873 = vmatpush1.msra.mxu0 %v637
    %1874 = vmatprep.subr.mxu0 %v650
    %1875 = vmatpush1.msra.mxu0 %v649
    %1876 = vmatprep.subr.mxu0 %v662
    %1877 = vmatpush1.msra.mxu0 %v661
    %1878 = vmatprep.subr.mxu0 0.0
    %1879 = vmatpush1.msra.mxu0 0.0
    %1880 = vmatprep.subr.mxu0 0.0
    %1881 = vmatpush1.msra.mxu0 0.0
    %1882 = vmatprep.subr.mxu0 0.0
    %1883 = vmatpush1.msra.mxu0 0.0
    %1884 = vmatprep.subr.mxu0 0.0
    %1885 = vmatpush1.msra.mxu0 0.0
    %1886 = vmatprep.subr.mxu0 0.0
    %1887 = vmatpush1.msra.mxu0 0.0
    %1888 = vmatprep.subr.mxu0 0.0
    %1889 = vmatpush1.msra.mxu0 0.0
    %1890 = vmatprep.subr.mxu0 0.0
    %1891 = vmatpush1.msra.mxu0 0.0
    %1892 = vmatprep.subr.mxu0 0.0
    %1893 = vmatpush1.msra.mxu0 0.0
    %1894 = vmatprep.subr.mxu0 0.0
    %1895 = vmatpush1.msra.mxu0 0.0
    %1896 = vmatprep.subr.mxu0 0.0
    %1897 = vmatpush1.msra.mxu0 0.0
    %1898 = vmatprep.subr.mxu0 0.0
    %1899 = vmatpush1.msra.mxu0 0.0
    %1900 = vmatprep.subr.mxu0 0.0
    %1901 = vmatpush1.msra.mxu0 0.0
    %1902 = vmatprep.subr.mxu0 0.0
    %1903 = vmatpush1.msra.mxu0 0.0
    %1904 = vmatprep.subr.mxu0 0.0
    %1905 = vmatpush1.msra.mxu0 0.0
    %1906 = vmatprep.subr.mxu0 0.0
    %1907 = vmatpush1.msra.mxu0 0.0
    %1908 = vmatprep.subr.mxu0 0.0
    %1909 = vmatpush1.msra.mxu0 0.0
    %1910 = vmatprep.mubr.f32.mxu0 0.0
    %1911 = vmatmul.mubr.f32.gmra.mrb[0].mxu0 %v87
    %v1912 = vpop.f32.mrb[0].mxu0
    %v1913 = vadd.f32 %v1836, %v1912
    %v1914 = vpop.f32.mrb[0].mxu0
    %v1915 = vadd.f32 %v1838, %v1914
    %1916 = vmatprep.mubr.f32.mxu0 0.0
    %1917 = vmatmul.mubr.f32.gmra.mrb[0].mxu0 %v90
    %v1918 = vpop.f32.mrb[0].mxu0
    %v1919 = vadd.f32 %v1842, %v1918
    %v1920 = vpop.f32.mrb[0].mxu0
    %v1921 = vadd.f32 %v1844, %v1920
    %1922 = vdwg.mxu0
    %1923 = vmatprep.subr.mxu0 %v100
    %1924 = vmatpush1.msra.mxu0 %v99
    %1925 = vmatprep.subr.mxu0 %v112
    %1926 = vmatpush1.msra.mxu0 %v111
    %1927 = vmatprep.subr.mxu0 %v124
    %1928 = vmatpush1.msra.mxu0 %v123
    %1929 = vmatprep.subr.mxu0 %v136
    %1930 = vmatpush1.msra.mxu0 %v135
    %1931 = vmatprep.subr.mxu0 %v148
    %1932 = vmatpush1.msra.mxu0 %v147
    %1933 = vmatprep.subr.mxu0 %v160
    %1934 = vmatpush1.msra.mxu0 %v159
    %1935 = vmatprep.subr.mxu0 %v172
    %1936 = vmatpush1.msra.mxu0 %v171
    %1937 = vmatprep.subr.mxu0 %v184
    %1938 = vmatpush1.msra.mxu0 %v183
    %1939 = vmatprep.subr.mxu0 %v196
    %1940 = vmatpush1.msra.mxu0 %v195
    %1941 = vmatprep.subr.mxu0 %v208
    %1942 = vmatpush1.msra.mxu0 %v207
    %1943 = vmatprep.subr.mxu0 %v220
    %1944 = vmatpush1.msra.mxu0 %v219
    %1945 = vmatprep.subr.mxu0 %v232
    %1946 = vmatpush1.msra.mxu0 %v231
    %1947 = vmatprep.subr.mxu0 %v244
    %1948 = vmatpush1.msra.mxu0 %v243
    %1949 = vmatprep.subr.mxu0 %v256
    %1950 = vmatpush1.msra.mxu0 %v255
    %1951 = vmatprep.subr.mxu0 %v268
    %1952 = vmatpush1.msra.mxu0 %v267
    %1953 = vmatprep.subr.mxu0 %v280
    %1954 = vmatpush1.msra.mxu0 %v279
    %1955 = vmatprep.subr.mxu0 %v292
    %1956 = vmatpush1.msra.mxu0 %v291
    %1957 = vmatprep.subr.mxu0 %v304
    %1958 = vmatpush1.msra.mxu0 %v303
    %1959 = vmatprep.subr.mxu0 %v316
    %1960 = vmatpush1.msra.mxu0 %v315
    %1961 = vmatprep.subr.mxu0 %v328
    %1962 = vmatpush1.msra.mxu0 %v327
    %1963 = vmatprep.subr.mxu0 %v340
    %1964 = vmatpush1.msra.mxu0 %v339
    %1965 = vmatprep.subr.mxu0 %v352
    %1966 = vmatpush1.msra.mxu0 %v351
    %1967 = vmatprep.subr.mxu0 %v364
    %1968 = vmatpush1.msra.mxu0 %v363
    %1969 = vmatprep.subr.mxu0 %v376
    %1970 = vmatpush1.msra.mxu0 %v375
    %1971 = vmatprep.subr.mxu0 %v388
    %1972 = vmatpush1.msra.mxu0 %v387
    %1973 = vmatprep.subr.mxu0 %v400
    %1974 = vmatpush1.msra.mxu0 %v399
    %1975 = vmatprep.subr.mxu0 %v412
    %1976 = vmatpush1.msra.mxu0 %v411
    %1977 = vmatprep.subr.mxu0 %v424
    %1978 = vmatpush1.msra.mxu0 %v423
    %1979 = vmatprep.subr.mxu0 %v436
    %1980 = vmatpush1.msra.mxu0 %v435
    %1981 = vmatprep.subr.mxu0 %v448
    %1982 = vmatpush1.msra.mxu0 %v447
    %1983 = vmatprep.subr.mxu0 %v460
    %1984 = vmatpush1.msra.mxu0 %v459
    %1985 = vmatprep.subr.mxu0 %v472
    %1986 = vmatpush1.msra.mxu0 %v471
    %1987 = vmatprep.mubr.f32.mxu0 %v86
    %1988 = vmatmul.mubr.f32.gmra.mrb[0].mxu0 %v85
    %v1989 = vpop.f32.mrb[0].mxu0
    %v1990 = vadd.f32 %v1282, %v1989
    %v1991 = vpop.f32.mrb[0].mxu0
    %v1992 = vadd.f32 %v1286, %v1991
    %1993 = vmatprep.mubr.f32.mxu0 %v89
    %1994 = vmatmul.mubr.f32.gmra.mrb[0].mxu0 %v88
    %v1995 = vpop.f32.mrb[0].mxu0
    %v1996 = vadd.f32 %v1282, %v1995
    %v1997 = vpop.f32.mrb[0].mxu0
    %v1998 = vadd.f32 %v1286, %v1997
    %1999 = vdwg.mxu0
    %2000 = vmatprep.subr.mxu0 %v484
    %2001 = vmatpush1.msra.mxu0 %v483
    %2002 = vmatprep.subr.mxu0 %v496
    %2003 = vmatpush1.msra.mxu0 %v495
    %2004 = vmatprep.subr.mxu0 %v508
    %2005 = vmatpush1.msra.mxu0 %v507
    %2006 = vmatprep.subr.mxu0 %v520
    %2007 = vmatpush1.msra.mxu0 %v519
    %2008 = vmatprep.subr.mxu0 %v532
    %2009 = vmatpush1.msra.mxu0 %v531
    %2010 = vmatprep.subr.mxu0 %v544
    %2011 = vmatpush1.msra.mxu0 %v543
    %2012 = vmatprep.subr.mxu0 %v556
    %2013 = vmatpush1.msra.mxu0 %v555
    %2014 = vmatprep.subr.mxu0 %v568
    %2015 = vmatpush1.msra.mxu0 %v567
    %2016 = vmatprep.subr.mxu0 %v580
    %2017 = vmatpush1.msra.mxu0 %v579
    %2018 = vmatprep.subr.mxu0 %v592
    %2019 = vmatpush1.msra.mxu0 %v591
    %2020 = vmatprep.subr.mxu0 %v604
    %2021 = vmatpush1.msra.mxu0 %v603
    %2022 = vmatprep.subr.mxu0 %v616
    %2023 = vmatpush1.msra.mxu0 %v615
    %2024 = vmatprep.subr.mxu0 %v628
    %2025 = vmatpush1.msra.mxu0 %v627
    %2026 = vmatprep.subr.mxu0 %v640
    %2027 = vmatpush1.msra.mxu0 %v639
    %2028 = vmatprep.subr.mxu0 %v652
    %2029 = vmatpush1.msra.mxu0 %v651
    %2030 = vmatprep.subr.mxu0 %v664
    %2031 = vmatpush1.msra.mxu0 %v663
    %2032 = vmatprep.subr.mxu0 0.0
    %2033 = vmatpush1.msra.mxu0 0.0
    %2034 = vmatprep.subr.mxu0 0.0
    %2035 = vmatpush1.msra.mxu0 0.0
    %2036 = vmatprep.subr.mxu0 0.0
    %2037 = vmatpush1.msra.mxu0 0.0
    %2038 = vmatprep.subr.mxu0 0.0
    %2039 = vmatpush1.msra.mxu0 0.0
    %2040 = vmatprep.subr.mxu0 0.0
    %2041 = vmatpush1.msra.mxu0 0.0
    %2042 = vmatprep.subr.mxu0 0.0
    %2043 = vmatpush1.msra.mxu0 0.0
    %2044 = vmatprep.subr.mxu0 0.0
    %2045 = vmatpush1.msra.mxu0 0.0
    %2046 = vmatprep.subr.mxu0 0.0
    %2047 = vmatpush1.msra.mxu0 0.0
    %2048 = vmatprep.subr.mxu0 0.0
    %2049 = vmatpush1.msra.mxu0 0.0
    %2050 = vmatprep.subr.mxu0 0.0
    %2051 = vmatpush1.msra.mxu0 0.0
    %2052 = vmatprep.subr.mxu0 0.0
    %2053 = vmatpush1.msra.mxu0 0.0
    %2054 = vmatprep.subr.mxu0 0.0
    %2055 = vmatpush1.msra.mxu0 0.0
    %2056 = vmatprep.subr.mxu0 0.0
    %2057 = vmatpush1.msra.mxu0 0.0
    %2058 = vmatprep.subr.mxu0 0.0
    %2059 = vmatpush1.msra.mxu0 0.0
    %2060 = vmatprep.subr.mxu0 0.0
    %2061 = vmatpush1.msra.mxu0 0.0
    %2062 = vmatprep.subr.mxu0 0.0
    %2063 = vmatpush1.msra.mxu0 0.0
    %2064 = vmatprep.mubr.f32.mxu0 0.0
    %2065 = vmatmul.mubr.f32.gmra.mrb[0].mxu0 %v87
    %v2066 = vpop.f32.mrb[0].mxu0
    %v2067 = vadd.f32 %v1990, %v2066
    %v2068 = vpop.f32.mrb[0].mxu0
    %v2069 = vadd.f32 %v1992, %v2068
    %2070 = vmatprep.mubr.f32.mxu0 0.0
    %2071 = vmatmul.mubr.f32.gmra.mrb[0].mxu0 %v90
    %v2072 = vpop.f32.mrb[0].mxu0
    %v2073 = vadd.f32 %v1996, %v2072
    %v2074 = vpop.f32.mrb[0].mxu0
    %v2075 = vadd.f32 %v1998, %v2074
    %2076 = vdwg.mxu0
    %2077 = vmatprep.subr.mxu0 %v102
    %2078 = vmatpush1.msra.mxu0 %v101
    %2079 = vmatprep.subr.mxu0 %v114
    %2080 = vmatpush1.msra.mxu0 %v113
    %2081 = vmatprep.subr.mxu0 %v126
    %2082 = vmatpush1.msra.mxu0 %v125
    %2083 = vmatprep.subr.mxu0 %v138
    %2084 = vmatpush1.msra.mxu0 %v137
    %2085 = vmatprep.subr.mxu0 %v150
    %2086 = vmatpush1.msra.mxu0 %v149
    %2087 = vmatprep.subr.mxu0 %v162
    %2088 = vmatpush1.msra.mxu0 %v161
    %2089 = vmatprep.subr.mxu0 %v174
    %2090 = vmatpush1.msra.mxu0 %v173
    %2091 = vmatprep.subr.mxu0 %v186
    %2092 = vmatpush1.msra.mxu0 %v185
    %2093 = vmatprep.subr.mxu0 %v198
    %2094 = vmatpush1.msra.mxu0 %v197
    %2095 = vmatprep.subr.mxu0 %v210
    %2096 = vmatpush1.msra.mxu0 %v209
    %2097 = vmatprep.subr.mxu0 %v222
    %2098 = vmatpush1.msra.mxu0 %v221
    %2099 = vmatprep.subr.mxu0 %v234
    %2100 = vmatpush1.msra.mxu0 %v233
    %2101 = vmatprep.subr.mxu0 %v246
    %2102 = vmatpush1.msra.mxu0 %v245
    %2103 = vmatprep.subr.mxu0 %v258
    %2104 = vmatpush1.msra.mxu0 %v257
    %2105 = vmatprep.subr.mxu0 %v270
    %2106 = vmatpush1.msra.mxu0 %v269
    %2107 = vmatprep.subr.mxu0 %v282
    %2108 = vmatpush1.msra.mxu0 %v281
    %2109 = vmatprep.subr.mxu0 %v294
    %2110 = vmatpush1.msra.mxu0 %v293
    %2111 = vmatprep.subr.mxu0 %v306
    %2112 = vmatpush1.msra.mxu0 %v305
    %2113 = vmatprep.subr.mxu0 %v318
    %2114 = vmatpush1.msra.mxu0 %v317
    %2115 = vmatprep.subr.mxu0 %v330
    %2116 = vmatpush1.msra.mxu0 %v329
    %2117 = vmatprep.subr.mxu0 %v342
    %2118 = vmatpush1.msra.mxu0 %v341
    %2119 = vmatprep.subr.mxu0 %v354
    %2120 = vmatpush1.msra.mxu0 %v353
    %2121 = vmatprep.subr.mxu0 %v366
    %2122 = vmatpush1.msra.mxu0 %v365
    %2123 = vmatprep.subr.mxu0 %v378
    %2124 = vmatpush1.msra.mxu0 %v377
    %2125 = vmatprep.subr.mxu0 %v390
    %2126 = vmatpush1.msra.mxu0 %v389
    %2127 = vmatprep.subr.mxu0 %v402
    %2128 = vmatpush1.msra.mxu0 %v401
    %2129 = vmatprep.subr.mxu0 %v414
    %2130 = vmatpush1.msra.mxu0 %v413
    %2131 = vmatprep.subr.mxu0 %v426
    %2132 = vmatpush1.msra.mxu0 %v425
    %2133 = vmatprep.subr.mxu0 %v438
    %2134 = vmatpush1.msra.mxu0 %v437
    %2135 = vmatprep.subr.mxu0 %v450
    %2136 = vmatpush1.msra.mxu0 %v449
    %2137 = vmatprep.subr.mxu0 %v462
    %2138 = vmatpush1.msra.mxu0 %v461
    %2139 = vmatprep.subr.mxu0 %v474
    %2140 = vmatpush1.msra.mxu0 %v473
    %2141 = vmatprep.mubr.f32.mxu0 %v86
    %2142 = vmatmul.mubr.f32.gmra.mrb[0].mxu0 %v85
    %v2143 = vpop.f32.mrb[0].mxu0
    %v2144 = vadd.f32 %v1290, %v2143
    %v2145 = vpop.f32.mrb[0].mxu0
    %v2146 = vadd.f32 %v1294, %v2145
    %2147 = vmatprep.mubr.f32.mxu0 %v89
    %2148 = vmatmul.mubr.f32.gmra.mrb[0].mxu0 %v88
    %v2149 = vpop.f32.mrb[0].mxu0
    %v2150 = vadd.f32 %v1290, %v2149
    %v2151 = vpop.f32.mrb[0].mxu0
    %v2152 = vadd.f32 %v1294, %v2151
    %2153 = vdwg.mxu0
    %2154 = vmatprep.subr.mxu0 %v486
    %2155 = vmatpush1.msra.mxu0 %v485
    %2156 = vmatprep.subr.mxu0 %v498
    %2157 = vmatpush1.msra.mxu0 %v497
    %2158 = vmatprep.subr.mxu0 %v510
    %2159 = vmatpush1.msra.mxu0 %v509
    %2160 = vmatprep.subr.mxu0 %v522
    %2161 = vmatpush1.msra.mxu0 %v521
    %2162 = vmatprep.subr.mxu0 %v534
    %2163 = vmatpush1.msra.mxu0 %v533
    %2164 = vmatprep.subr.mxu0 %v546
    %2165 = vmatpush1.msra.mxu0 %v545
    %2166 = vmatprep.subr.mxu0 %v558
    %2167 = vmatpush1.msra.mxu0 %v557
    %2168 = vmatprep.subr.mxu0 %v570
    %2169 = vmatpush1.msra.mxu0 %v569
    %2170 = vmatprep.subr.mxu0 %v582
    %2171 = vmatpush1.msra.mxu0 %v581
    %2172 = vmatprep.subr.mxu0 %v594
    %2173 = vmatpush1.msra.mxu0 %v593
    %2174 = vmatprep.subr.mxu0 %v606
    %2175 = vmatpush1.msra.mxu0 %v605
    %2176 = vmatprep.subr.mxu0 %v618
    %2177 = vmatpush1.msra.mxu0 %v617
    %2178 = vmatprep.subr.mxu0 %v630
    %2179 = vmatpush1.msra.mxu0 %v629
    %2180 = vmatprep.subr.mxu0 %v642
    %2181 = vmatpush1.msra.mxu0 %v641
    %2182 = vmatprep.subr.mxu0 %v654
    %2183 = vmatpush1.msra.mxu0 %v653
    %2184 = vmatprep.subr.mxu0 %v666
    %2185 = vmatpush1.msra.mxu0 %v665
    %2186 = vmatprep.subr.mxu0 0.0
    %2187 = vmatpush1.msra.mxu0 0.0
    %2188 = vmatprep.subr.mxu0 0.0
    %2189 = vmatpush1.msra.mxu0 0.0
    %2190 = vmatprep.subr.mxu0 0.0
    %2191 = vmatpush1.msra.mxu0 0.0
    %2192 = vmatprep.subr.mxu0 0.0
    %2193 = vmatpush1.msra.mxu0 0.0
    %2194 = vmatprep.subr.mxu0 0.0
    %2195 = vmatpush1.msra.mxu0 0.0
    %2196 = vmatprep.subr.mxu0 0.0
    %2197 = vmatpush1.msra.mxu0 0.0
    %2198 = vmatprep.subr.mxu0 0.0
    %2199 = vmatpush1.msra.mxu0 0.0
    %2200 = vmatprep.subr.mxu0 0.0
    %2201 = vmatpush1.msra.mxu0 0.0
    %2202 = vmatprep.subr.mxu0 0.0
    %2203 = vmatpush1.msra.mxu0 0.0
    %2204 = vmatprep.subr.mxu0 0.0
    %2205 = vmatpush1.msra.mxu0 0.0
    %2206 = vmatprep.subr.mxu0 0.0
    %2207 = vmatpush1.msra.mxu0 0.0
    %2208 = vmatprep.subr.mxu0 0.0
    %2209 = vmatpush1.msra.mxu0 0.0
    %2210 = vmatprep.subr.mxu0 0.0
    %2211 = vmatpush1.msra.mxu0 0.0
    %2212 = vmatprep.subr.mxu0 0.0
    %2213 = vmatpush1.msra.mxu0 0.0
    %2214 = vmatprep.subr.mxu0 0.0
    %2215 = vmatpush1.msra.mxu0 0.0
    %2216 = vmatprep.subr.mxu0 0.0
    %2217 = vmatpush1.msra.mxu0 0.0
    %2218 = vmatprep.mubr.f32.mxu0 0.0
    %2219 = vmatmul.mubr.f32.gmra.mrb[0].mxu0 %v87
    %v2220 = vpop.f32.mrb[0].mxu0
    %v2221 = vadd.f32 %v2144, %v2220
    %v2222 = vpop.f32.mrb[0].mxu0
    %v2223 = vadd.f32 %v2146, %v2222
    %2224 = vmatprep.mubr.f32.mxu0 0.0
    %2225 = vmatmul.mubr.f32.gmra.mrb[0].mxu0 %v90
    %v2226 = vpop.f32.mrb[0].mxu0
    %v2227 = vadd.f32 %v2150, %v2226
    %v2228 = vpop.f32.mrb[0].mxu0
    %v2229 = vadd.f32 %v2152, %v2228
    %2230 = vdwg.mxu0
    %v2231 = vmax.f32 %v1451, 0.0
    %v2232 = vmax.f32 %v1453, 0.0
    %v2233 = vmax.f32 %v1605, 0.0
    %v2234 = vmax.f32 %v1607, 0.0
    %v2235 = vmax.f32 %v1759, 0.0
    %v2236 = vmax.f32 %v1761, 0.0
    %v2237 = vmax.f32 %v1913, 0.0
    %v2238 = vmax.f32 %v1915, 0.0
    %v2239 = vmax.f32 %v2067, 0.0
    %v2240 = vmax.f32 %v2069, 0.0
    %v2241 = vmax.f32 %v2221, 0.0
    %v2242 = vmax.f32 %v2223, 0.0
    %v2243 = vmax.f32 %v1457, 0.0
    %v2244 = vmax.f32 %v1459, 0.0
    %v2245 = vmax.f32 %v1611, 0.0
    %v2246 = vmax.f32 %v1613, 0.0
    %v2247 = vmax.f32 %v1765, 0.0
    %v2248 = vmax.f32 %v1767, 0.0
    %v2249 = vmax.f32 %v1919, 0.0
    %v2250 = vmax.f32 %v1921, 0.0
    %v2251 = vmax.f32 %v2073, 0.0
    %v2252 = vmax.f32 %v2075, 0.0
    %v2253 = vmax.f32 %v2227, 0.0
    %v2254 = vmax.f32 %v2229, 0.0
    %v2255 = vld [vmem:[#allocation10] sm:$0x7]
    %v2257 = vlaneseq
    %v2258 = vshrl.u32 %v2257, 7
    %v2259 = vsub.s32 0, %v2258
    %v2260 = vrot.slane %v2255, %v2259
    %v2261 = vlaneseq
    %v2262 = vshrl.u32 %v2261, 7
    %v2263 = vsub.s32 1, %v2262
    %v2264 = vrot.slane %v2255, %v2263
    %v2265 = vlaneseq
    %v2266 = vshrl.u32 %v2265, 7
    %v2267 = vsub.s32 2, %v2266
    %v2268 = vrot.slane %v2255, %v2267
    %2272 = vmatprep.subr.mxu0 %v668
    %2273 = vmatpush1.msra.mxu0 %v667
    %2274 = vmatprep.subr.mxu0 %v671
    %2275 = vmatpush1.msra.mxu0 %v670
    %2276 = vmatprep.subr.mxu0 %v674
    %2277 = vmatpush1.msra.mxu0 %v673
    %2278 = vmatprep.subr.mxu0 %v677
    %2279 = vmatpush1.msra.mxu0 %v676
    %2280 = vmatprep.subr.mxu0 %v680
    %2281 = vmatpush1.msra.mxu0 %v679
    %2282 = vmatprep.subr.mxu0 %v683
    %2283 = vmatpush1.msra.mxu0 %v682
    %2284 = vmatprep.subr.mxu0 %v686
    %2285 = vmatpush1.msra.mxu0 %v685
    %2286 = vmatprep.subr.mxu0 %v689
    %2287 = vmatpush1.msra.mxu0 %v688
    %2288 = vmatprep.subr.mxu0 %v692
    %2289 = vmatpush1.msra.mxu0 %v691
    %2290 = vmatprep.subr.mxu0 %v695
    %2291 = vmatpush1.msra.mxu0 %v694
    %2292 = vmatprep.subr.mxu0 %v698
    %2293 = vmatpush1.msra.mxu0 %v697
    %2294 = vmatprep.subr.mxu0 %v701
    %2295 = vmatpush1.msra.mxu0 %v700
    %2296 = vmatprep.subr.mxu0 %v704
    %2297 = vmatpush1.msra.mxu0 %v703
    %2298 = vmatprep.subr.mxu0 %v707
    %2299 = vmatpush1.msra.mxu0 %v706
    %2300 = vmatprep.subr.mxu0 %v710
    %2301 = vmatpush1.msra.mxu0 %v709
    %2302 = vmatprep.subr.mxu0 %v713
    %2303 = vmatpush1.msra.mxu0 %v712
    %2304 = vmatprep.subr.mxu0 %v716
    %2305 = vmatpush1.msra.mxu0 %v715
    %2306 = vmatprep.subr.mxu0 %v719
    %2307 = vmatpush1.msra.mxu0 %v718
    %2308 = vmatprep.subr.mxu0 %v722
    %2309 = vmatpush1.msra.mxu0 %v721
    %2310 = vmatprep.subr.mxu0 %v725
    %2311 = vmatpush1.msra.mxu0 %v724
    %2312 = vmatprep.subr.mxu0 %v728
    %2313 = vmatpush1.msra.mxu0 %v727
    %2314 = vmatprep.subr.mxu0 %v731
    %2315 = vmatpush1.msra.mxu0 %v730
    %2316 = vmatprep.subr.mxu0 %v734
    %2317 = vmatpush1.msra.mxu0 %v733
    %2318 = vmatprep.subr.mxu0 %v737
    %2319 = vmatpush1.msra.mxu0 %v736
    %2320 = vmatprep.subr.mxu0 %v740
    %2321 = vmatpush1.msra.mxu0 %v739
    %2322 = vmatprep.subr.mxu0 %v743
    %2323 = vmatpush1.msra.mxu0 %v742
    %2324 = vmatprep.subr.mxu0 %v746
    %2325 = vmatpush1.msra.mxu0 %v745
    %2326 = vmatprep.subr.mxu0 %v749
    %2327 = vmatpush1.msra.mxu0 %v748
    %2328 = vmatprep.subr.mxu0 %v752
    %2329 = vmatpush1.msra.mxu0 %v751
    %2330 = vmatprep.subr.mxu0 %v755
    %2331 = vmatpush1.msra.mxu0 %v754
    %2332 = vmatprep.subr.mxu0 %v758
    %2333 = vmatpush1.msra.mxu0 %v757
    %2334 = vmatprep.subr.mxu0 %v761
    %2335 = vmatpush1.msra.mxu0 %v760
    %2336 = vmatprep.mubr.f32.mxu0 %v2232
    %2337 = vmatmul.mubr.f32.gmra.mrb[0].mxu0 %v2231
    %v2338 = vpop.f32.mrb[0].mxu0
    %v2339 = vadd.f32 %v2260, %v2338
    %v2340 = vpop.f32.mrb[0].mxu0
    %v2341 = vadd.f32 %v2264, %v2340
    %2342 = vmatprep.mubr.f32.mxu0 %v2244
    %2343 = vmatmul.mubr.f32.gmra.mrb[0].mxu0 %v2243
    %v2344 = vpop.f32.mrb[0].mxu0
    %v2345 = vadd.f32 %v2260, %v2344
    %v2346 = vpop.f32.mrb[0].mxu0
    %v2347 = vadd.f32 %v2264, %v2346
    %2348 = vdwg.mxu0
    %2349 = vmatprep.subr.mxu0 %v764
    %2350 = vmatpush1.msra.mxu0 %v763
    %2351 = vmatprep.subr.mxu0 %v767
    %2352 = vmatpush1.msra.mxu0 %v766
    %2353 = vmatprep.subr.mxu0 %v770
    %2354 = vmatpush1.msra.mxu0 %v769
    %2355 = vmatprep.subr.mxu0 %v773
    %2356 = vmatpush1.msra.mxu0 %v772
    %2357 = vmatprep.subr.mxu0 %v776
    %2358 = vmatpush1.msra.mxu0 %v775
    %2359 = vmatprep.subr.mxu0 %v779
    %2360 = vmatpush1.msra.mxu0 %v778
    %2361 = vmatprep.subr.mxu0 %v782
    %2362 = vmatpush1.msra.mxu0 %v781
    %2363 = vmatprep.subr.mxu0 %v785
    %2364 = vmatpush1.msra.mxu0 %v784
    %2365 = vmatprep.subr.mxu0 %v788
    %2366 = vmatpush1.msra.mxu0 %v787
    %2367 = vmatprep.subr.mxu0 %v791
    %2368 = vmatpush1.msra.mxu0 %v790
    %2369 = vmatprep.subr.mxu0 %v794
    %2370 = vmatpush1.msra.mxu0 %v793
    %2371 = vmatprep.subr.mxu0 %v797
    %2372 = vmatpush1.msra.mxu0 %v796
    %2373 = vmatprep.subr.mxu0 %v800
    %2374 = vmatpush1.msra.mxu0 %v799
    %2375 = vmatprep.subr.mxu0 %v803
    %2376 = vmatpush1.msra.mxu0 %v802
    %2377 = vmatprep.subr.mxu0 %v806
    %2378 = vmatpush1.msra.mxu0 %v805
    %2379 = vmatprep.subr.mxu0 %v809
    %2380 = vmatpush1.msra.mxu0 %v808
    %2381 = vmatprep.subr.mxu0 %v812
    %2382 = vmatpush1.msra.mxu0 %v811
    %2383 = vmatprep.subr.mxu0 %v815
    %2384 = vmatpush1.msra.mxu0 %v814
    %2385 = vmatprep.subr.mxu0 %v818
    %2386 = vmatpush1.msra.mxu0 %v817
    %2387 = vmatprep.subr.mxu0 %v821
    %2388 = vmatpush1.msra.mxu0 %v820
    %2389 = vmatprep.subr.mxu0 %v824
    %2390 = vmatpush1.msra.mxu0 %v823
    %2391 = vmatprep.subr.mxu0 %v827
    %2392 = vmatpush1.msra.mxu0 %v826
    %2393 = vmatprep.subr.mxu0 %v830
    %2394 = vmatpush1.msra.mxu0 %v829
    %2395 = vmatprep.subr.mxu0 %v833
    %2396 = vmatpush1.msra.mxu0 %v832
    %2397 = vmatprep.subr.mxu0 %v836
    %2398 = vmatpush1.msra.mxu0 %v835
    %2399 = vmatprep.subr.mxu0 %v839
    %2400 = vmatpush1.msra.mxu0 %v838
    %2401 = vmatprep.subr.mxu0 %v842
    %2402 = vmatpush1.msra.mxu0 %v841
    %2403 = vmatprep.subr.mxu0 %v845
    %2404 = vmatpush1.msra.mxu0 %v844
    %2405 = vmatprep.subr.mxu0 %v848
    %2406 = vmatpush1.msra.mxu0 %v847
    %2407 = vmatprep.subr.mxu0 %v851
    %2408 = vmatpush1.msra.mxu0 %v850
    %2409 = vmatprep.subr.mxu0 %v854
    %2410 = vmatpush1.msra.mxu0 %v853
    %2411 = vmatprep.subr.mxu0 %v857
    %2412 = vmatpush1.msra.mxu0 %v856
    %2413 = vmatprep.mubr.f32.mxu0 %v2234
    %2414 = vmatmul.mubr.f32.gmra.mrb[0].mxu0 %v2233
    %v2415 = vpop.f32.mrb[0].mxu0
    %v2416 = vadd.f32 %v2339, %v2415
    %v2417 = vpop.f32.mrb[0].mxu0
    %v2418 = vadd.f32 %v2341, %v2417
    %2419 = vmatprep.mubr.f32.mxu0 %v2246
    %2420 = vmatmul.mubr.f32.gmra.mrb[0].mxu0 %v2245
    %v2421 = vpop.f32.mrb[0].mxu0
    %v2422 = vadd.f32 %v2345, %v2421
    %v2423 = vpop.f32.mrb[0].mxu0
    %v2424 = vadd.f32 %v2347, %v2423
    %2425 = vdwg.mxu0
    %2426 = vmatprep.subr.mxu0 %v860
    %2427 = vmatpush1.msra.mxu0 %v859
    %2428 = vmatprep.subr.mxu0 %v863
    %2429 = vmatpush1.msra.mxu0 %v862
    %2430 = vmatprep.subr.mxu0 %v866
    %2431 = vmatpush1.msra.mxu0 %v865
    %2432 = vmatprep.subr.mxu0 %v869
    %2433 = vmatpush1.msra.mxu0 %v868
    %2434 = vmatprep.subr.mxu0 %v872
    %2435 = vmatpush1.msra.mxu0 %v871
    %2436 = vmatprep.subr.mxu0 %v875
    %2437 = vmatpush1.msra.mxu0 %v874
    %2438 = vmatprep.subr.mxu0 %v878
    %2439 = vmatpush1.msra.mxu0 %v877
    %2440 = vmatprep.subr.mxu0 %v881
    %2441 = vmatpush1.msra.mxu0 %v880
    %2442 = vmatprep.subr.mxu0 %v884
    %2443 = vmatpush1.msra.mxu0 %v883
    %2444 = vmatprep.subr.mxu0 %v887
    %2445 = vmatpush1.msra.mxu0 %v886
    %2446 = vmatprep.subr.mxu0 %v890
    %2447 = vmatpush1.msra.mxu0 %v889
    %2448 = vmatprep.subr.mxu0 %v893
    %2449 = vmatpush1.msra.mxu0 %v892
    %2450 = vmatprep.subr.mxu0 %v896
    %2451 = vmatpush1.msra.mxu0 %v895
    %2452 = vmatprep.subr.mxu0 %v899
    %2453 = vmatpush1.msra.mxu0 %v898
    %2454 = vmatprep.subr.mxu0 %v902
    %2455 = vmatpush1.msra.mxu0 %v901
    %2456 = vmatprep.subr.mxu0 %v905
    %2457 = vmatpush1.msra.mxu0 %v904
    %2458 = vmatprep.subr.mxu0 %v908
    %2459 = vmatpush1.msra.mxu0 %v907
    %2460 = vmatprep.subr.mxu0 %v911
    %2461 = vmatpush1.msra.mxu0 %v910
    %2462 = vmatprep.subr.mxu0 %v914
    %2463 = vmatpush1.msra.mxu0 %v913
    %2464 = vmatprep.subr.mxu0 %v917
    %2465 = vmatpush1.msra.mxu0 %v916
    %2466 = vmatprep.subr.mxu0 %v920
    %2467 = vmatpush1.msra.mxu0 %v919
    %2468 = vmatprep.subr.mxu0 %v923
    %2469 = vmatpush1.msra.mxu0 %v922
    %2470 = vmatprep.subr.mxu0 %v926
    %2471 = vmatpush1.msra.mxu0 %v925
    %2472 = vmatprep.subr.mxu0 %v929
    %2473 = vmatpush1.msra.mxu0 %v928
    %2474 = vmatprep.subr.mxu0 %v932
    %2475 = vmatpush1.msra.mxu0 %v931
    %2476 = vmatprep.subr.mxu0 %v935
    %2477 = vmatpush1.msra.mxu0 %v934
    %2478 = vmatprep.subr.mxu0 %v938
    %2479 = vmatpush1.msra.mxu0 %v937
    %2480 = vmatprep.subr.mxu0 %v941
    %2481 = vmatpush1.msra.mxu0 %v940
    %2482 = vmatprep.subr.mxu0 %v944
    %2483 = vmatpush1.msra.mxu0 %v943
    %2484 = vmatprep.subr.mxu0 %v947
    %2485 = vmatpush1.msra.mxu0 %v946
    %2486 = vmatprep.subr.mxu0 %v950
    %2487 = vmatpush1.msra.mxu0 %v949
    %2488 = vmatprep.subr.mxu0 %v953
    %2489 = vmatpush1.msra.mxu0 %v952
    %2490 = vmatprep.mubr.f32.mxu0 %v2236
    %2491 = vmatmul.mubr.f32.gmra.mrb[0].mxu0 %v2235
    %v2492 = vpop.f32.mrb[0].mxu0
    %v2493 = vadd.f32 %v2416, %v2492
    %v2494 = vpop.f32.mrb[0].mxu0
    %v2495 = vadd.f32 %v2418, %v2494
    %2496 = vmatprep.mubr.f32.mxu0 %v2248
    %2497 = vmatmul.mubr.f32.gmra.mrb[0].mxu0 %v2247
    %v2498 = vpop.f32.mrb[0].mxu0
    %v2499 = vadd.f32 %v2422, %v2498
    %v2500 = vpop.f32.mrb[0].mxu0
    %v2501 = vadd.f32 %v2424, %v2500
    %2502 = vdwg.mxu0
    %2503 = vmatprep.subr.mxu0 %v956
    %2504 = vmatpush1.msra.mxu0 %v955
    %2505 = vmatprep.subr.mxu0 %v959
    %2506 = vmatpush1.msra.mxu0 %v958
    %2507 = vmatprep.subr.mxu0 %v962
    %2508 = vmatpush1.msra.mxu0 %v961
    %2509 = vmatprep.subr.mxu0 %v965
    %2510 = vmatpush1.msra.mxu0 %v964
    %2511 = vmatprep.subr.mxu0 %v968
    %2512 = vmatpush1.msra.mxu0 %v967
    %2513 = vmatprep.subr.mxu0 %v971
    %2514 = vmatpush1.msra.mxu0 %v970
    %2515 = vmatprep.subr.mxu0 %v974
    %2516 = vmatpush1.msra.mxu0 %v973
    %2517 = vmatprep.subr.mxu0 %v977
    %2518 = vmatpush1.msra.mxu0 %v976
    %2519 = vmatprep.subr.mxu0 %v980
    %2520 = vmatpush1.msra.mxu0 %v979
    %2521 = vmatprep.subr.mxu0 %v983
    %2522 = vmatpush1.msra.mxu0 %v982
    %2523 = vmatprep.subr.mxu0 %v986
    %2524 = vmatpush1.msra.mxu0 %v985
    %2525 = vmatprep.subr.mxu0 %v989
    %2526 = vmatpush1.msra.mxu0 %v988
    %2527 = vmatprep.subr.mxu0 %v992
    %2528 = vmatpush1.msra.mxu0 %v991
    %2529 = vmatprep.subr.mxu0 %v995
    %2530 = vmatpush1.msra.mxu0 %v994
    %2531 = vmatprep.subr.mxu0 %v998
    %2532 = vmatpush1.msra.mxu0 %v997
    %2533 = vmatprep.subr.mxu0 %v1001
    %2534 = vmatpush1.msra.mxu0 %v1000
    %2535 = vmatprep.subr.mxu0 %v1004
    %2536 = vmatpush1.msra.mxu0 %v1003
    %2537 = vmatprep.subr.mxu0 %v1007
    %2538 = vmatpush1.msra.mxu0 %v1006
    %2539 = vmatprep.subr.mxu0 %v1010
    %2540 = vmatpush1.msra.mxu0 %v1009
    %2541 = vmatprep.subr.mxu0 %v1013
    %2542 = vmatpush1.msra.mxu0 %v1012
    %2543 = vmatprep.subr.mxu0 %v1016
    %2544 = vmatpush1.msra.mxu0 %v1015
    %2545 = vmatprep.subr.mxu0 %v1019
    %2546 = vmatpush1.msra.mxu0 %v1018
    %2547 = vmatprep.subr.mxu0 %v1022
    %2548 = vmatpush1.msra.mxu0 %v1021
    %2549 = vmatprep.subr.mxu0 %v1025
    %2550 = vmatpush1.msra.mxu0 %v1024
    %2551 = vmatprep.subr.mxu0 %v1028
    %2552 = vmatpush1.msra.mxu0 %v1027
    %2553 = vmatprep.subr.mxu0 %v1031
    %2554 = vmatpush1.msra.mxu0 %v1030
    %2555 = vmatprep.subr.mxu0 %v1034
    %2556 = vmatpush1.msra.mxu0 %v1033
    %2557 = vmatprep.subr.mxu0 %v1037
    %2558 = vmatpush1.msra.mxu0 %v1036
    %2559 = vmatprep.subr.mxu0 %v1040
    %2560 = vmatpush1.msra.mxu0 %v1039
    %2561 = vmatprep.subr.mxu0 %v1043
    %2562 = vmatpush1.msra.mxu0 %v1042
    %2563 = vmatprep.subr.mxu0 %v1046
    %2564 = vmatpush1.msra.mxu0 %v1045
    %2565 = vmatprep.subr.mxu0 %v1049
    %2566 = vmatpush1.msra.mxu0 %v1048
    %2567 = vmatprep.mubr.f32.mxu0 %v2238
    %2568 = vmatmul.mubr.f32.gmra.mrb[0].mxu0 %v2237
    %v2569 = vpop.f32.mrb[0].mxu0
    %v2570 = vadd.f32 %v2493, %v2569
    %v2571 = vpop.f32.mrb[0].mxu0
    %v2572 = vadd.f32 %v2495, %v2571
    %2573 = vmatprep.mubr.f32.mxu0 %v2250
    %2574 = vmatmul.mubr.f32.gmra.mrb[0].mxu0 %v2249
    %v2575 = vpop.f32.mrb[0].mxu0
    %v2576 = vadd.f32 %v2499, %v2575
    %v2577 = vpop.f32.mrb[0].mxu0
    %v2578 = vadd.f32 %v2501, %v2577
    %2579 = vdwg.mxu0
    %2580 = vmatprep.subr.mxu0 %v1052
    %2581 = vmatpush1.msra.mxu0 %v1051
    %2582 = vmatprep.subr.mxu0 %v1055
    %2583 = vmatpush1.msra.mxu0 %v1054
    %2584 = vmatprep.subr.mxu0 %v1058
    %2585 = vmatpush1.msra.mxu0 %v1057
    %2586 = vmatprep.subr.mxu0 %v1061
    %2587 = vmatpush1.msra.mxu0 %v1060
    %2588 = vmatprep.subr.mxu0 %v1064
    %2589 = vmatpush1.msra.mxu0 %v1063
    %2590 = vmatprep.subr.mxu0 %v1067
    %2591 = vmatpush1.msra.mxu0 %v1066
    %2592 = vmatprep.subr.mxu0 %v1070
    %2593 = vmatpush1.msra.mxu0 %v1069
    %2594 = vmatprep.subr.mxu0 %v1073
    %2595 = vmatpush1.msra.mxu0 %v1072
    %2596 = vmatprep.subr.mxu0 %v1076
    %2597 = vmatpush1.msra.mxu0 %v1075
    %2598 = vmatprep.subr.mxu0 %v1079
    %2599 = vmatpush1.msra.mxu0 %v1078
    %2600 = vmatprep.subr.mxu0 %v1082
    %2601 = vmatpush1.msra.mxu0 %v1081
    %2602 = vmatprep.subr.mxu0 %v1085
    %2603 = vmatpush1.msra.mxu0 %v1084
    %2604 = vmatprep.subr.mxu0 %v1088
    %2605 = vmatpush1.msra.mxu0 %v1087
    %2606 = vmatprep.subr.mxu0 %v1091
    %2607 = vmatpush1.msra.mxu0 %v1090
    %2608 = vmatprep.subr.mxu0 %v1094
    %2609 = vmatpush1.msra.mxu0 %v1093
    %2610 = vmatprep.subr.mxu0 %v1097
    %2611 = vmatpush1.msra.mxu0 %v1096
    %2612 = vmatprep.subr.mxu0 %v1100
    %2613 = vmatpush1.msra.mxu0 %v1099
    %2614 = vmatprep.subr.mxu0 %v1103
    %2615 = vmatpush1.msra.mxu0 %v1102
    %2616 = vmatprep.subr.mxu0 %v1106
    %2617 = vmatpush1.msra.mxu0 %v1105
    %2618 = vmatprep.subr.mxu0 %v1109
    %2619 = vmatpush1.msra.mxu0 %v1108
    %2620 = vmatprep.subr.mxu0 %v1112
    %2621 = vmatpush1.msra.mxu0 %v1111
    %2622 = vmatprep.subr.mxu0 %v1115
    %2623 = vmatpush1.msra.mxu0 %v1114
    %2624 = vmatprep.subr.mxu0 %v1118
    %2625 = vmatpush1.msra.mxu0 %v1117
    %2626 = vmatprep.subr.mxu0 %v1121
    %2627 = vmatpush1.msra.mxu0 %v1120
    %2628 = vmatprep.subr.mxu0 %v1124
    %2629 = vmatpush1.msra.mxu0 %v1123
    %2630 = vmatprep.subr.mxu0 %v1127
    %2631 = vmatpush1.msra.mxu0 %v1126
    %2632 = vmatprep.subr.mxu0 %v1130
    %2633 = vmatpush1.msra.mxu0 %v1129
    %2634 = vmatprep.subr.mxu0 %v1133
    %2635 = vmatpush1.msra.mxu0 %v1132
    %2636 = vmatprep.subr.mxu0 %v1136
    %2637 = vmatpush1.msra.mxu0 %v1135
    %2638 = vmatprep.subr.mxu0 %v1139
    %2639 = vmatpush1.msra.mxu0 %v1138
    %2640 = vmatprep.subr.mxu0 %v1142
    %2641 = vmatpush1.msra.mxu0 %v1141
    %2642 = vmatprep.subr.mxu0 %v1145
    %2643 = vmatpush1.msra.mxu0 %v1144
    %2644 = vmatprep.mubr.f32.mxu0 %v2240
    %2645 = vmatmul.mubr.f32.gmra.mrb[0].mxu0 %v2239
    %v2646 = vpop.f32.mrb[0].mxu0
    %v2647 = vadd.f32 %v2570, %v2646
    %v2648 = vpop.f32.mrb[0].mxu0
    %v2649 = vadd.f32 %v2572, %v2648
    %2650 = vmatprep.mubr.f32.mxu0 %v2252
    %2651 = vmatmul.mubr.f32.gmra.mrb[0].mxu0 %v2251
    %v2652 = vpop.f32.mrb[0].mxu0
    %v2653 = vadd.f32 %v2576, %v2652
    %v2654 = vpop.f32.mrb[0].mxu0
    %v2655 = vadd.f32 %v2578, %v2654
    %2656 = vdwg.mxu0
    %2657 = vmatprep.subr.mxu0 %v1148
    %2658 = vmatpush1.msra.mxu0 %v1147
    %2659 = vmatprep.subr.mxu0 %v1151
    %2660 = vmatpush1.msra.mxu0 %v1150
    %2661 = vmatprep.subr.mxu0 %v1154
    %2662 = vmatpush1.msra.mxu0 %v1153
    %2663 = vmatprep.subr.mxu0 %v1157
    %2664 = vmatpush1.msra.mxu0 %v1156
    %2665 = vmatprep.subr.mxu0 %v1160
    %2666 = vmatpush1.msra.mxu0 %v1159
    %2667 = vmatprep.subr.mxu0 %v1163
    %2668 = vmatpush1.msra.mxu0 %v1162
    %2669 = vmatprep.subr.mxu0 %v1166
    %2670 = vmatpush1.msra.mxu0 %v1165
    %2671 = vmatprep.subr.mxu0 %v1169
    %2672 = vmatpush1.msra.mxu0 %v1168
    %2673 = vmatprep.subr.mxu0 %v1172
    %2674 = vmatpush1.msra.mxu0 %v1171
    %2675 = vmatprep.subr.mxu0 %v1175
    %2676 = vmatpush1.msra.mxu0 %v1174
    %2677 = vmatprep.subr.mxu0 %v1178
    %2678 = vmatpush1.msra.mxu0 %v1177
    %2679 = vmatprep.subr.mxu0 %v1181
    %2680 = vmatpush1.msra.mxu0 %v1180
    %2681 = vmatprep.subr.mxu0 %v1184
    %2682 = vmatpush1.msra.mxu0 %v1183
    %2683 = vmatprep.subr.mxu0 %v1187
    %2684 = vmatpush1.msra.mxu0 %v1186
    %2685 = vmatprep.subr.mxu0 %v1190
    %2686 = vmatpush1.msra.mxu0 %v1189
    %2687 = vmatprep.subr.mxu0 %v1193
    %2688 = vmatpush1.msra.mxu0 %v1192
    %2689 = vmatprep.subr.mxu0 %v1196
    %2690 = vmatpush1.msra.mxu0 %v1195
    %2691 = vmatprep.subr.mxu0 %v1199
    %2692 = vmatpush1.msra.mxu0 %v1198
    %2693 = vmatprep.subr.mxu0 %v1202
    %2694 = vmatpush1.msra.mxu0 %v1201
    %2695 = vmatprep.subr.mxu0 %v1205
    %2696 = vmatpush1.msra.mxu0 %v1204
    %2697 = vmatprep.subr.mxu0 %v1208
    %2698 = vmatpush1.msra.mxu0 %v1207
    %2699 = vmatprep.subr.mxu0 %v1211
    %2700 = vmatpush1.msra.mxu0 %v1210
    %2701 = vmatprep.subr.mxu0 %v1214
    %2702 = vmatpush1.msra.mxu0 %v1213
    %2703 = vmatprep.subr.mxu0 %v1217
    %2704 = vmatpush1.msra.mxu0 %v1216
    %2705 = vmatprep.subr.mxu0 %v1220
    %2706 = vmatpush1.msra.mxu0 %v1219
    %2707 = vmatprep.subr.mxu0 %v1223
    %2708 = vmatpush1.msra.mxu0 %v1222
    %2709 = vmatprep.subr.mxu0 %v1226
    %2710 = vmatpush1.msra.mxu0 %v1225
    %2711 = vmatprep.subr.mxu0 %v1229
    %2712 = vmatpush1.msra.mxu0 %v1228
    %2713 = vmatprep.subr.mxu0 %v1232
    %2714 = vmatpush1.msra.mxu0 %v1231
    %2715 = vmatprep.subr.mxu0 %v1235
    %2716 = vmatpush1.msra.mxu0 %v1234
    %2717 = vmatprep.subr.mxu0 %v1238
    %2718 = vmatpush1.msra.mxu0 %v1237
    %2719 = vmatprep.subr.mxu0 %v1241
    %2720 = vmatpush1.msra.mxu0 %v1240
    %2721 = vmatprep.mubr.f32.mxu0 %v2242
    %2722 = vmatmul.mubr.f32.gmra.mrb[0].mxu0 %v2241
    %v2723 = vpop.f32.mrb[0].mxu0
    %v2724 = vadd.f32 %v2647, %v2723
    %v2725 = vpop.f32.mrb[0].mxu0
    %v2726 = vadd.f32 %v2649, %v2725
    %2727 = vmatprep.mubr.f32.mxu0 %v2254
    %2728 = vmatmul.mubr.f32.gmra.mrb[0].mxu0 %v2253
    %v2729 = vpop.f32.mrb[0].mxu0
    %v2730 = vadd.f32 %v2653, %v2729
    %v2731 = vpop.f32.mrb[0].mxu0
    %v2732 = vadd.f32 %v2655, %v2731
    %2733 = vdwg.mxu0
    %2734 = vmatprep.subr.mxu0 0.0
    %2735 = vmatpush1.msra.mxu0 %v669
    %2736 = vmatprep.subr.mxu0 0.0
    %2737 = vmatpush1.msra.mxu0 %v672
    %2738 = vmatprep.subr.mxu0 0.0
    %2739 = vmatpush1.msra.mxu0 %v675
    %2740 = vmatprep.subr.mxu0 0.0
    %2741 = vmatpush1.msra.mxu0 %v678
    %2742 = vmatprep.subr.mxu0 0.0
    %2743 = vmatpush1.msra.mxu0 %v681
    %2744 = vmatprep.subr.mxu0 0.0
    %2745 = vmatpush1.msra.mxu0 %v684
    %2746 = vmatprep.subr.mxu0 0.0
    %2747 = vmatpush1.msra.mxu0 %v687
    %2748 = vmatprep.subr.mxu0 0.0
    %2749 = vmatpush1.msra.mxu0 %v690
    %2750 = vmatprep.subr.mxu0 0.0
    %2751 = vmatpush1.msra.mxu0 %v693
    %2752 = vmatprep.subr.mxu0 0.0
    %2753 = vmatpush1.msra.mxu0 %v696
    %2754 = vmatprep.subr.mxu0 0.0
    %2755 = vmatpush1.msra.mxu0 %v699
    %2756 = vmatprep.subr.mxu0 0.0
    %2757 = vmatpush1.msra.mxu0 %v702
    %2758 = vmatprep.subr.mxu0 0.0
    %2759 = vmatpush1.msra.mxu0 %v705
    %2760 = vmatprep.subr.mxu0 0.0
    %2761 = vmatpush1.msra.mxu0 %v708
    %2762 = vmatprep.subr.mxu0 0.0
    %2763 = vmatpush1.msra.mxu0 %v711
    %2764 = vmatprep.subr.mxu0 0.0
    %2765 = vmatpush1.msra.mxu0 %v714
    %2766 = vmatprep.subr.mxu0 0.0
    %2767 = vmatpush1.msra.mxu0 %v717
    %2768 = vmatprep.subr.mxu0 0.0
    %2769 = vmatpush1.msra.mxu0 %v720
    %2770 = vmatprep.subr.mxu0 0.0
    %2771 = vmatpush1.msra.mxu0 %v723
    %2772 = vmatprep.subr.mxu0 0.0
    %2773 = vmatpush1.msra.mxu0 %v726
    %2774 = vmatprep.subr.mxu0 0.0
    %2775 = vmatpush1.msra.mxu0 %v729
    %2776 = vmatprep.subr.mxu0 0.0
    %2777 = vmatpush1.msra.mxu0 %v732
    %2778 = vmatprep.subr.mxu0 0.0
    %2779 = vmatpush1.msra.mxu0 %v735
    %2780 = vmatprep.subr.mxu0 0.0
    %2781 = vmatpush1.msra.mxu0 %v738
    %2782 = vmatprep.subr.mxu0 0.0
    %2783 = vmatpush1.msra.mxu0 %v741
    %2784 = vmatprep.subr.mxu0 0.0
    %2785 = vmatpush1.msra.mxu0 %v744
    %2786 = vmatprep.subr.mxu0 0.0
    %2787 = vmatpush1.msra.mxu0 %v747
    %2788 = vmatprep.subr.mxu0 0.0
    %2789 = vmatpush1.msra.mxu0 %v750
    %2790 = vmatprep.subr.mxu0 0.0
    %2791 = vmatpush1.msra.mxu0 %v753
    %2792 = vmatprep.subr.mxu0 0.0
    %2793 = vmatpush1.msra.mxu0 %v756
    %2794 = vmatprep.subr.mxu0 0.0
    %2795 = vmatpush1.msra.mxu0 %v759
    %2796 = vmatprep.subr.mxu0 0.0
    %2797 = vmatpush1.msra.mxu0 %v762
    %2798 = vmatprep.mubr.f32.mxu0 %v2232
    %2799 = vmatmul.mubr.f32.gmra.mrb[0].mxu0 %v2231
    %v2800 = vpop.f32.mrb[0].mxu0
    %v2801 = vadd.f32 %v2268, %v2800
    %v2802 = vpop.f32.mrb[0].mxu0
    %2803 = vmatprep.mubr.f32.mxu0 %v2244
    %2804 = vmatmul.mubr.f32.gmra.mrb[0].mxu0 %v2243
    %v2805 = vpop.f32.mrb[0].mxu0
    %v2806 = vadd.f32 %v2268, %v2805
    %v2807 = vpop.f32.mrb[0].mxu0
    %2808 = vdwg.mxu0
    %2809 = vmatprep.subr.mxu0 0.0
    %2810 = vmatpush1.msra.mxu0 %v765
    %2811 = vmatprep.subr.mxu0 0.0
    %2812 = vmatpush1.msra.mxu0 %v768
    %2813 = vmatprep.subr.mxu0 0.0
    %2814 = vmatpush1.msra.mxu0 %v771
    %2815 = vmatprep.subr.mxu0 0.0
    %2816 = vmatpush1.msra.mxu0 %v774
    %2817 = vmatprep.subr.mxu0 0.0
    %2818 = vmatpush1.msra.mxu0 %v777
    %2819 = vmatprep.subr.mxu0 0.0
    %2820 = vmatpush1.msra.mxu0 %v780
    %2821 = vmatprep.subr.mxu0 0.0
    %2822 = vmatpush1.msra.mxu0 %v783
    %2823 = vmatprep.subr.mxu0 0.0
    %2824 = vmatpush1.msra.mxu0 %v786
    %2825 = vmatprep.subr.mxu0 0.0
    %2826 = vmatpush1.msra.mxu0 %v789
    %2827 = vmatprep.subr.mxu0 0.0
    %2828 = vmatpush1.msra.mxu0 %v792
    %2829 = vmatprep.subr.mxu0 0.0
    %2830 = vmatpush1.msra.mxu0 %v795
    %2831 = vmatprep.subr.mxu0 0.0
    %2832 = vmatpush1.msra.mxu0 %v798
    %2833 = vmatprep.subr.mxu0 0.0
    %2834 = vmatpush1.msra.mxu0 %v801
    %2835 = vmatprep.subr.mxu0 0.0
    %2836 = vmatpush1.msra.mxu0 %v804
    %2837 = vmatprep.subr.mxu0 0.0
    %2838 = vmatpush1.msra.mxu0 %v807
    %2839 = vmatprep.subr.mxu0 0.0
    %2840 = vmatpush1.msra.mxu0 %v810
    %2841 = vmatprep.subr.mxu0 0.0
    %2842 = vmatpush1.msra.mxu0 %v813
    %2843 = vmatprep.subr.mxu0 0.0
    %2844 = vmatpush1.msra.mxu0 %v816
    %2845 = vmatprep.subr.mxu0 0.0
    %2846 = vmatpush1.msra.mxu0 %v819
    %2847 = vmatprep.subr.mxu0 0.0
    %2848 = vmatpush1.msra.mxu0 %v822
    %2849 = vmatprep.subr.mxu0 0.0
    %2850 = vmatpush1.msra.mxu0 %v825
    %2851 = vmatprep.subr.mxu0 0.0
    %2852 = vmatpush1.msra.mxu0 %v828
    %2853 = vmatprep.subr.mxu0 0.0
    %2854 = vmatpush1.msra.mxu0 %v831
    %2855 = vmatprep.subr.mxu0 0.0
    %2856 = vmatpush1.msra.mxu0 %v834
    %2857 = vmatprep.subr.mxu0 0.0
    %2858 = vmatpush1.msra.mxu0 %v837
    %2859 = vmatprep.subr.mxu0 0.0
    %2860 = vmatpush1.msra.mxu0 %v840
    %2861 = vmatprep.subr.mxu0 0.0
    %2862 = vmatpush1.msra.mxu0 %v843
    %2863 = vmatprep.subr.mxu0 0.0
    %2864 = vmatpush1.msra.mxu0 %v846
    %2865 = vmatprep.subr.mxu0 0.0
    %2866 = vmatpush1.msra.mxu0 %v849
    %2867 = vmatprep.subr.mxu0 0.0
    %2868 = vmatpush1.msra.mxu0 %v852
    %2869 = vmatprep.subr.mxu0 0.0
    %2870 = vmatpush1.msra.mxu0 %v855
    %2871 = vmatprep.subr.mxu0 0.0
    %2872 = vmatpush1.msra.mxu0 %v858
    %2873 = vmatprep.mubr.f32.mxu0 %v2234
    %2874 = vmatmul.mubr.f32.gmra.mrb[0].mxu0 %v2233
    %v2875 = vpop.f32.mrb[0].mxu0
    %v2876 = vadd.f32 %v2801, %v2875
    %v2877 = vpop.f32.mrb[0].mxu0
    %2878 = vmatprep.mubr.f32.mxu0 %v2246
    %2879 = vmatmul.mubr.f32.gmra.mrb[0].mxu0 %v2245
    %v2880 = vpop.f32.mrb[0].mxu0
    %v2881 = vadd.f32 %v2806, %v2880
    %v2882 = vpop.f32.mrb[0].mxu0
    %2883 = vdwg.mxu0
    %2884 = vmatprep.subr.mxu0 0.0
    %2885 = vmatpush1.msra.mxu0 %v861
    %2886 = vmatprep.subr.mxu0 0.0
    %2887 = vmatpush1.msra.mxu0 %v864
    %2888 = vmatprep.subr.mxu0 0.0
    %2889 = vmatpush1.msra.mxu0 %v867
    %2890 = vmatprep.subr.mxu0 0.0
    %2891 = vmatpush1.msra.mxu0 %v870
    %2892 = vmatprep.subr.mxu0 0.0
    %2893 = vmatpush1.msra.mxu0 %v873
    %2894 = vmatprep.subr.mxu0 0.0
    %2895 = vmatpush1.msra.mxu0 %v876
    %2896 = vmatprep.subr.mxu0 0.0
    %2897 = vmatpush1.msra.mxu0 %v879
    %2898 = vmatprep.subr.mxu0 0.0
    %2899 = vmatpush1.msra.mxu0 %v882
    %2900 = vmatprep.subr.mxu0 0.0
    %2901 = vmatpush1.msra.mxu0 %v885
    %2902 = vmatprep.subr.mxu0 0.0
    %2903 = vmatpush1.msra.mxu0 %v888
    %2904 = vmatprep.subr.mxu0 0.0
    %2905 = vmatpush1.msra.mxu0 %v891
    %2906 = vmatprep.subr.mxu0 0.0
    %2907 = vmatpush1.msra.mxu0 %v894
    %2908 = vmatprep.subr.mxu0 0.0
    %2909 = vmatpush1.msra.mxu0 %v897
    %2910 = vmatprep.subr.mxu0 0.0
    %2911 = vmatpush1.msra.mxu0 %v900
    %2912 = vmatprep.subr.mxu0 0.0
    %2913 = vmatpush1.msra.mxu0 %v903
    %2914 = vmatprep.subr.mxu0 0.0
    %2915 = vmatpush1.msra.mxu0 %v906
    %2916 = vmatprep.subr.mxu0 0.0
    %2917 = vmatpush1.msra.mxu0 %v909
    %2918 = vmatprep.subr.mxu0 0.0
    %2919 = vmatpush1.msra.mxu0 %v912
    %2920 = vmatprep.subr.mxu0 0.0
    %2921 = vmatpush1.msra.mxu0 %v915
    %2922 = vmatprep.subr.mxu0 0.0
    %2923 = vmatpush1.msra.mxu0 %v918
    %2924 = vmatprep.subr.mxu0 0.0
    %2925 = vmatpush1.msra.mxu0 %v921
    %2926 = vmatprep.subr.mxu0 0.0
    %2927 = vmatpush1.msra.mxu0 %v924
    %2928 = vmatprep.subr.mxu0 0.0
    %2929 = vmatpush1.msra.mxu0 %v927
    %2930 = vmatprep.subr.mxu0 0.0
    %2931 = vmatpush1.msra.mxu0 %v930
    %2932 = vmatprep.subr.mxu0 0.0
    %2933 = vmatpush1.msra.mxu0 %v933
    %2934 = vmatprep.subr.mxu0 0.0
    %2935 = vmatpush1.msra.mxu0 %v936
    %2936 = vmatprep.subr.mxu0 0.0
    %2937 = vmatpush1.msra.mxu0 %v939
    %2938 = vmatprep.subr.mxu0 0.0
    %2939 = vmatpush1.msra.mxu0 %v942
    %2940 = vmatprep.subr.mxu0 0.0
    %2941 = vmatpush1.msra.mxu0 %v945
    %2942 = vmatprep.subr.mxu0 0.0
    %2943 = vmatpush1.msra.mxu0 %v948
    %2944 = vmatprep.subr.mxu0 0.0
    %2945 = vmatpush1.msra.mxu0 %v951
    %2946 = vmatprep.subr.mxu0 0.0
    %2947 = vmatpush1.msra.mxu0 %v954
    %2948 = vmatprep.mubr.f32.mxu0 %v2236
    %2949 = vmatmul.mubr.f32.gmra.mrb[0].mxu0 %v2235
    %v2950 = vpop.f32.mrb[0].mxu0
    %v2951 = vadd.f32 %v2876, %v2950
    %v2952 = vpop.f32.mrb[0].mxu0
    %2953 = vmatprep.mubr.f32.mxu0 %v2248
    %2954 = vmatmul.mubr.f32.gmra.mrb[0].mxu0 %v2247
    %v2955 = vpop.f32.mrb[0].mxu0
    %v2956 = vadd.f32 %v2881, %v2955
    %v2957 = vpop.f32.mrb[0].mxu0
    %2958 = vdwg.mxu0
    %2959 = vmatprep.subr.mxu0 0.0
    %2960 = vmatpush1.msra.mxu0 %v957
    %2961 = vmatprep.subr.mxu0 0.0
    %2962 = vmatpush1.msra.mxu0 %v960
    %2963 = vmatprep.subr.mxu0 0.0
    %2964 = vmatpush1.msra.mxu0 %v963
    %2965 = vmatprep.subr.mxu0 0.0
    %2966 = vmatpush1.msra.mxu0 %v966
    %2967 = vmatprep.subr.mxu0 0.0
    %2968 = vmatpush1.msra.mxu0 %v969
    %2969 = vmatprep.subr.mxu0 0.0
    %2970 = vmatpush1.msra.mxu0 %v972
    %2971 = vmatprep.subr.mxu0 0.0
    %2972 = vmatpush1.msra.mxu0 %v975
    %2973 = vmatprep.subr.mxu0 0.0
    %2974 = vmatpush1.msra.mxu0 %v978
    %2975 = vmatprep.subr.mxu0 0.0
    %2976 = vmatpush1.msra.mxu0 %v981
    %2977 = vmatprep.subr.mxu0 0.0
    %2978 = vmatpush1.msra.mxu0 %v984
    %2979 = vmatprep.subr.mxu0 0.0
    %2980 = vmatpush1.msra.mxu0 %v987
    %2981 = vmatprep.subr.mxu0 0.0
    %2982 = vmatpush1.msra.mxu0 %v990
    %2983 = vmatprep.subr.mxu0 0.0
    %2984 = vmatpush1.msra.mxu0 %v993
    %2985 = vmatprep.subr.mxu0 0.0
    %2986 = vmatpush1.msra.mxu0 %v996
    %2987 = vmatprep.subr.mxu0 0.0
    %2988 = vmatpush1.msra.mxu0 %v999
    %2989 = vmatprep.subr.mxu0 0.0
    %2990 = vmatpush1.msra.mxu0 %v1002
    %2991 = vmatprep.subr.mxu0 0.0
    %2992 = vmatpush1.msra.mxu0 %v1005
    %2993 = vmatprep.subr.mxu0 0.0
    %2994 = vmatpush1.msra.mxu0 %v1008
    %2995 = vmatprep.subr.mxu0 0.0
    %2996 = vmatpush1.msra.mxu0 %v1011
    %2997 = vmatprep.subr.mxu0 0.0
    %2998 = vmatpush1.msra.mxu0 %v1014
    %2999 = vmatprep.subr.mxu0 0.0
    %3000 = vmatpush1.msra.mxu0 %v1017
    %3001 = vmatprep.subr.mxu0 0.0
    %3002 = vmatpush1.msra.mxu0 %v1020
    %3003 = vmatprep.subr.mxu0 0.0
    %3004 = vmatpush1.msra.mxu0 %v1023
    %3005 = vmatprep.subr.mxu0 0.0
    %3006 = vmatpush1.msra.mxu0 %v1026
    %3007 = vmatprep.subr.mxu0 0.0
    %3008 = vmatpush1.msra.mxu0 %v1029
    %3009 = vmatprep.subr.mxu0 0.0
    %3010 = vmatpush1.msra.mxu0 %v1032
    %3011 = vmatprep.subr.mxu0 0.0
    %3012 = vmatpush1.msra.mxu0 %v1035
    %3013 = vmatprep.subr.mxu0 0.0
    %3014 = vmatpush1.msra.mxu0 %v1038
    %3015 = vmatprep.subr.mxu0 0.0
    %3016 = vmatpush1.msra.mxu0 %v1041
    %3017 = vmatprep.subr.mxu0 0.0
    %3018 = vmatpush1.msra.mxu0 %v1044
    %3019 = vmatprep.subr.mxu0 0.0
    %3020 = vmatpush1.msra.mxu0 %v1047
    %3021 = vmatprep.subr.mxu0 0.0
    %3022 = vmatpush1.msra.mxu0 %v1050
    %3023 = vmatprep.mubr.f32.mxu0 %v2238
    %3024 = vmatmul.mubr.f32.gmra.mrb[0].mxu0 %v2237
    %v3025 = vpop.f32.mrb[0].mxu0
    %v3026 = vadd.f32 %v2951, %v3025
    %v3027 = vpop.f32.mrb[0].mxu0
    %3028 = vmatprep.mubr.f32.mxu0 %v2250
    %3029 = vmatmul.mubr.f32.gmra.mrb[0].mxu0 %v2249
    %v3030 = vpop.f32.mrb[0].mxu0
    %v3031 = vadd.f32 %v2956, %v3030
    %v3032 = vpop.f32.mrb[0].mxu0
    %3033 = vdwg.mxu0
    %3034 = vmatprep.subr.mxu0 0.0
    %3035 = vmatpush1.msra.mxu0 %v1053
    %3036 = vmatprep.subr.mxu0 0.0
    %3037 = vmatpush1.msra.mxu0 %v1056
    %3038 = vmatprep.subr.mxu0 0.0
    %3039 = vmatpush1.msra.mxu0 %v1059
    %3040 = vmatprep.subr.mxu0 0.0
    %3041 = vmatpush1.msra.mxu0 %v1062
    %3042 = vmatprep.subr.mxu0 0.0
    %3043 = vmatpush1.msra.mxu0 %v1065
    %3044 = vmatprep.subr.mxu0 0.0
    %3045 = vmatpush1.msra.mxu0 %v1068
    %3046 = vmatprep.subr.mxu0 0.0
    %3047 = vmatpush1.msra.mxu0 %v1071
    %3048 = vmatprep.subr.mxu0 0.0
    %3049 = vmatpush1.msra.mxu0 %v1074
    %3050 = vmatprep.subr.mxu0 0.0
    %3051 = vmatpush1.msra.mxu0 %v1077
    %3052 = vmatprep.subr.mxu0 0.0
    %3053 = vmatpush1.msra.mxu0 %v1080
    %3054 = vmatprep.subr.mxu0 0.0
    %3055 = vmatpush1.msra.mxu0 %v1083
    %3056 = vmatprep.subr.mxu0 0.0
    %3057 = vmatpush1.msra.mxu0 %v1086
    %3058 = vmatprep.subr.mxu0 0.0
    %3059 = vmatpush1.msra.mxu0 %v1089
    %3060 = vmatprep.subr.mxu0 0.0
    %3061 = vmatpush1.msra.mxu0 %v1092
    %3062 = vmatprep.subr.mxu0 0.0
    %3063 = vmatpush1.msra.mxu0 %v1095
    %3064 = vmatprep.subr.mxu0 0.0
    %3065 = vmatpush1.msra.mxu0 %v1098
    %3066 = vmatprep.subr.mxu0 0.0
    %3067 = vmatpush1.msra.mxu0 %v1101
    %3068 = vmatprep.subr.mxu0 0.0
    %3069 = vmatpush1.msra.mxu0 %v1104
    %3070 = vmatprep.subr.mxu0 0.0
    %3071 = vmatpush1.msra.mxu0 %v1107
    %3072 = vmatprep.subr.mxu0 0.0
    %3073 = vmatpush1.msra.mxu0 %v1110
    %3074 = vmatprep.subr.mxu0 0.0
    %3075 = vmatpush1.msra.mxu0 %v1113
    %3076 = vmatprep.subr.mxu0 0.0
    %3077 = vmatpush1.msra.mxu0 %v1116
    %3078 = vmatprep.subr.mxu0 0.0
    %3079 = vmatpush1.msra.mxu0 %v1119
    %3080 = vmatprep.subr.mxu0 0.0
    %3081 = vmatpush1.msra.mxu0 %v1122
    %3082 = vmatprep.subr.mxu0 0.0
    %3083 = vmatpush1.msra.mxu0 %v1125
    %3084 = vmatprep.subr.mxu0 0.0
    %3085 = vmatpush1.msra.mxu0 %v1128
    %3086 = vmatprep.subr.mxu0 0.0
    %3087 = vmatpush1.msra.mxu0 %v1131
    %3088 = vmatprep.subr.mxu0 0.0
    %3089 = vmatpush1.msra.mxu0 %v1134
    %3090 = vmatprep.subr.mxu0 0.0
    %3091 = vmatpush1.msra.mxu0 %v1137
    %3092 = vmatprep.subr.mxu0 0.0
    %3093 = vmatpush1.msra.mxu0 %v1140
    %3094 = vmatprep.subr.mxu0 0.0
    %3095 = vmatpush1.msra.mxu0 %v1143
    %3096 = vmatprep.subr.mxu0 0.0
    %3097 = vmatpush1.msra.mxu0 %v1146
    %3098 = vmatprep.mubr.f32.mxu0 %v2240
    %3099 = vmatmul.mubr.f32.gmra.mrb[0].mxu0 %v2239
    %v3100 = vpop.f32.mrb[0].mxu0
    %v3101 = vadd.f32 %v3026, %v3100
    %v3102 = vpop.f32.mrb[0].mxu0
    %3103 = vmatprep.mubr.f32.mxu0 %v2252
    %3104 = vmatmul.mubr.f32.gmra.mrb[0].mxu0 %v2251
    %v3105 = vpop.f32.mrb[0].mxu0
    %v3106 = vadd.f32 %v3031, %v3105
    %v3107 = vpop.f32.mrb[0].mxu0
    %3108 = vdwg.mxu0
    %3109 = vmatprep.subr.mxu0 0.0
    %3110 = vmatpush1.msra.mxu0 %v1149
    %3111 = vmatprep.subr.mxu0 0.0
    %3112 = vmatpush1.msra.mxu0 %v1152
    %3113 = vmatprep.subr.mxu0 0.0
    %3114 = vmatpush1.msra.mxu0 %v1155
    %3115 = vmatprep.subr.mxu0 0.0
    %3116 = vmatpush1.msra.mxu0 %v1158
    %3117 = vmatprep.subr.mxu0 0.0
    %3118 = vmatpush1.msra.mxu0 %v1161
    %3119 = vmatprep.subr.mxu0 0.0
    %3120 = vmatpush1.msra.mxu0 %v1164
    %3121 = vmatprep.subr.mxu0 0.0
    %3122 = vmatpush1.msra.mxu0 %v1167
    %3123 = vmatprep.subr.mxu0 0.0
    %3124 = vmatpush1.msra.mxu0 %v1170
    %3125 = vmatprep.subr.mxu0 0.0
    %3126 = vmatpush1.msra.mxu0 %v1173
    %3127 = vmatprep.subr.mxu0 0.0
    %3128 = vmatpush1.msra.mxu0 %v1176
    %3129 = vmatprep.subr.mxu0 0.0
    %3130 = vmatpush1.msra.mxu0 %v1179
    %3131 = vmatprep.subr.mxu0 0.0
    %3132 = vmatpush1.msra.mxu0 %v1182
    %3133 = vmatprep.subr.mxu0 0.0
    %3134 = vmatpush1.msra.mxu0 %v1185
    %3135 = vmatprep.subr.mxu0 0.0
    %3136 = vmatpush1.msra.mxu0 %v1188
    %3137 = vmatprep.subr.mxu0 0.0
    %3138 = vmatpush1.msra.mxu0 %v1191
    %3139 = vmatprep.subr.mxu0 0.0
    %3140 = vmatpush1.msra.mxu0 %v1194
    %3141 = vmatprep.subr.mxu0 0.0
    %3142 = vmatpush1.msra.mxu0 %v1197
    %3143 = vmatprep.subr.mxu0 0.0
    %3144 = vmatpush1.msra.mxu0 %v1200
    %3145 = vmatprep.subr.mxu0 0.0
    %3146 = vmatpush1.msra.mxu0 %v1203
    %3147 = vmatprep.subr.mxu0 0.0
    %3148 = vmatpush1.msra.mxu0 %v1206
    %3149 = vmatprep.subr.mxu0 0.0
    %3150 = vmatpush1.msra.mxu0 %v1209
    %3151 = vmatprep.subr.mxu0 0.0
    %3152 = vmatpush1.msra.mxu0 %v1212
    %3153 = vmatprep.subr.mxu0 0.0
    %3154 = vmatpush1.msra.mxu0 %v1215
    %3155 = vmatprep.subr.mxu0 0.0
    %3156 = vmatpush1.msra.mxu0 %v1218
    %3157 = vmatprep.subr.mxu0 0.0
    %3158 = vmatpush1.msra.mxu0 %v1221
    %3159 = vmatprep.subr.mxu0 0.0
    %3160 = vmatpush1.msra.mxu0 %v1224
    %3161 = vmatprep.subr.mxu0 0.0
    %3162 = vmatpush1.msra.mxu0 %v1227
    %3163 = vmatprep.subr.mxu0 0.0
    %3164 = vmatpush1.msra.mxu0 %v1230
    %3165 = vmatprep.subr.mxu0 0.0
    %3166 = vmatpush1.msra.mxu0 %v1233
    %3167 = vmatprep.subr.mxu0 0.0
    %3168 = vmatpush1.msra.mxu0 %v1236
    %3169 = vmatprep.subr.mxu0 0.0
    %3170 = vmatpush1.msra.mxu0 %v1239
    %3171 = vmatprep.subr.mxu0 0.0
    %3172 = vmatpush1.msra.mxu0 %v1242
    %3173 = vmatprep.mubr.f32.mxu0 %v2242
    %3174 = vmatmul.mubr.f32.gmra.mrb[0].mxu0 %v2241
    %v3175 = vpop.f32.mrb[0].mxu0
    %v3176 = vadd.f32 %v3101, %v3175
    %v3177 = vpop.f32.mrb[0].mxu0
    %3178 = vmatprep.mubr.f32.mxu0 %v2254
    %3179 = vmatmul.mubr.f32.gmra.mrb[0].mxu0 %v2253
    %v3180 = vpop.f32.mrb[0].mxu0
    %v3181 = vadd.f32 %v3106, %v3180
    %v3182 = vpop.f32.mrb[0].mxu0
    %3183 = vdwg.mxu0
    %3184 = vst [vmem:[#allocation11] sm:$0xff] %v2724
    %3185 = vst [vmem:[#allocation11 + $0x8] sm:$0xff] %v2726
    %3186 = vst [vmem:[#allocation11 + $0x10] sm:$0xff] %v3176
    %3187 = vst [vmem:[#allocation11 + $0x18] sm:$0xff] %v2730
    %3188 = vst [vmem:[#allocation11 + $0x20] sm:$0xff] %v2732
    %3189 = vst [vmem:[#allocation11 + $0x28] sm:$0xff] %v3181
    // Predicated region
    $region42: #{tpu_custom_call.1} parent=1 // pred_check
      _
    $region43: #{tpu_custom_call.1} parent=1 // pred_check_branch
      %3191 = sbr.rel (0) target = $region45
    $region44: #{tpu_custom_call.1} parent=1 // pred_region
      %s3193 = ssub.s32 768, 768
      %3194 = vsyncadd [#allocation4], %s3193
      %s3195 = sshll.u32 [#allocation11], 4
      %s3196 = int_to_ptr.vmem [resolvable:$true] %s3195
      %3201 = dma.vmem_to_hbm [thread:$0]  %s3196, 768, %s5, [#allocation4], 384, 384, 24
    $region45: #{tpu_custom_call.1} parent=1 // pred_fallthru
      _
    // Predicated region
    $region46: #{tpu_custom_call.1} parent=1 // pred_check
      _
    $region47: #{tpu_custom_call.1} parent=1 // pred_check_branch
      %3203 = sbr.rel (0) target = $region49
    $region48: #{tpu_custom_call.1} parent=1 // pred_region
      %3204 = dma.done [#allocation4], 768
    $region49: #{tpu_custom_call.1} parent=1 // pred_fallthru
      _
    %3205 = vsyncpa [#allocation3], 1
    %3206 = vsyncpa [#allocation6], 1
    %3207 = vsyncpa [#allocation9], 1
    %3208 = vsyncpa [#allocation4], 1

</llo_original>
